<compile_context>
chip_gen: v6e
topology: v6e:2x2x1
jax: 0.10.0
libtpu: 0.0.40
codegen_flags: <defaults>
</compile_context>

<pallas_src>
import functools
import math

import jax
import jax.numpy as jnp
from jax.experimental import pallas as pl
from jax.experimental.pallas import tpu as pltpu


GW = 128                      # lane group width for the fused RPN head outputs
VMEM_LIMIT = 48 * 1024 * 1024  # safe on v7x (64 MiB physical), ample for v5e/v6e


def _round_up(v, m):
    return ((v + m - 1) // m) * m


def _pick_tile(dim, cap, unit=128):
    """Largest multiple of `unit` that divides `dim` and is <= cap (dim % unit == 0)."""
    best = unit
    t = unit
    while t <= min(max(cap, unit), dim):
        if dim % t == 0:
            best = t
        t += unit
    return best


# ----------------------------------------------------------------------------
# Generic tiled fused matmul (+bias, +ReLU) -- used for the extractor conv
# ----------------------------------------------------------------------------
def _matmul_bias_kernel(x_ref, w_ref, b_ref, o_ref, acc_ref, *, relu):
    k = pl.program_id(2)

    @pl.when(k == 0)
    def _():
        acc_ref[...] = jnp.zeros_like(acc_ref)

    acc_ref[...] += jnp.dot(x_ref[...], w_ref[...],
                            preferred_element_type=jnp.float32)

    @pl.when(k == pl.num_programs(2) - 1)
    def _():
        out = acc_ref[...] + b_ref[...]
        if relu:
            out = jnp.maximum(out, 0.0)
        o_ref[...] = out.astype(o_ref.dtype)


def matmul_bias(x, w, b, relu=False, out_dtype=jnp.float32,
                tm=512, tn=512, tk=512):
    """y = relu?(x @ w + b).

    w: pre-padded [Kp, Np] bf16 (Kp, Np multiples of 128); b: pre-padded [1, Np] f32.
    x: [M, K] with K <= Kp (zero-padded here only if needed).  Returns the padded
    [Mp, Np] result (callers keep padded activations between layers; slice at the end).
    """
    M, K = x.shape
    Kp, Np = w.shape
    assert K <= Kp and Kp % 128 == 0 and Np % 128 == 0 and b.shape == (1, Np)

    tm_ = min(_round_up(tm, 16), _round_up(M, 16))   # bf16 packs 16 rows / vreg
    tk_ = _pick_tile(Kp, tk)
    tn_ = _pick_tile(Np, tn)
    Mp = _round_up(M, tm_)

    # v7x: make sure the "parallel" axes have >=2 blocks when possible so both
    # TensorCores get work.
    if (Mp // tm_) * (Np // tn_) < 2 and tn_ % 256 == 0:
        tn_ //= 2

    xp = x.astype(jnp.bfloat16)
    if (Mp, Kp) != (M, K):
        xp = jnp.pad(xp, ((0, Mp - M), (0, Kp - K)))

    grid = (Mp // tm_, Np // tn_, Kp // tk_)
    out_bytes = Mp * Np * (4 if out_dtype == jnp.float32 else 2)
    return pl.pallas_call(
        functools.partial(_matmul_bias_kernel, relu=relu),
        out_shape=jax.ShapeDtypeStruct((Mp, Np), out_dtype),
        grid=grid,
        in_specs=[
            pl.BlockSpec((tm_, tk_), lambda i, j, k: (i, k)),
            pl.BlockSpec((tk_, tn_), lambda i, j, k: (k, j)),
            pl.BlockSpec((1, tn_), lambda i, j, k: (0, j)),
        ],
        out_specs=pl.BlockSpec((tm_, tn_), lambda i, j, k: (i, j)),
        scratch_shapes=[pltpu.VMEM((tm_, tn_), jnp.float32)],
        compiler_params=pltpu.CompilerParams(
            dimension_semantics=("parallel", "parallel", "arbitrary"),
            vmem_limit_bytes=VMEM_LIMIT),
        cost_estimate=pl.CostEstimate(
            flops=2 * Mp * Np * Kp,
            transcendentals=0,
            bytes_accessed=(Mp * Kp + Kp * Np) * 2 + Np * 4 + out_bytes),
    )(xp, w, b)


# ----------------------------------------------------------------------------
# Fused RPN kernel: 3x3 SAME conv (im2col fused as 9 shifted-row matmuls) + ReLU
# + fused loc/score head matmul, all in one pallas_call ("mid" stays in VMEM).
# ----------------------------------------------------------------------------
def _rpn_fused_kernel(feat_ref, w1_ref, b1_ref, wh_ref, bh_ref, out_ref,
                      *, tap_offsets, cp, mq):
    # feat_ref: [Mfeat, Cp] bf16 -- spatially padded feature, row-flattened over the
    #           padded width, so tap (dy, dx) is a static row offset dy*Wp + dx.
    # w1_ref:   [9*Cp, MIDp] bf16, tap-major / channel-minor.
    acc = jnp.zeros((mq, w1_ref.shape[1]), jnp.float32)
    for t, off in enumerate(tap_offsets):
        acc = acc + jnp.dot(feat_ref[off:off + mq, :],
                            w1_ref[t * cp:(t + 1) * cp, :],
                            preferred_element_type=jnp.float32)
    mid = jnp.maximum(acc + b1_ref[...], 0.0).astype(jnp.bfloat16)   # never leaves VMEM
    out_ref[...] = (jnp.dot(mid, wh_ref[...], preferred_element_type=jnp.float32)
                    + bh_ref[...]).astype(out_ref.dtype)


def rpn_fused(featp, w1, b1, wh, bh, *, mqp, cp, tap_offsets):
    # TODO(synk): at production feature sizes, tile this over row blocks of the
    # flattened feature (halo-aware offsets) instead of holding it whole in VMEM.
    mfeat = featp.shape[0]
    midp = w1.shape[1]
    cols = wh.shape[1]
    return pl.pallas_call(
        functools.partial(_rpn_fused_kernel, tap_offsets=tuple(tap_offsets),
                          cp=cp, mq=mqp),
        out_shape=jax.ShapeDtypeStruct((mqp, cols), jnp.float32),
        grid=(1,),
        in_specs=[pl.BlockSpec((mfeat, cp), lambda i: (0, 0)),
                  pl.BlockSpec((9 * cp, midp), lambda i: (0, 0)),
                  pl.BlockSpec((1, midp), lambda i: (0, 0)),
                  pl.BlockSpec((midp, cols), lambda i: (0, 0)),
                  pl.BlockSpec((1, cols), lambda i: (0, 0))],
        out_specs=pl.BlockSpec((mqp, cols), lambda i: (0, 0)),
        compiler_params=pltpu.CompilerParams(vmem_limit_bytes=VMEM_LIMIT),
    )(featp, w1, b1, wh, bh)


# ----------------------------------------------------------------------------
# Box decode + objectness kernel (consumes rpn_out directly, 128-lane groups)
# ----------------------------------------------------------------------------
def _decode_kernel(rpn_ref, anch_ref, box_ref, fg_ref, *, img_h, img_w, loc_clip, gw):
    a = anch_ref[...]                                 # [M, 4*gw]: x1|y1|x2|y2 groups
    r = rpn_ref[...]                                  # [M, 6*gw]: dx|dy|dw|dh|bg|fg
    x1 = a[:, 0 * gw:1 * gw]
    y1 = a[:, 1 * gw:2 * gw]
    x2 = a[:, 2 * gw:3 * gw]
    y2 = a[:, 3 * gw:4 * gw]
    dx = r[:, 0 * gw:1 * gw]
    dy = r[:, 1 * gw:2 * gw]
    dw = jnp.minimum(r[:, 2 * gw:3 * gw], loc_clip)   # clamp before exp (torchvision)
    dh = jnp.minimum(r[:, 3 * gw:4 * gw], loc_clip)
    bg = r[:, 4 * gw:5 * gw]
    fg = r[:, 5 * gw:6 * gw]

    w = x2 - x1
    h = y2 - y1
    cx = x1 + 0.5 * w
    cy = y1 + 0.5 * h
    ncx = dx * w + cx
    ncy = dy * h + cy
    nw = jnp.exp(dw) * w
    nh = jnp.exp(dh) * h
    box_ref[:, 0 * gw:1 * gw] = jnp.clip(ncx - 0.5 * nw, 0.0, img_w)
    box_ref[:, 1 * gw:2 * gw] = jnp.clip(ncy - 0.5 * nh, 0.0, img_h)
    box_ref[:, 2 * gw:3 * gw] = jnp.clip(ncx + 0.5 * nw, 0.0, img_w)
    box_ref[:, 3 * gw:4 * gw] = jnp.clip(ncy + 0.5 * nh, 0.0, img_h)
    # objectness: softmax(bg, fg)[fg] = sigmoid(fg - bg); EUP exp + EUP vrcp
    fg_ref[...] = pl.reciprocal(1.0 + jnp.exp(bg - fg), approx=True)


def decode_and_score(rpn_out, anchors, img_h, img_w):
    mqp, cols = rpn_out.shape
    assert anchors.shape == (mqp, 4 * GW) and cols == 6 * GW
    boxes, fg = pl.pallas_call(
        functools.partial(_decode_kernel, img_h=float(img_w * 0 + img_w),
                          img_w=float(img_w), loc_clip=math.log(1000.0 / 16.0),
                          gw=GW) if False else
        functools.partial(_decode_kernel, img_h=float(img_h), img_w=float(img_w),
                          loc_clip=math.log(1000.0 / 16.0), gw=GW),
        out_shape=(jax.ShapeDtypeStruct((mqp, 4 * GW), jnp.float32),
                   jax.ShapeDtypeStruct((mqp, GW), jnp.float32)),
        grid=(1,),
        in_specs=[pl.BlockSpec((mqp, cols), lambda i: (0, 0)),
                  pl.BlockSpec((mqp, 4 * GW), lambda i: (0, 0))],
        out_specs=(pl.BlockSpec((mqp, 4 * GW), lambda i: (0, 0)),
                   pl.BlockSpec((mqp, GW), lambda i: (0, 0))),
    )(rpn_out, anchors)
    return boxes, fg


# ----------------------------------------------------------------------------
# Fused RoI head: fc1 (K-tiled reduction) + ReLU + fused cls_loc/score head.
# fc7 lives in a VMEM scratch; one pallas_call instead of two.
# ----------------------------------------------------------------------------
def _roi_head_kernel(x_ref, w1_ref, b1_ref, w2_ref, b2_ref, o_ref, acc_ref):
    k = pl.program_id(0)

    @pl.when(k == 0)
    def _():
        acc_ref[...] = jnp.zeros_like(acc_ref)

    acc_ref[...] += jnp.dot(x_ref[...], w1_ref[...],
                            preferred_element_type=jnp.float32)

    @pl.when(k == pl.num_programs(0) - 1)
    def _():
        fc7 = jnp.maximum(acc_ref[...] + b1_ref[...], 0.0).astype(jnp.bfloat16)
        o_ref[...] = (jnp.dot(fc7, w2_ref[...], preferred_element_type=jnp.float32)
                      + b2_ref[...]).astype(o_ref.dtype)


def roi_head_fused(pooled, w_fc1, b_fc1, w_head, b_head, tk=2048):
    R, K = pooled.shape
    Kp, hidp = w_fc1.shape
    outp = w_head.shape[1]
    assert K <= Kp
    Rp = _round_up(R, 16)
    xp = pooled.astype(jnp.bfloat16)
    if (Rp, Kp) != (R, K):
        xp = jnp.pad(xp, ((0, Rp - R), (0, Kp - K)))
    tk_ = _pick_tile(Kp, tk)
    return pl.pallas_call(
        _roi_head_kernel,
        out_shape=jax.ShapeDtypeStruct((Rp, outp), jnp.float32),
        grid=(Kp // tk_,),
        in_specs=[pl.BlockSpec((Rp, tk_), lambda k: (0, k)),
                  pl.BlockSpec((tk_, hidp), lambda k: (k, 0)),
                  pl.BlockSpec((1, hidp), lambda k: (0, 0)),
                  pl.BlockSpec((hidp, outp), lambda k: (0, 0)),
                  pl.BlockSpec((1, outp), lambda k: (0, 0))],
        out_specs=pl.BlockSpec((Rp, outp), lambda k: (0, 0)),
        scratch_shapes=[pltpu.VMEM((Rp, hidp), jnp.float32)],
        compiler_params=pltpu.CompilerParams(
            dimension_semantics=("arbitrary",),
            vmem_limit_bytes=VMEM_LIMIT),
        cost_estimate=pl.CostEstimate(
            flops=2 * Rp * hidp * Kp + 2 * Rp * outp * hidp,
            transcendentals=0,
            bytes_accessed=(Rp * Kp + Kp * hidp + hidp * outp) * 2 + Rp * outp * 4),
    )(xp, w_fc1, b_fc1, w_head, b_head)


# ----------------------------------------------------------------------------
# Plain-JAX glue: patchify, anchors, RoI sampling
# ----------------------------------------------------------------------------
def patchify(x_nchw, k):
    """Non-overlapping kxk patches -> [B*(H/k)*(W/k), C*k*k] (C, kh, kw flatten order)."""
    B, C, H, W = x_nchw.shape
    x = x_nchw.reshape(B, C, H // k, k, W // k, k)
    x = jnp.transpose(x, (0, 2, 4, 1, 3, 5))
    return x.reshape(B * (H // k) * (W // k), C * k * k)


def generate_anchor_base(base_size, ratios, scales):
    rows = []
    for r in ratios:
        for s in scales:
            h = base_size * s * (r ** 0.5)
            w = base_size * s * ((1.0 / r) ** 0.5)
            rows.append([-w / 2.0, -h / 2.0, w / 2.0, h / 2.0])
    return jnp.asarray(rows, dtype=jnp.float32)            # [A, 4] (x1,y1,x2,y2)


def make_anchors_grouped(anchor_base, feat_stride, hf, wp, mqp):
    """Anchors laid out to match rpn_out rows (flattened over padded width wp):
    [mqp, 4*GW] with coordinate groups x1|y1|x2|y2, anchor index along lanes."""
    A = anchor_base.shape[0]
    mq = hf * wp
    q = jnp.arange(mq)
    xs = (q % wp).astype(jnp.float32) * feat_stride
    ys = (q // wp).astype(jnp.float32) * feat_stride
    shifts = jnp.stack([xs, ys, xs, ys], axis=1)            # [mq, 4]
    base = jnp.zeros((4, GW), jnp.float32).at[:, :A].set(anchor_base.T)
    anchors = (shifts[:, :, None] + base[None, :, :]).reshape(mq, 4 * GW)
    return jnp.pad(anchors, ((0, mqp - mq), (0, 0)))


def roi_pool_nearest(feat_hwc, rois, roi_size, feat_stride):
    """feat: [Hf, Wf, C] (bf16); rois: [R, 4] image coords -> [R, S*S*C] (nearest)."""
    # TODO(synk): stream the gathered rows straight into the RoI-head matmul via
    # PrefetchScalarGridSpec / manual make_async_copy instead of an XLA gather.
    Hf, Wf, C = feat_hwc.shape
    R = rois.shape[0]
    x1, y1, x2, y2 = rois[:, 0], rois[:, 1], rois[:, 2], rois[:, 3]
    centers = (jnp.arange(roi_size, dtype=jnp.float32) + 0.5) / roi_size
    sx = (x1[:, None] + (x2 - x1)[:, None] * centers) / feat_stride
    sy = (y1[:, None] + (y2 - y1)[:, None] * centers) / feat_stride
    ix = jnp.clip(jnp.floor(sx), 0, Wf - 1).astype(jnp.int32)    # [R, S]
    iy = jnp.clip(jnp.floor(sy), 0, Hf - 1).astype(jnp.int32)    # [R, S]
    pooled = feat_hwc[iy[:, :, None], ix[:, None, :], :]         # [R, S, S, C]
    return pooled.reshape(R, roi_size * roi_size * C)


# ----------------------------------------------------------------------------
# FasterRCNN forward
# ----------------------------------------------------------------------------
def faster_rcnn_forward(x, params, cfg, scale=1.0):
    del scale  # only used by ProposalCreator min-size filtering in the original
    B, C_in, H, W = x.shape
    assert B == 1, "proposal path assumes batch == 1 (as in the reference inference path)"
    fs = cfg["feat_stride"]
    Hf, Wf = H // fs, W // fs
    A = cfg["n_anchor"]
    cfp = _round_up(cfg["c_feat"], 128)

    # ---- extractor (TODO(synk): resnet50 replaced by one stride-16 patch conv) ----
    patches = patchify(x, fs)                                    # [BHW, C_in*fs*fs]
    feat_flat = matmul_bias(patches, params["w_ext"], params["b_ext"],
                            relu=True, out_dtype=jnp.bfloat16)   # [Mp, cfp] padded
    BHW = Hf * Wf
    feat_hwc = feat_flat[:BHW].reshape(Hf, Wf, cfp)              # bf16; pad channels = 0

    # ---- RPN: fused 3x3 conv + loc/score head (im2col fused, mid stays in VMEM) ----
    Hp, Wp = Hf + 2, Wf + 2
    Mq = Hf * Wp                                                 # rows incl. junk columns
    Mqp = _round_up(Mq, 16)
    tap_offsets = [dy * Wp + dx for dy in range(3) for dx in range(3)]
    Mfeat = _round_up(max(tap_offsets) + Mqp, 8)
    featp = jnp.pad(feat_hwc, ((1, 1), (1, 1), (0, 0))).reshape(Hp * Wp, cfp)
    featp = jnp.pad(featp, ((0, Mfeat - Hp * Wp), (0, 0)))
    rpn_out = rpn_fused(featp, params["w_rpn1"], params["b_rpn1"],
                        params["w_rpn_head"], params["b_rpn_head"],
                        mqp=Mqp, cp=cfp, tap_offsets=tap_offsets)  # [Mqp, 6*GW] f32

    anchor_base = generate_anchor_base(fs, cfg["ratios"], cfg["anchor_scales"])
    anchors = make_anchors_grouped(anchor_base, fs, Hf, Wp, Mqp)   # [Mqp, 4*GW]

    boxes, fg = decode_and_score(rpn_out, anchors, H, W)           # [Mqp,4GW], [Mqp,GW]

    # TODO(synk): ProposalCreator NMS has no clean Pallas equivalent; top-k instead.
    q_ids = jnp.arange(Mq)
    valid = ((q_ids % Wp) < Wf)[:, None] & (jnp.arange(GW) < A)[None, :]
    fg_masked = jnp.where(valid, fg[:Mq], -1.0).reshape(-1)
    _, top_idx = jax.lax.top_k(fg_masked, cfg["n_post"])
    q = top_idx // GW
    a = top_idx % GW
    rois = jnp.stack([boxes[q, c * GW + a] for c in range(4)], axis=1)   # [R, 4]
    roi_indices = jnp.zeros((cfg["n_post"],), dtype=jnp.int32)           # batch == 1

    # ---- RoI head (fused fc1 + cls_loc/score, single pallas_call) -------------------
    pooled_flat = roi_pool_nearest(feat_hwc, rois, cfg["roi_size"], fs)  # [R, S*S*cfp]
    head_out = roi_head_fused(pooled_flat, params["w_fc1"], params["b_fc1"],
                              params["w_head"], params["b_head"])        # [Rp, OUTp] f32
    nc = cfg["n_class"]
    R = cfg["n_post"]
    roi_cls_locs = head_out[:R, :nc * 4].reshape(B, R, nc * 4)
    roi_scores = head_out[:R, nc * 4:nc * 5].reshape(B, R, nc)
    rois = rois.reshape(B, R, 4)
    roi_indices = roi_indices.reshape(B, R)
    return roi_cls_locs, roi_scores, rois, roi_indices


def init_params(key, cfg):
    """All weights pre-padded to 128-multiples and pre-cast to bf16 once (no per-call
    pad/cast); biases pre-padded [1, Np] f32.  RPN head column layout: six 128-lane
    groups [dx|dy|dw|dh|bg|fg] (importing PyTorch weights needs a column permutation).
    """
    fs, ci, cf, mid = cfg["feat_stride"], cfg["c_in"], cfg["c_feat"], cfg["mid"]
    A, nc, hid, rs = cfg["n_anchor"], cfg["n_class"], cfg["hidden"], cfg["roi_size"]
    cfp = _round_up(cf, 128)
    midp = _round_up(mid, 128)
    hidp = _round_up(hid, 128)
    outp = _round_up(nc * 5, 128)

    def dense(k, fan_in, shape, scale=1.0):
        return scale * jax.random.normal(k, shape, jnp.float32) / jnp.sqrt(float(fan_in))

    ks = jax.random.split(key, 8)
    p = {}
    # extractor: stride-16 patch conv [ci*fs*fs, cf] -> pad N to cfp
    w_ext = dense(ks[0], ci * fs * fs, (ci * fs * fs, cf))
    p["w_ext"] = jnp.pad(w_ext, ((0, 0), (0, cfp - cf))).astype(jnp.bfloat16)
    p["b_ext"] = jnp.zeros((1, cfp), jnp.float32)
    # RPN 3x3 conv: [9, cf, mid] (tap-major, C-minor) -> [9*cfp, midp]
    w1 = dense(ks[1], cf * 9, (9, cf, mid))
    w1 = jnp.pad(w1, ((0, 0), (0, cfp - cf), (0, midp - mid))).reshape(9 * cfp, midp)
    p["w_rpn1"] = w1.astype(jnp.bfloat16)
    p["b_rpn1"] = jnp.zeros((1, midp), jnp.float32)
    # fused RPN head: six groups [dx|dy|dw|dh|bg|fg], each padded to GW lanes
    w_loc = dense(ks[2], mid, (mid, 4, A), scale=0.1)
    w_sc = dense(ks[3], mid, (mid, 2, A))
    w_head = jnp.concatenate([w_loc, w_sc], axis=1)                 # [mid, 6, A]
    w_head = jnp.pad(w_head, ((0, midp - mid), (0, 0), (0, GW - A))).reshape(midp, 6 * GW)
    p["w_rpn_head"] = w_head.astype(jnp.bfloat16)
    p["b_rpn_head"] = jnp.zeros((1, 6 * GW), jnp.float32)
    # RoI head fc1: [rs, rs, cf, hid] -> pad channel dim to cfp -> [rs*rs*cfp, hidp]
    w_fc1 = dense(ks[4], cf * rs * rs, (rs, rs, cf, hid))
    w_fc1 = jnp.pad(w_fc1, ((0, 0), (0, 0), (0, cfp - cf), (0, hidp - hid)))
    p["w_fc1"] = w_fc1.reshape(rs * rs * cfp, hidp).astype(jnp.bfloat16)
    p["b_fc1"] = jnp.zeros((1, hidp), jnp.float32)
    # fused RoI head: [cls_loc (nc*4) | score (nc)] -> [hidp, outp]
    w_cls_loc = dense(ks[5], hid, (hid, nc * 4))
    w_score = dense(ks[6], hid, (hid, nc))
    w_h = jnp.concatenate([w_cls_loc, w_score], axis=1)
    w_h = jnp.pad(w_h, ((0, hidp - hid), (0, outp - nc * 5)))
    p["w_head"] = w_h.astype(jnp.bfloat16)
    p["b_head"] = jnp.zeros((1, outp), jnp.float32)
    return p


if __name__ == "__main__":
    num_classes = 3
    cfg = dict(
        feat_stride=16,
        anchor_scales=(8, 16, 32),
        ratios=(0.5, 1.0, 2.0),
        n_anchor=9,
        c_in=3,
        c_feat=128,       # small, lane-aligned stand-in for resnet50's 1024 channels
        mid=128,          # small stand-in for RPN's 512 mid channels
        hidden=128,       # small stand-in for resnet head's 2048-d feature
        roi_size=14,      # Resnet50RoIHead roi_size
        n_post=8,         # proposals kept (top-k instead of NMS)
        n_class=num_classes + 1,
    )

    key = jax.random.PRNGKey(0)
    k_param, k_x = jax.random.split(key)
    params = init_params(k_param, cfg)

    # input image, NCHW: [B=1, C=3, H=64, W=64] -> 4x4 base feature at stride 16
    x = jax.random.normal(k_x, (1, 3, 64, 64), jnp.float32)

    fwd = jax.jit(lambda xx, pp: faster_rcnn_forward(xx, pp, cfg))
    roi_cls_locs, roi_scores, rois, roi_indices = fwd(x, params)
    jax.block_until_ready((roi_cls_locs, roi_scores, rois, roi_indices))

    assert roi_cls_locs.shape == (1, cfg["n_post"], cfg["n_class"] * 4)
    assert roi_scores.shape == (1, cfg["n_post"], cfg["n_class"])
    assert rois.shape == (1, cfg["n_post"], 4)
    assert roi_indices.shape == (1, cfg["n_post"])
    assert bool(jnp.all(jnp.isfinite(roi_cls_locs))) and bool(jnp.all(jnp.isfinite(rois)))
    print("KERNEL_OK")
</pallas_src>

<mosaic_0001>
module attributes {stable_mosaic.version = 11 : i64} {
  func.func @_matmul_bias_kernel(%arg0: i32, %arg1: i32, %arg2: i32, %arg3: memref<16x384xbf16, #tpu.memory_space<vmem>>, %arg4: memref<384x128xbf16, #tpu.memory_space<vmem>>, %arg5: memref<1x128xf32, #tpu.memory_space<vmem>>, %arg6: memref<16x128xbf16, #tpu.memory_space<vmem>>, %arg7: memref<16x128xf32, #tpu.memory_space<vmem>>) attributes {dimension_semantics = [#tpu.dimension_semantics<parallel>, #tpu.dimension_semantics<parallel>, #tpu.dimension_semantics<arbitrary>], iteration_bounds = array<i64: 1, 1, 2>, scalar_prefetch = 0 : i64, scratch_operands = 1 : i64, tpu.core_type = #tpu.core_type<tc>, window_params = [{transform_indices = @transform_0, window_bounds = array<i64: 16, 384>}, {transform_indices = @transform_1, window_bounds = array<i64: 384, 128>}, {transform_indices = @transform_2, window_bounds = array<i64: 1, 128>}, {transform_indices = @transform_3, window_bounds = array<i64: 16, 128>}]} {
    %c0_i32 = arith.constant 0 : i32
    %0 = arith.cmpi eq, %arg2, %c0_i32 : i32
    %1 = arith.extui %0 : i1 to i32
    %c0_i32_0 = arith.constant 0 : i32
    %2 = arith.cmpi ne, %1, %c0_i32_0 : i32
    scf.if %2 {
      %cst_9 = arith.constant 0.000000e+00 : f32
      %12 = vector.broadcast %cst_9 : f32 to vector<16x128xf32>
      %c0_10 = arith.constant 0 : index
      %c0_11 = arith.constant 0 : index
      %13 = vector.load %arg7[%c0_10, %c0_11] : memref<16x128xf32, #tpu.memory_space<vmem>>, vector<16x128xf32>
      tpu.vector_store %arg7[%c0_10, %c0_11], %12 {strides = array<i32>} : memref<16x128xf32, #tpu.memory_space<vmem>>, vector<16x128xf32>,
    } else {
    }
    %c0 = arith.constant 0 : index
    %c0_1 = arith.constant 0 : index
    %3 = vector.load %arg7[%c0, %c0_1] : memref<16x128xf32, #tpu.memory_space<vmem>>, vector<16x128xf32>
    %c0_2 = arith.constant 0 : index
    %c0_3 = arith.constant 0 : index
    %4 = vector.load %arg3[%c0_2, %c0_3] : memref<16x384xbf16, #tpu.memory_space<vmem>>, vector<16x384xbf16>
    %c0_4 = arith.constant 0 : index
    %c0_5 = arith.constant 0 : index
    %5 = vector.load %arg4[%c0_4, %c0_5] : memref<384x128xbf16, #tpu.memory_space<vmem>>, vector<384x128xbf16>
    %cst = arith.constant dense<0.000000e+00> : vector<16x128xf32>
    %6 = tpu.matmul %4, %5, %cst {dimension_numbers = #tpu.dot_dimension_numbers<[1], [0], [0], [1], [0, 0, 1, 1], [], []>} : vector<16x384xbf16>, vector<384x128xbf16>, vector<16x128xf32> -> vector<16x128xf32>
    %7 = arith.addf %3, %6 : vector<16x128xf32>
    %c0_6 = arith.constant 0 : index
    %c0_7 = arith.constant 0 : index
    %8 = vector.load %arg7[%c0_6, %c0_7] : memref<16x128xf32, #tpu.memory_space<vmem>>, vector<16x128xf32>
    tpu.vector_store %arg7[%c0_6, %c0_7], %7 {strides = array<i32>} : memref<16x128xf32, #tpu.memory_space<vmem>>, vector<16x128xf32>,
    %c1_i32 = arith.constant 1 : i32
    %9 = arith.cmpi eq, %arg2, %c1_i32 : i32
    %10 = arith.extui %9 : i1 to i32
    %c0_i32_8 = arith.constant 0 : i32
    %11 = arith.cmpi ne, %10, %c0_i32_8 : i32
    scf.if %11 {
      %c0_9 = arith.constant 0 : index
      %c0_10 = arith.constant 0 : index
      %12 = vector.load %arg7[%c0_9, %c0_10] : memref<16x128xf32, #tpu.memory_space<vmem>>, vector<16x128xf32>
      %c0_11 = arith.constant 0 : index
      %c0_12 = arith.constant 0 : index
      %13 = vector.load %arg5[%c0_11, %c0_12] : memref<1x128xf32, #tpu.memory_space<vmem>>, vector<1x128xf32>
      %14 = vector.broadcast %13 : vector<1x128xf32> to vector<16x128xf32>
      %15 = arith.addf %12, %14 : vector<16x128xf32>
      %cst_13 = arith.constant 0.000000e+00 : f32
      %16 = vector.broadcast %cst_13 : f32 to vector<16x128xf32>
      %17 = arith.maximumf %15, %16 : vector<16x128xf32>
      %18 = arith.truncf %17 : vector<16x128xf32> to vector<16x128xbf16>
      %c0_14 = arith.constant 0 : index
      %c0_15 = arith.constant 0 : index
      %19 = vector.load %arg6[%c0_14, %c0_15] : memref<16x128xbf16, #tpu.memory_space<vmem>>, vector<16x128xbf16>
      tpu.vector_store %arg6[%c0_14, %c0_15], %18 {strides = array<i32>} : memref<16x128xbf16, #tpu.memory_space<vmem>>, vector<16x128xbf16>,
    } else {
    }
    return
  }
  func.func @transform_0(%arg0: i32, %arg1: i32, %arg2: i32) -> (i32, i32) {
    %c0_i32 = arith.constant 0 : i32
    return %arg0, %arg2 : i32, i32
  }
  func.func @transform_1(%arg0: i32, %arg1: i32, %arg2: i32) -> (i32, i32) {
    %c0_i32 = arith.constant 0 : i32
    return %arg2, %arg1 : i32, i32
  }
  func.func @transform_2(%arg0: i32, %arg1: i32, %arg2: i32) -> (i32, i32) {
    %c0_i32 = arith.constant 0 : i32
    %c0_i32_0 = arith.constant 0 : i32
    return %c0_i32, %arg1 : i32, i32
  }
  func.func @transform_3(%arg0: i32, %arg1: i32, %arg2: i32) -> (i32, i32) {
    %c0_i32 = arith.constant 0 : i32
    return %arg0, %arg1 : i32, i32
  }
}

module attributes {stable_mosaic.version = 11 : i64} {
  func.func @_rpn_fused_kernel(%arg0: i32, %arg1: memref<48x128xbf16, #tpu.memory_space<vmem>>, %arg2: memref<1152x128xbf16, #tpu.memory_space<vmem>>, %arg3: memref<1x128xf32, #tpu.memory_space<vmem>>, %arg4: memref<128x768xbf16, #tpu.memory_space<vmem>>, %arg5: memref<1x768xf32, #tpu.memory_space<vmem>>, %arg6: memref<32x768xf32, #tpu.memory_space<vmem>>) attributes {dimension_semantics = [#tpu.dimension_semantics<arbitrary>], iteration_bounds = array<i64: 1>, scalar_prefetch = 0 : i64, scratch_operands = 0 : i64, tpu.core_type = #tpu.core_type<tc>, window_params = [{pipeline_mode = #tpu.pipeline_mode<synchronous>, transform_indices = @transform_0, window_bounds = array<i64: 48, 128>}, {pipeline_mode = #tpu.pipeline_mode<synchronous>, transform_indices = @transform_1, window_bounds = array<i64: 1152, 128>}, {pipeline_mode = #tpu.pipeline_mode<synchronous>, transform_indices = @transform_2, window_bounds = array<i64: 1, 128>}, {pipeline_mode = #tpu.pipeline_mode<synchronous>, transform_indices = @transform_3, window_bounds = array<i64: 128, 768>}, {pipeline_mode = #tpu.pipeline_mode<synchronous>, transform_indices = @transform_4, window_bounds = array<i64: 1, 768>}, {pipeline_mode = #tpu.pipeline_mode<synchronous>, transform_indices = @transform_5, window_bounds = array<i64: 32, 768>}]} {
    %cst = arith.constant 0.000000e+00 : f32
    %0 = vector.broadcast %cst : f32 to vector<32x128xf32>
    %c0 = arith.constant 0 : index
    %c0_0 = arith.constant 0 : index
    %1 = vector.load %arg1[%c0, %c0_0] : memref<48x128xbf16, #tpu.memory_space<vmem>>, vector<32x128xbf16>
    %c0_1 = arith.constant 0 : index
    %c0_2 = arith.constant 0 : index
    %2 = vector.load %arg2[%c0_1, %c0_2] : memref<1152x128xbf16, #tpu.memory_space<vmem>>, vector<128x128xbf16>
    %cst_3 = arith.constant dense<0.000000e+00> : vector<32x128xf32>
    %3 = tpu.matmul %1, %2, %cst_3 {dimension_numbers = #tpu.dot_dimension_numbers<[1], [0], [0], [1], [0, 0, 1, 1], [], []>} : vector<32x128xbf16>, vector<128x128xbf16>, vector<32x128xf32> -> vector<32x128xf32>
    %4 = arith.addf %0, %3 : vector<32x128xf32>
    %c1 = arith.constant 1 : index
    %c0_4 = arith.constant 0 : index
    %5 = vector.load %arg1[%c1, %c0_4] : memref<48x128xbf16, #tpu.memory_space<vmem>>, vector<32x128xbf16>
    %c128 = arith.constant 128 : index
    %c0_5 = arith.constant 0 : index
    %6 = vector.load %arg2[%c128, %c0_5] : memref<1152x128xbf16, #tpu.memory_space<vmem>>, vector<128x128xbf16>
    %cst_6 = arith.constant dense<0.000000e+00> : vector<32x128xf32>
    %7 = tpu.matmul %5, %6, %cst_6 {dimension_numbers = #tpu.dot_dimension_numbers<[1], [0], [0], [1], [0, 0, 1, 1], [], []>} : vector<32x128xbf16>, vector<128x128xbf16>, vector<32x128xf32> -> vector<32x128xf32>
    %8 = arith.addf %4, %7 : vector<32x128xf32>
    %c2 = arith.constant 2 : index
    %c0_7 = arith.constant 0 : index
    %9 = vector.load %arg1[%c2, %c0_7] : memref<48x128xbf16, #tpu.memory_space<vmem>>, vector<32x128xbf16>
    %c256 = arith.constant 256 : index
    %c0_8 = arith.constant 0 : index
    %10 = vector.load %arg2[%c256, %c0_8] : memref<1152x128xbf16, #tpu.memory_space<vmem>>, vector<128x128xbf16>
    %cst_9 = arith.constant dense<0.000000e+00> : vector<32x128xf32>
    %11 = tpu.matmul %9, %10, %cst_9 {dimension_numbers = #tpu.dot_dimension_numbers<[1], [0], [0], [1], [0, 0, 1, 1], [], []>} : vector<32x128xbf16>, vector<128x128xbf16>, vector<32x128xf32> -> vector<32x128xf32>
    %12 = arith.addf %8, %11 : vector<32x128xf32>
    %c6 = arith.constant 6 : index
    %c0_10 = arith.constant 0 : index
    %13 = vector.load %arg1[%c6, %c0_10] : memref<48x128xbf16, #tpu.memory_space<vmem>>, vector<32x128xbf16>
    %c384 = arith.constant 384 : index
    %c0_11 = arith.constant 0 : index
    %14 = vector.load %arg2[%c384, %c0_11] : memref<1152x128xbf16, #tpu.memory_space<vmem>>, vector<128x128xbf16>
    %cst_12 = arith.constant dense<0.000000e+00> : vector<32x128xf32>
    %15 = tpu.matmul %13, %14, %cst_12 {dimension_numbers = #tpu.dot_dimension_numbers<[1], [0], [0], [1], [0, 0, 1, 1], [], []>} : vector<32x128xbf16>, vector<128x128xbf16>, vector<32x128xf32> -> vector<32x128xf32>
    %16 = arith.addf %12, %15 : vector<32x128xf32>
    %c7 = arith.constant 7 : index
    %c0_13 = arith.constant 0 : index
    %17 = vector.load %arg1[%c7, %c0_13] : memref<48x128xbf16, #tpu.memory_space<vmem>>, vector<32x128xbf16>
    %c512 = arith.constant 512 : index
    %c0_14 = arith.constant 0 : index
    %18 = vector.load %arg2[%c512, %c0_14] : memref<1152x128xbf16, #tpu.memory_space<vmem>>, vector<128x128xbf16>
    %cst_15 = arith.constant dense<0.000000e+00> : vector<32x128xf32>
    %19 = tpu.matmul %17, %18, %cst_15 {dimension_numbers = #tpu.dot_dimension_numbers<[1], [0], [0], [1], [0, 0, 1, 1], [], []>} : vector<32x128xbf16>, vector<128x128xbf16>, vector<32x128xf32> -> vector<32x128xf32>
    %20 = arith.addf %16, %19 : vector<32x128xf32>
    %c8 = arith.constant 8 : index
    %c0_16 = arith.constant 0 : index
    %21 = vector.load %arg1[%c8, %c0_16] : memref<48x128xbf16, #tpu.memory_space<vmem>>, vector<32x128xbf16>
    %c640 = arith.constant 640 : index
    %c0_17 = arith.constant 0 : index
    %22 = vector.load %arg2[%c640, %c0_17] : memref<1152x128xbf16, #tpu.memory_space<vmem>>, vector<128x128xbf16>
    %cst_18 = arith.constant dense<0.000000e+00> : vector<32x128xf32>
    %23 = tpu.matmul %21, %22, %cst_18 {dimension_numbers = #tpu.dot_dimension_numbers<[1], [0], [0], [1], [0, 0, 1, 1], [], []>} : vector<32x128xbf16>, vector<128x128xbf16>, vector<32x128xf32> -> vector<32x128xf32>
    %24 = arith.addf %20, %23 : vector<32x128xf32>
    %c12 = arith.constant 12 : index
    %c0_19 = arith.constant 0 : index
    %25 = vector.load %arg1[%c12, %c0_19] : memref<48x128xbf16, #tpu.memory_space<vmem>>, vector<32x128xbf16>
    %c768 = arith.constant 768 : index
    %c0_20 = arith.constant 0 : index
    %26 = vector.load %arg2[%c768, %c0_20] : memref<1152x128xbf16, #tpu.memory_space<vmem>>, vector<128x128xbf16>
    %cst_21 = arith.constant dense<0.000000e+00> : vector<32x128xf32>
    %27 = tpu.matmul %25, %26, %cst_21 {dimension_numbers = #tpu.dot_dimension_numbers<[1], [0], [0], [1], [0, 0, 1, 1], [], []>} : vector<32x128xbf16>, vector<128x128xbf16>, vector<32x128xf32> -> vector<32x128xf32>
    %28 = arith.addf %24, %27 : vector<32x128xf32>
    %c13 = arith.constant 13 : index
    %c0_22 = arith.constant 0 : index
    %29 = vector.load %arg1[%c13, %c0_22] : memref<48x128xbf16, #tpu.memory_space<vmem>>, vector<32x128xbf16>
    %c896 = arith.constant 896 : index
    %c0_23 = arith.constant 0 : index
    %30 = vector.load %arg2[%c896, %c0_23] : memref<1152x128xbf16, #tpu.memory_space<vmem>>, vector<128x128xbf16>
    %cst_24 = arith.constant dense<0.000000e+00> : vector<32x128xf32>
    %31 = tpu.matmul %29, %30, %cst_24 {dimension_numbers = #tpu.dot_dimension_numbers<[1], [0], [0], [1], [0, 0, 1, 1], [], []>} : vector<32x128xbf16>, vector<128x128xbf16>, vector<32x128xf32> -> vector<32x128xf32>
    %32 = arith.addf %28, %31 : vector<32x128xf32>
    %c14 = arith.constant 14 : index
    %c0_25 = arith.constant 0 : index
    %33 = vector.load %arg1[%c14, %c0_25] : memref<48x128xbf16, #tpu.memory_space<vmem>>, vector<32x128xbf16>
    %c1024 = arith.constant 1024 : index
    %c0_26 = arith.constant 0 : index
    %34 = vector.load %arg2[%c1024, %c0_26] : memref<1152x128xbf16, #tpu.memory_space<vmem>>, vector<128x128xbf16>
    %cst_27 = arith.constant dense<0.000000e+00> : vector<32x128xf32>
    %35 = tpu.matmul %33, %34, %cst_27 {dimension_numbers = #tpu.dot_dimension_numbers<[1], [0], [0], [1], [0, 0, 1, 1], [], []>} : vector<32x128xbf16>, vector<128x128xbf16>, vector<32x128xf32> -> vector<32x128xf32>
    %36 = arith.addf %32, %35 : vector<32x128xf32>
    %c0_28 = arith.constant 0 : index
    %c0_29 = arith.constant 0 : index
    %37 = vector.load %arg3[%c0_28, %c0_29] : memref<1x128xf32, #tpu.memory_space<vmem>>, vector<1x128xf32>
    %38 = vector.broadcast %37 : vector<1x128xf32> to vector<32x128xf32>
    %39 = arith.addf %36, %38 : vector<32x128xf32>
    %cst_30 = arith.constant 0.000000e+00 : f32
    %40 = vector.broadcast %cst_30 : f32 to vector<32x128xf32>
    %41 = arith.maximumf %39, %40 : vector<32x128xf32>
    %42 = arith.truncf %41 : vector<32x128xf32> to vector<32x128xbf16>
    %c0_31 = arith.constant 0 : index
    %c0_32 = arith.constant 0 : index
    %43 = vector.load %arg4[%c0_31, %c0_32] : memref<128x768xbf16, #tpu.memory_space<vmem>>, vector<128x768xbf16>
    %cst_33 = arith.constant dense<0.000000e+00> : vector<32x768xf32>
    %44 = tpu.matmul %42, %43, %cst_33 {dimension_numbers = #tpu.dot_dimension_numbers<[1], [0], [0], [1], [0, 0, 1, 1], [], []>} : vector<32x128xbf16>, vector<128x768xbf16>, vector<32x768xf32> -> vector<32x768xf32>
    %c0_34 = arith.constant 0 : index
    %c0_35 = arith.constant 0 : index
    %45 = vector.load %arg5[%c0_34, %c0_35] : memref<1x768xf32, #tpu.memory_space<vmem>>, vector<1x768xf32>
    %46 = vector.broadcast %45 : vector<1x768xf32> to vector<32x768xf32>
    %47 = arith.addf %44, %46 : vector<32x768xf32>
    %c0_36 = arith.constant 0 : index
    %c0_37 = arith.constant 0 : index
    %48 = vector.load %arg6[%c0_36, %c0_37] : memref<32x768xf32, #tpu.memory_space<vmem>>, vector<32x768xf32>
    tpu.vector_store %arg6[%c0_36, %c0_37], %47 {strides = array<i32>} : memref<32x768xf32, #tpu.memory_space<vmem>>, vector<32x768xf32>,
    return
  }
  func.func @transform_0(%arg0: i32) -> (i32, i32) {
    %c0_i32 = arith.constant 0 : i32
    %c0_i32_0 = arith.constant 0 : i32
    %c0_i32_1 = arith.constant 0 : i32
    return %c0_i32, %c0_i32_0 : i32, i32
  }
  func.func @transform_1(%arg0: i32) -> (i32, i32) {
    %c0_i32 = arith.constant 0 : i32
    %c0_i32_0 = arith.constant 0 : i32
    %c0_i32_1 = arith.constant 0 : i32
    return %c0_i32, %c0_i32_0 : i32, i32
  }
  func.func @transform_2(%arg0: i32) -> (i32, i32) {
    %c0_i32 = arith.constant 0 : i32
    %c0_i32_0 = arith.constant 0 : i32
    %c0_i32_1 = arith.constant 0 : i32
    return %c0_i32, %c0_i32_0 : i32, i32
  }
  func.func @transform_3(%arg0: i32) -> (i32, i32) {
    %c0_i32 = arith.constant 0 : i32
    %c0_i32_0 = arith.constant 0 : i32
    %c0_i32_1 = arith.constant 0 : i32
    return %c0_i32, %c0_i32_0 : i32, i32
  }
  func.func @transform_4(%arg0: i32) -> (i32, i32) {
    %c0_i32 = arith.constant 0 : i32
    %c0_i32_0 = arith.constant 0 : i32
    %c0_i32_1 = arith.constant 0 : i32
    return %c0_i32, %c0_i32_0 : i32, i32
  }
  func.func @transform_5(%arg0: i32) -> (i32, i32) {
    %c0_i32 = arith.constant 0 : i32
    %c0_i32_0 = arith.constant 0 : i32
    %c0_i32_1 = arith.constant 0 : i32
    return %c0_i32, %c0_i32_0 : i32, i32
  }
}

module attributes {stable_mosaic.version = 11 : i64} {
  func.func @_decode_kernel(%arg0: i32, %arg1: memref<32x768xf32, #tpu.memory_space<vmem>>, %arg2: memref<32x512xf32, #tpu.memory_space<vmem>>, %arg3: memref<32x512xf32, #tpu.memory_space<vmem>>, %arg4: memref<32x128xf32, #tpu.memory_space<vmem>>) attributes {dimension_semantics = [#tpu.dimension_semantics<arbitrary>], iteration_bounds = array<i64: 1>, scalar_prefetch = 0 : i64, scratch_operands = 0 : i64, tpu.core_type = #tpu.core_type<tc>, window_params = [{pipeline_mode = #tpu.pipeline_mode<synchronous>, transform_indices = @transform_0, window_bounds = array<i64: 32, 768>}, {pipeline_mode = #tpu.pipeline_mode<synchronous>, transform_indices = @transform_1, window_bounds = array<i64: 32, 512>}, {pipeline_mode = #tpu.pipeline_mode<synchronous>, transform_indices = @transform_2, window_bounds = array<i64: 32, 512>}, {pipeline_mode = #tpu.pipeline_mode<synchronous>, transform_indices = @transform_3, window_bounds = array<i64: 32, 128>}]} {
    %c0 = arith.constant 0 : index
    %c0_0 = arith.constant 0 : index
    %0 = vector.load %arg2[%c0, %c0_0] : memref<32x512xf32, #tpu.memory_space<vmem>>, vector<32x512xf32>
    %c0_1 = arith.constant 0 : index
    %c0_2 = arith.constant 0 : index
    %1 = vector.load %arg1[%c0_1, %c0_2] : memref<32x768xf32, #tpu.memory_space<vmem>>, vector<32x768xf32>
    %2 = vector.extract_strided_slice %0 {offsets = [0, 0], sizes = [32, 128], strides = [1, 1]} : vector<32x512xf32> to vector<32x128xf32>
    %3 = vector.extract_strided_slice %0 {offsets = [0, 128], sizes = [32, 128], strides = [1, 1]} : vector<32x512xf32> to vector<32x128xf32>
    %4 = vector.extract_strided_slice %0 {offsets = [0, 256], sizes = [32, 128], strides = [1, 1]} : vector<32x512xf32> to vector<32x128xf32>
    %5 = vector.extract_strided_slice %0 {offsets = [0, 384], sizes = [32, 128], strides = [1, 1]} : vector<32x512xf32> to vector<32x128xf32>
    %6 = vector.extract_strided_slice %1 {offsets = [0, 0], sizes = [32, 128], strides = [1, 1]} : vector<32x768xf32> to vector<32x128xf32>
    %7 = vector.extract_strided_slice %1 {offsets = [0, 128], sizes = [32, 128], strides = [1, 1]} : vector<32x768xf32> to vector<32x128xf32>
    %8 = vector.extract_strided_slice %1 {offsets = [0, 256], sizes = [32, 128], strides = [1, 1]} : vector<32x768xf32> to vector<32x128xf32>
    %cst = arith.constant 4.13516665 : f32
    %9 = vector.broadcast %cst : f32 to vector<32x128xf32>
    %10 = arith.minimumf %8, %9 : vector<32x128xf32>
    %11 = vector.extract_strided_slice %1 {offsets = [0, 384], sizes = [32, 128], strides = [1, 1]} : vector<32x768xf32> to vector<32x128xf32>
    %cst_3 = arith.constant 4.13516665 : f32
    %12 = vector.broadcast %cst_3 : f32 to vector<32x128xf32>
    %13 = arith.minimumf %11, %12 : vector<32x128xf32>
    %14 = vector.extract_strided_slice %1 {offsets = [0, 512], sizes = [32, 128], strides = [1, 1]} : vector<32x768xf32> to vector<32x128xf32>
    %15 = vector.extract_strided_slice %1 {offsets = [0, 640], sizes = [32, 128], strides = [1, 1]} : vector<32x768xf32> to vector<32x128xf32>
    %16 = arith.subf %4, %2 : vector<32x128xf32>
    %17 = arith.subf %5, %3 : vector<32x128xf32>
    %cst_4 = arith.constant 5.000000e-01 : f32
    %18 = vector.broadcast %cst_4 : f32 to vector<32x128xf32>
    %19 = arith.mulf %18, %16 : vector<32x128xf32>
    %20 = arith.addf %2, %19 : vector<32x128xf32>
    %cst_5 = arith.constant 5.000000e-01 : f32
    %21 = vector.broadcast %cst_5 : f32 to vector<32x128xf32>
    %22 = arith.mulf %21, %17 : vector<32x128xf32>
    %23 = arith.addf %3, %22 : vector<32x128xf32>
    %24 = arith.mulf %6, %16 : vector<32x128xf32>
    %25 = arith.addf %24, %20 : vector<32x128xf32>
    %26 = arith.mulf %7, %17 : vector<32x128xf32>
    %27 = arith.addf %26, %23 : vector<32x128xf32>
    %28 = math.exp %10 : vector<32x128xf32>
    %29 = arith.mulf %28, %16 : vector<32x128xf32>
    %30 = math.exp %13 : vector<32x128xf32>
    %31 = arith.mulf %30, %17 : vector<32x128xf32>
    %cst_6 = arith.constant 5.000000e-01 : f32
    %32 = vector.broadcast %cst_6 : f32 to vector<32x128xf32>
    %33 = arith.mulf %32, %29 : vector<32x128xf32>
    %34 = arith.subf %25, %33 : vector<32x128xf32>
    %cst_7 = arith.constant 0.000000e+00 : f32
    %cst_8 = arith.constant 6.400000e+01 : f32
    %35 = vector.broadcast %cst_7 : f32 to vector<32x128xf32>
    %36 = arith.maximumf %35, %34 : vector<32x128xf32>
    %37 = vector.broadcast %cst_8 : f32 to vector<32x128xf32>
    %38 = arith.minimumf %37, %36 : vector<32x128xf32>
    %c0_9 = arith.constant 0 : index
    %c0_10 = arith.constant 0 : index
    %39 = vector.load %arg3[%c0_9, %c0_10] : memref<32x512xf32, #tpu.memory_space<vmem>>, vector<32x128xf32>
    tpu.vector_store %arg3[%c0_9, %c0_10], %38 {strides = array<i32>} : memref<32x512xf32, #tpu.memory_space<vmem>>, vector<32x128xf32>,
    %cst_11 = arith.constant 5.000000e-01 : f32
    %40 = vector.broadcast %cst_11 : f32 to vector<32x128xf32>
    %41 = arith.mulf %40, %31 : vector<32x128xf32>
    %42 = arith.subf %27, %41 : vector<32x128xf32>
    %cst_12 = arith.constant 0.000000e+00 : f32
    %cst_13 = arith.constant 6.400000e+01 : f32
    %43 = vector.broadcast %cst_12 : f32 to vector<32x128xf32>
    %44 = arith.maximumf %43, %42 : vector<32x128xf32>
    %45 = vector.broadcast %cst_13 : f32 to vector<32x128xf32>
    %46 = arith.minimumf %45, %44 : vector<32x128xf32>
    %c0_14 = arith.constant 0 : index
    %c128 = arith.constant 128 : index
    %47 = vector.load %arg3[%c0_14, %c128] : memref<32x512xf32, #tpu.memory_space<vmem>>, vector<32x128xf32>
    tpu.vector_store %arg3[%c0_14, %c128], %46 {strides = array<i32>} : memref<32x512xf32, #tpu.memory_space<vmem>>, vector<32x128xf32>,
    %cst_15 = arith.constant 5.000000e-01 : f32
    %48 = vector.broadcast %cst_15 : f32 to vector<32x128xf32>
    %49 = arith.mulf %48, %29 : vector<32x128xf32>
    %50 = arith.addf %25, %49 : vector<32x128xf32>
    %cst_16 = arith.constant 0.000000e+00 : f32
    %cst_17 = arith.constant 6.400000e+01 : f32
    %51 = vector.broadcast %cst_16 : f32 to vector<32x128xf32>
    %52 = arith.maximumf %51, %50 : vector<32x128xf32>
    %53 = vector.broadcast %cst_17 : f32 to vector<32x128xf32>
    %54 = arith.minimumf %53, %52 : vector<32x128xf32>
    %c0_18 = arith.constant 0 : index
    %c256 = arith.constant 256 : index
    %55 = vector.load %arg3[%c0_18, %c256] : memref<32x512xf32, #tpu.memory_space<vmem>>, vector<32x128xf32>
    tpu.vector_store %arg3[%c0_18, %c256], %54 {strides = array<i32>} : memref<32x512xf32, #tpu.memory_space<vmem>>, vector<32x128xf32>,
    %cst_19 = arith.constant 5.000000e-01 : f32
    %56 = vector.broadcast %cst_19 : f32 to vector<32x128xf32>
    %57 = arith.mulf %56, %31 : vector<32x128xf32>
    %58 = arith.addf %27, %57 : vector<32x128xf32>
    %cst_20 = arith.constant 0.000000e+00 : f32
    %cst_21 = arith.constant 6.400000e+01 : f32
    %59 = vector.broadcast %cst_20 : f32 to vector<32x128xf32>
    %60 = arith.maximumf %59, %58 : vector<32x128xf32>
    %61 = vector.broadcast %cst_21 : f32 to vector<32x128xf32>
    %62 = arith.minimumf %61, %60 : vector<32x128xf32>
    %c0_22 = arith.constant 0 : index
    %c384 = arith.constant 384 : index
    %63 = vector.load %arg3[%c0_22, %c384] : memref<32x512xf32, #tpu.memory_space<vmem>>, vector<32x128xf32>
    tpu.vector_store %arg3[%c0_22, %c384], %62 {strides = array<i32>} : memref<32x512xf32, #tpu.memory_space<vmem>>, vector<32x128xf32>,
    %64 = arith.subf %14, %15 : vector<32x128xf32>
    %65 = math.exp %64 : vector<32x128xf32>
    %cst_23 = arith.constant 1.000000e+00 : f32
    %66 = vector.broadcast %cst_23 : f32 to vector<32x128xf32>
    %67 = arith.addf %66, %65 : vector<32x128xf32>
    %68 = tpu.reciprocal %67 {approx = true} : vector<32x128xf32> -> vector<32x128xf32>
    %c0_24 = arith.constant 0 : index
    %c0_25 = arith.constant 0 : index
    %69 = vector.load %arg4[%c0_24, %c0_25] : memref<32x128xf32, #tpu.memory_space<vmem>>, vector<32x128xf32>
    tpu.vector_store %arg4[%c0_24, %c0_25], %68 {strides = array<i32>} : memref<32x128xf32, #tpu.memory_space<vmem>>, vector<32x128xf32>,
    return
  }
  func.func @transform_0(%arg0: i32) -> (i32, i32) {
    %c0_i32 = arith.constant 0 : i32
    %c0_i32_0 = arith.constant 0 : i32
    %c0_i32_1 = arith.constant 0 : i32
    return %c0_i32, %c0_i32_0 : i32, i32
  }
  func.func @transform_1(%arg0: i32) -> (i32, i32) {
    %c0_i32 = arith.constant 0 : i32
    %c0_i32_0 = arith.constant 0 : i32
    %c0_i32_1 = arith.constant 0 : i32
    return %c0_i32, %c0_i32_0 : i32, i32
  }
  func.func @transform_2(%arg0: i32) -> (i32, i32) {
    %c0_i32 = arith.constant 0 : i32
    %c0_i32_0 = arith.constant 0 : i32
    %c0_i32_1 = arith.constant 0 : i32
    return %c0_i32, %c0_i32_0 : i32, i32
  }
  func.func @transform_3(%arg0: i32) -> (i32, i32) {
    %c0_i32 = arith.constant 0 : i32
    %c0_i32_0 = arith.constant 0 : i32
    %c0_i32_1 = arith.constant 0 : i32
    return %c0_i32, %c0_i32_0 : i32, i32
  }
}

module attributes {stable_mosaic.version = 11 : i64} {
  func.func @_roi_head_kernel(%arg0: i32, %arg1: memref<16x1792xbf16, #tpu.memory_space<vmem>>, %arg2: memref<1792x128xbf16, #tpu.memory_space<vmem>>, %arg3: memref<1x128xf32, #tpu.memory_space<vmem>>, %arg4: memref<128x128xbf16, #tpu.memory_space<vmem>>, %arg5: memref<1x128xf32, #tpu.memory_space<vmem>>, %arg6: memref<16x128xf32, #tpu.memory_space<vmem>>, %arg7: memref<16x128xf32, #tpu.memory_space<vmem>>) attributes {dimension_semantics = [#tpu.dimension_semantics<arbitrary>], iteration_bounds = array<i64: 14>, scalar_prefetch = 0 : i64, scratch_operands = 1 : i64, tpu.core_type = #tpu.core_type<tc>, window_params = [{transform_indices = @transform_0, window_bounds = array<i64: 16, 1792>}, {transform_indices = @transform_1, window_bounds = array<i64: 1792, 128>}, {pipeline_mode = #tpu.pipeline_mode<synchronous>, transform_indices = @transform_2, window_bounds = array<i64: 1, 128>}, {pipeline_mode = #tpu.pipeline_mode<synchronous>, transform_indices = @transform_3, window_bounds = array<i64: 128, 128>}, {pipeline_mode = #tpu.pipeline_mode<synchronous>, transform_indices = @transform_4, window_bounds = array<i64: 1, 128>}, {pipeline_mode = #tpu.pipeline_mode<synchronous>, transform_indices = @transform_5, window_bounds = array<i64: 16, 128>}]} {
    %c0_i32 = arith.constant 0 : i32
    %0 = arith.cmpi eq, %arg0, %c0_i32 : i32
    %1 = arith.extui %0 : i1 to i32
    %c0_i32_0 = arith.constant 0 : i32
    %2 = arith.cmpi ne, %1, %c0_i32_0 : i32
    scf.if %2 {
      %cst_9 = arith.constant 0.000000e+00 : f32
      %12 = vector.broadcast %cst_9 : f32 to vector<16x128xf32>
      %c0_10 = arith.constant 0 : index
      %c0_11 = arith.constant 0 : index
      %13 = vector.load %arg7[%c0_10, %c0_11] : memref<16x128xf32, #tpu.memory_space<vmem>>, vector<16x128xf32>
      tpu.vector_store %arg7[%c0_10, %c0_11], %12 {strides = array<i32>} : memref<16x128xf32, #tpu.memory_space<vmem>>, vector<16x128xf32>,
    } else {
    }
    %c0 = arith.constant 0 : index
    %c0_1 = arith.constant 0 : index
    %3 = vector.load %arg7[%c0, %c0_1] : memref<16x128xf32, #tpu.memory_space<vmem>>, vector<16x128xf32>
    %c0_2 = arith.constant 0 : index
    %c0_3 = arith.constant 0 : index
    %4 = vector.load %arg1[%c0_2, %c0_3] : memref<16x1792xbf16, #tpu.memory_space<vmem>>, vector<16x1792xbf16>
    %c0_4 = arith.constant 0 : index
    %c0_5 = arith.constant 0 : index
    %5 = vector.load %arg2[%c0_4, %c0_5] : memref<1792x128xbf16, #tpu.memory_space<vmem>>, vector<1792x128xbf16>
    %cst = arith.constant dense<0.000000e+00> : vector<16x128xf32>
    %6 = tpu.matmul %4, %5, %cst {dimension_numbers = #tpu.dot_dimension_numbers<[1], [0], [0], [1], [0, 0, 1, 1], [], []>} : vector<16x1792xbf16>, vector<1792x128xbf16>, vector<16x128xf32> -> vector<16x128xf32>
    %7 = arith.addf %3, %6 : vector<16x128xf32>
    %c0_6 = arith.constant 0 : index
    %c0_7 = arith.constant 0 : index
    %8 = vector.load %arg7[%c0_6, %c0_7] : memref<16x128xf32, #tpu.memory_space<vmem>>, vector<16x128xf32>
    tpu.vector_store %arg7[%c0_6, %c0_7], %7 {strides = array<i32>} : memref<16x128xf32, #tpu.memory_space<vmem>>, vector<16x128xf32>,
    %c13_i32 = arith.constant 13 : i32
    %9 = arith.cmpi eq, %arg0, %c13_i32 : i32
    %10 = arith.extui %9 : i1 to i32
    %c0_i32_8 = arith.constant 0 : i32
    %11 = arith.cmpi ne, %10, %c0_i32_8 : i32
    scf.if %11 {
      %c0_9 = arith.constant 0 : index
      %c0_10 = arith.constant 0 : index
      %12 = vector.load %arg7[%c0_9, %c0_10] : memref<16x128xf32, #tpu.memory_space<vmem>>, vector<16x128xf32>
      %c0_11 = arith.constant 0 : index
      %c0_12 = arith.constant 0 : index
      %13 = vector.load %arg3[%c0_11, %c0_12] : memref<1x128xf32, #tpu.memory_space<vmem>>, vector<1x128xf32>
      %14 = vector.broadcast %13 : vector<1x128xf32> to vector<16x128xf32>
      %15 = arith.addf %12, %14 : vector<16x128xf32>
      %cst_13 = arith.constant 0.000000e+00 : f32
      %16 = vector.broadcast %cst_13 : f32 to vector<16x128xf32>
      %17 = arith.maximumf %15, %16 : vector<16x128xf32>
      %18 = arith.truncf %17 : vector<16x128xf32> to vector<16x128xbf16>
      %c0_14 = arith.constant 0 : index
      %c0_15 = arith.constant 0 : index
      %19 = vector.load %arg4[%c0_14, %c0_15] : memref<128x128xbf16, #tpu.memory_space<vmem>>, vector<128x128xbf16>
      %cst_16 = arith.constant dense<0.000000e+00> : vector<16x128xf32>
      %20 = tpu.matmul %18, %19, %cst_16 {dimension_numbers = #tpu.dot_dimension_numbers<[1], [0], [0], [1], [0, 0, 1, 1], [], []>} : vector<16x128xbf16>, vector<128x128xbf16>, vector<16x128xf32> -> vector<16x128xf32>
      %c0_17 = arith.constant 0 : index
      %c0_18 = arith.constant 0 : index
      %21 = vector.load %arg5[%c0_17, %c0_18] : memref<1x128xf32, #tpu.memory_space<vmem>>, vector<1x128xf32>
      %22 = vector.broadcast %21 : vector<1x128xf32> to vector<16x128xf32>
      %23 = arith.addf %20, %22 : vector<16x128xf32>
      %c0_19 = arith.constant 0 : index
      %c0_20 = arith.constant 0 : index
      %24 = vector.load %arg6[%c0_19, %c0_20] : memref<16x128xf32, #tpu.memory_space<vmem>>, vector<16x128xf32>
      tpu.vector_store %arg6[%c0_19, %c0_20], %23 {strides = array<i32>} : memref<16x128xf32, #tpu.memory_space<vmem>>, vector<16x128xf32>,
    } else {
    }
    return
  }
  func.func @transform_0(%arg0: i32) -> (i32, i32) {
    %c0_i32 = arith.constant 0 : i32
    %c0_i32_0 = arith.constant 0 : i32
    return %c0_i32, %arg0 : i32, i32
  }
  func.func @transform_1(%arg0: i32) -> (i32, i32) {
    %c0_i32 = arith.constant 0 : i32
    %c0_i32_0 = arith.constant 0 : i32
    return %arg0, %c0_i32 : i32, i32
  }
  func.func @transform_2(%arg0: i32) -> (i32, i32) {
    %c0_i32 = arith.constant 0 : i32
    %c0_i32_0 = arith.constant 0 : i32
    %c0_i32_1 = arith.constant 0 : i32
    return %c0_i32, %c0_i32_0 : i32, i32
  }
  func.func @transform_3(%arg0: i32) -> (i32, i32) {
    %c0_i32 = arith.constant 0 : i32
    %c0_i32_0 = arith.constant 0 : i32
    %c0_i32_1 = arith.constant 0 : i32
    return %c0_i32, %c0_i32_0 : i32, i32
  }
  func.func @transform_4(%arg0: i32) -> (i32, i32) {
    %c0_i32 = arith.constant 0 : i32
    %c0_i32_0 = arith.constant 0 : i32
    %c0_i32_1 = arith.constant 0 : i32
    return %c0_i32, %c0_i32_0 : i32, i32
  }
  func.func @transform_5(%arg0: i32) -> (i32, i32) {
    %c0_i32 = arith.constant 0 : i32
    %c0_i32_0 = arith.constant 0 : i32
    %c0_i32_1 = arith.constant 0 : i32
    return %c0_i32, %c0_i32_0 : i32, i32
  }
}

</mosaic_0001>

<llo_original>
// kernel: _lambda_.4
$region0: #{_lambda_.4}
  #allocation0 [shape = 'u32[]', space=smem, size = 0x4, offset = 0x4, fixed_abs, tag = 'smem constant byte address 0x4 - core index']
  #allocation1 [shape = 'u32[144,128]{1,0:T(1,128)}', space=vmem, size = 0x12000, scoped, tag = 'internal scratch']
  #allocation2 [shape = 'f32[16,128]{1,0:T(8,128)}', space=vmem, size = 0x2000, scoped, tag = 'scratch operand']
  %s0 = inlined_call_operand.vmem [shape: bf16[16,768], index: 0, kind: input, shape index: {}]
  %s1 = inlined_call_operand.hbm [shape: bf16[768,128], index: 1, kind: input, shape index: {}]
  %s2 = inlined_call_operand.hbm [shape: f32[1,128], index: 2, kind: input, shape index: {}]
  %s3 = inlined_call_operand.vmem [shape: bf16[16,128], index: 3, kind: output, shape index: {}]
  %s4 = sld [smem:[#allocation0]]
  $region87: #{_lambda_.4} parent=0
    _
  %s6 = ssub.s32 1, %s4
  %s7 = scalar_select 0, %s6, %s4
  $region1: #{_lambda_.4} parent=0
    #allocation3 [shape = 'u8[24576]{0}', space=vmem, size = 0x6000, scoped, tag = 'input window, operand 0']
    #allocation4 [shape = 'u8[196608]{0}', space=vmem, size = 0x30000, scoped, tag = 'input window, operand 1']
    #allocation5 [shape = 's32[2]{0}', space=sflag, size = 0x8, scoped, tag = 'scoped memory for _lambda_.4']
    #allocation6 [shape = 'u8[512]{0}', space=vmem, size = 0x400, scoped, tag = 'input window, operand 2, single buffered']
    #allocation7 [shape = 's32[1]{0}', space=sflag, size = 0x4, scoped, tag = 'scoped memory for _lambda_.4']
    %8 = vsyncpa [#allocation5], 0
    %s9 = scalar_lea.sflag [#allocation5], 1
    %10 = vsyncpa %s9, 0
    %11 = vsyncpa [#allocation7], 0
    loop: start=0, step=1, limit=4
    $region2: #{_lambda_.4} parent=1 // loop_pre_header
      _
    $region3: #{_lambda_.4} parent=1 // loop_header
      %s13 = sphi 0, %s17
      %p14 = scmp.ge.s32.totalorder %s13, 4
      %s20 = sphi 0, %s39
      %s21 = sphi 0, %s35
      %s22 = sphi 0, %s31
      %s23 = sphi 0, %s20
      %s24 = sphi 0, %s21
      %s25 = sphi 0, %s22
      %s26 = sphi 0, %s23
      %s27 = sphi 0, %s24
      %s28 = sphi 0, %s25
      %s44 = sphi 0, %s46
      %s47 = sphi 0, %s44
      %s48 = sphi 0, %s47
      %s64 = sphi 0, %s48
      %s72 = sphi 0, %s74
      %s75 = sphi 0, %s72
      %s76 = sphi 0, %s75
      %s92 = sphi 0, %s76
      %s98 = sphi 0, %s100
      %s101 = sphi 0, %s98
      %s102 = sphi 0, %s101
      %s118 = sphi 0, %s102
      %s126 = sphi 0, %s128
      %s129 = sphi 0, %s126
      %s130 = sphi 0, %s129
      %s146 = sphi 0, %s130
    $region4: #{_lambda_.4} parent=1 // loop_header_branch
      %16 = sbr.rel (%p14) target = $region8
    $region5: #{_lambda_.4} parent=1 // loop_body
      %s18 = ssub.s32 %s13, 1
      %s19 = ssub.s32 %s13, 2
      %s29 = sadd.s32 1, %s22
      %p30 = scmp.ge.s32.totalorder %s29, 2
      %s31 = scalar_select %p30, 0, %s29
      %s32 = sadd.s32 1, %s21
      %s33 = scalar_select %p30, %s32, %s21
      %p34 = scmp.ge.s32.totalorder %s33, 1
      %s35 = scalar_select %p34, 0, %s33
      %s36 = sadd.s32 1, %s20
      %s37 = scalar_select %p34, %s36, %s20
      %p38 = scmp.ge.s32.totalorder %s37, 1
      %s39 = scalar_select %p38, 0, %s37
      %s40 = ssub.s32 %s20, %s39
      %s41 = ssub.s32 %s22, %s31
      %s42 = sor.u32 %s40, %s41
      %p43 = scmp.eq.s32.totalorder %s42, 0
      %s45 = sadd.s32 %s44, 1
      %s46 = scalar_select %p43, %s44, %s45
      %p49 = pneg %p43
      %p50 = scmp.eq.s32.totalorder %s13, 1
      %p51 = por %p49, %p50
      %p52 = scmp.ne.s32.totalorder %s44, %s47
      %p53 = scmp.eq.s32.totalorder %s13, 0
      %p54 = por %p52, %p53
      %p55 = scmp.ne.s32.totalorder %s44, %s47
      %p56 = scmp.eq.s32.totalorder %s18, 1
      %p57 = por %p55, %p56
      %p58 = scmp.ne.s32.totalorder %s47, %s48
      %p59 = scmp.eq.s32.totalorder %s18, 0
      %p60 = por %p58, %p59
      %p61 = scmp.ne.s32.totalorder %s47, %s48
      %p62 = scmp.eq.s32.totalorder %s19, 1
      %p63 = por %p61, %p62
      %p65 = scmp.ne.s32.totalorder %s48, %s64
      %p66 = scmp.eq.s32.totalorder %s19, 0
      %p67 = por %p65, %p66
      %s68 = ssub.s32 %s22, %s31
      %s69 = ssub.s32 %s21, %s35
      %s70 = sor.u32 %s68, %s69
      %p71 = scmp.eq.s32.totalorder %s70, 0
      %s73 = sadd.s32 %s72, 1
      %s74 = scalar_select %p71, %s72, %s73
      %p77 = pneg %p71
      %p78 = scmp.eq.s32.totalorder %s13, 1
      %p79 = por %p77, %p78
      %p80 = scmp.ne.s32.totalorder %s72, %s75
      %p81 = scmp.eq.s32.totalorder %s13, 0
      %p82 = por %p80, %p81
      %p83 = scmp.ne.s32.totalorder %s72, %s75
      %p84 = scmp.eq.s32.totalorder %s18, 1
      %p85 = por %p83, %p84
      %p86 = scmp.ne.s32.totalorder %s75, %s76
      %p87 = scmp.eq.s32.totalorder %s18, 0
      %p88 = por %p86, %p87
      %p89 = scmp.ne.s32.totalorder %s75, %s76
      %p90 = scmp.eq.s32.totalorder %s19, 1
      %p91 = por %p89, %p90
      %p93 = scmp.ne.s32.totalorder %s76, %s92
      %p94 = scmp.eq.s32.totalorder %s19, 0
      %p95 = por %p93, %p94
      %s96 = ssub.s32 %s21, %s35
      %p97 = scmp.eq.s32.totalorder %s96, 0
      %s99 = sadd.s32 %s98, 1
      %s100 = scalar_select %p97, %s98, %s99
      %p103 = pneg %p97
      %p104 = scmp.eq.s32.totalorder %s13, 1
      %p105 = por %p103, %p104
      %p106 = scmp.ne.s32.totalorder %s98, %s101
      %p107 = scmp.eq.s32.totalorder %s13, 0
      %p108 = por %p106, %p107
      %p109 = scmp.ne.s32.totalorder %s98, %s101
      %p110 = scmp.eq.s32.totalorder %s18, 1
      %p111 = por %p109, %p110
      %p112 = scmp.ne.s32.totalorder %s101, %s102
      %p113 = scmp.eq.s32.totalorder %s18, 0
      %p114 = por %p112, %p113
      %p115 = scmp.ne.s32.totalorder %s101, %s102
      %p116 = scmp.eq.s32.totalorder %s19, 1
      %p117 = por %p115, %p116
      %p119 = scmp.ne.s32.totalorder %s102, %s118
      %p120 = scmp.eq.s32.totalorder %s19, 0
      %p121 = por %p119, %p120
      %s122 = ssub.s32 %s20, %s39
      %s123 = ssub.s32 %s21, %s35
      %s124 = sor.u32 %s122, %s123
      %p125 = scmp.eq.s32.totalorder %s124, 0
      %s127 = sadd.s32 %s126, 1
      %s128 = scalar_select %p125, %s126, %s127
      %p131 = pneg %p125
      %p132 = scmp.eq.s32.totalorder %s13, 1
      %p133 = por %p131, %p132
      %p134 = scmp.ne.s32.totalorder %s126, %s129
      %p135 = scmp.eq.s32.totalorder %s13, 0
      %p136 = por %p134, %p135
      %p137 = scmp.ne.s32.totalorder %s126, %s129
      %p138 = scmp.eq.s32.totalorder %s18, 1
      %p139 = por %p137, %p138
      %p140 = scmp.ne.s32.totalorder %s129, %s130
      %p141 = scmp.eq.s32.totalorder %s18, 0
      %p142 = por %p140, %p141
      %p143 = scmp.ne.s32.totalorder %s129, %s130
      %p144 = scmp.eq.s32.totalorder %s19, 1
      %p145 = por %p143, %p144
      %p147 = scmp.ne.s32.totalorder %s130, %s146
      %p148 = scmp.eq.s32.totalorder %s19, 0
      %p149 = por %p147, %p148
      %p150 = scmp.le.s32.totalorder 1, %s13
      %p151 = scmp.lt.s32.totalorder %s13, 3
      %p152 = pnand %p150, %p151
      %p153 = pneg %p152
      // Predicated region
      $region9: #{_lambda_.4} parent=5 // pred_check
        _
      $region10: #{_lambda_.4} parent=5 // pred_check_branch
        %155 = sbr.rel (%p152) target = $region12
      $region11: #{_lambda_.4} parent=5 // pred_region
        %s156 = ssub.s32 %s13, 1
        // Predicated region
        $region13: #{_lambda_.4} parent=11 // pred_check
          %p157 = pneg %p114
        $region14: #{_lambda_.4} parent=11 // pred_check_branch
          %159 = sbr.rel (%p157) target = $region16
        $region15: #{_lambda_.4} parent=11 // pred_region
          %s161 = ssub.s32 16, 16
          %162 = vsyncadd [#allocation7], %s161
          %s163 = smul.addr %s24, 16
          %s164 = scalar_lea.hbm %s2, %s163
          %s166 = sshll.u32 [#allocation6], 4
          %s167 = int_to_ptr.vmem [resolvable:$true] %s166
          %169 = dma.hbm_to_vmem [thread:$0]  %s164, 16, %s167, [#allocation7]
        $region16: #{_lambda_.4} parent=11 // pred_fallthru
          _
      $region12: #{_lambda_.4} parent=5 // pred_fallthru
        _
      %p170 = scmp.lt.s32.totalorder %s13, 2
      // Predicated region
      $region17: #{_lambda_.4} parent=5 // pred_check
        %p171 = pneg %p170
      $region18: #{_lambda_.4} parent=5 // pred_check_branch
        %173 = sbr.rel (%p171) target = $region20
      $region19: #{_lambda_.4} parent=5 // pred_region
        // Predicated region
        $region21: #{_lambda_.4} parent=19 // pred_check
          %p174 = pneg %p54
        $region22: #{_lambda_.4} parent=19 // pred_check_branch
          %176 = sbr.rel (%p174) target = $region24
        $region23: #{_lambda_.4} parent=19 // pred_region
          %s177 = sand.u32 %s44, 1
          %s178 = sand.u32 %s44, 1
          %s179 = smul.addr %s178, 24
          %s180 = scalar_lea.vmem [#allocation3], %s179
          %s181 = smul.u32 2, %s20
          %s182 = smul.u32 3, %s22
          %s183 = smul.addr %s181, 6
          %s184 = sadd.s32 %s182, %s183
          %s185 = smul.addr %s184, 4
          %s186 = scalar_lea.vmem %s0, %s185
          // Predicated region
          $region25: #{_lambda_.4} parent=23 // pred_check
            _
          $region26: #{_lambda_.4} parent=23 // pred_check_branch
            %188 = sbr.rel (0) target = $region28
          $region27: #{_lambda_.4} parent=23 // pred_region
            // Predicated region
            $region29: #{_lambda_.4} parent=27 // pred_check
              _
            $region30: #{_lambda_.4} parent=27 // pred_check_branch
              %190 = sbr.rel (0) target = $region32
            $region31: #{_lambda_.4} parent=27 // pred_region
              %s191 = scalar_lea.vmem %s186, 8
              %s192 = scalar_lea.vmem %s180, 8 [#allocation3]
              loop: start=0, step=1, limit=1
              $region33: #{_lambda_.4} parent=31 // loop_pre_header
                _
              $region34: #{_lambda_.4} parent=31 // loop_header
                %s194 = sphi 0, %s198
                %p195 = scmp.ge.s32.totalorder %s194, 1
                %s199 = sphi %s186, %s186
                %s200 = sphi %s180, %s180
              $region35: #{_lambda_.4} parent=31 // loop_header_branch
                %197 = sbr.rel (%p195) target = $region39
              $region36: #{_lambda_.4} parent=31 // loop_body
                %v201 = vld [vmem:[%s199] sm:$0xff]
                %202 = vst [vmem:[%s200] sm:$0xff] %v201
                %v203 = vld [vmem:[%s199 + $0x18] sm:$0xff]
                %204 = vst [vmem:[%s200 + $0xc] sm:$0xff] %v203
              $region37: #{_lambda_.4} parent=31 // loop_footer
                %s198 = sadd.s32 1, %s194
              $region38: #{_lambda_.4} parent=31 // loop_footer_branch
                %193 = sbr.rel target = $region34
              $region39: #{_lambda_.4} parent=31 // loop_exit
                _
              %s206 = ssub.s32 16, 1
              loop: start=0, step=1, limit=1
              $region40: #{_lambda_.4} parent=31 // loop_pre_header
                _
              $region41: #{_lambda_.4} parent=31 // loop_header
                %s208 = sphi 0, %s212
                %p209 = scmp.ge.s32.totalorder %s208, 1
                %s213 = sphi %s191, %s191
                %s214 = sphi %s192, %s192
              $region42: #{_lambda_.4} parent=31 // loop_header_branch
                %211 = sbr.rel (%p209) target = $region46
              $region43: #{_lambda_.4} parent=31 // loop_body
                %v215 = vld [vmem:[%s213] sm:%s206]
                %216 = vst [vmem:[%s214] sm:%s206] %v215
                %v217 = vld [vmem:[%s213 + $0x18] sm:%s206]
                %218 = vst [vmem:[%s214 + $0xc] sm:%s206] %v217
              $region44: #{_lambda_.4} parent=31 // loop_footer
                %s212 = sadd.s32 1, %s208
              $region45: #{_lambda_.4} parent=31 // loop_footer_branch
                %207 = sbr.rel target = $region41
              $region46: #{_lambda_.4} parent=31 // loop_exit
                _
            $region32: #{_lambda_.4} parent=27 // pred_fallthru
              _
          $region28: #{_lambda_.4} parent=23 // pred_fallthru
            _
          %219 = vnop
        $region24: #{_lambda_.4} parent=19 // pred_fallthru
          _
        // Predicated region
        $region47: #{_lambda_.4} parent=19 // pred_check
          %p220 = pneg %p82
        $region48: #{_lambda_.4} parent=19 // pred_check_branch
          %222 = sbr.rel (%p220) target = $region50
        $region49: #{_lambda_.4} parent=19 // pred_region
          %s223 = sand.u32 %s72, 1
          %s224 = scalar_lea.sflag [#allocation5], %s223
          %s225 = sand.u32 %s72, 1
          %s226 = smul.addr %s225, 192
          %s227 = scalar_lea.vmem [#allocation4], %s226
          %s228 = smul.u32 48, %s22
          %s230 = ssub.s32 3072, 3072
          %231 = vsyncadd %s224, %s230
          %s232 = sadd.s32 %s21, %s228
          %s233 = smul.addr %s232, 64
          %s234 = scalar_lea.hbm %s1, %s233
          %s235 = sshll.u32 %s227, 4
          %s236 = int_to_ptr.vmem [resolvable:$true] %s235
          %241 = dma.hbm_to_vmem [thread:$0]  %s234, 3072, %s236, %s224, 64, 64, 4
        $region50: #{_lambda_.4} parent=19 // pred_fallthru
          _
      $region20: #{_lambda_.4} parent=5 // pred_fallthru
        _
      %p242 = scmp.le.s32.totalorder 1, %s13
      %p243 = scmp.lt.s32.totalorder %s13, 3
      %p244 = pnand %p242, %p243
      %p245 = pneg %p244
      // Predicated region
      $region51: #{_lambda_.4} parent=5 // pred_check
        _
      $region52: #{_lambda_.4} parent=5 // pred_check_branch
        %247 = sbr.rel (%p244) target = $region54
      $region53: #{_lambda_.4} parent=5 // pred_region
        %s248 = ssub.s32 %s13, 1
        %s249 = sand.u32 %s47, 1
        %s250 = sand.u32 %s47, 1
        %s251 = smul.addr %s250, 24
        %s252 = scalar_lea.vmem [#allocation3], %s251
        // Predicated region
        $region55: #{_lambda_.4} parent=53 // pred_check
          %p253 = pneg %p60
        $region56: #{_lambda_.4} parent=53 // pred_check_branch
          %255 = sbr.rel (%p253) target = $region58
        $region57: #{_lambda_.4} parent=53 // pred_region
          _
        $region58: #{_lambda_.4} parent=53 // pred_fallthru
          _
        %s256 = sand.u32 %s75, 1
        %s257 = scalar_lea.sflag [#allocation5], %s256
        %s258 = sand.u32 %s75, 1
        %s259 = smul.addr %s258, 192
        %s260 = scalar_lea.vmem [#allocation4], %s259
        // Predicated region
        $region59: #{_lambda_.4} parent=53 // pred_check
          %p261 = pneg %p88
        $region60: #{_lambda_.4} parent=53 // pred_check_branch
          %263 = sbr.rel (%p261) target = $region62
        $region61: #{_lambda_.4} parent=53 // pred_region
          %264 = dma.done %s257, 3072
        $region62: #{_lambda_.4} parent=53 // pred_fallthru
          _
        // Predicated region
        $region63: #{_lambda_.4} parent=53 // pred_check
          %p265 = pneg %p114
        $region64: #{_lambda_.4} parent=53 // pred_check_branch
          %267 = sbr.rel (%p265) target = $region66
        $region65: #{_lambda_.4} parent=53 // pred_region
          %268 = dma.done [#allocation7], 16
        $region66: #{_lambda_.4} parent=53 // pred_fallthru
          _
        %s269 = sand.u32 %s47, 1
        %s270 = sand.u32 %s47, 1
        %s271 = smul.addr %s270, 24
        %s272 = scalar_lea.vmem [#allocation3], %s271
        %p273 = pneg %p60
        %p274 = pneg %p57
        %s275 = sand.u32 %s75, 1
        %s276 = scalar_lea.sflag [#allocation5], %s275
        %s277 = sand.u32 %s75, 1
        %s278 = smul.addr %s277, 192
        %s279 = scalar_lea.vmem [#allocation4], %s278
        %p280 = pneg %p88
        %p281 = pneg %p85
        %p282 = pneg %p114
        %p283 = pneg %p111
        %p284 = pneg %p142
        %p285 = pneg %p139
        %s286 = smul.u32 2, %s23
        %p287 = scmp.lt.s32.totalorder %s286, 1
        %s288 = scalar_select %p287, %s286, 1
        %p289 = scmp.lt.s32.totalorder %s24, 0
        %s290 = scalar_select %p289, %s24, 0
        %s291 = sadd.s32 %s290, %s288
        %s292 = smul.addr %s291, 4
        %s293 = scalar_lea.vmem %s3, %s292
        %s294 = smul.u32 2, %s23
        %s295 = smul.u32 3, %s25
        %s296 = smul.u32 48, %s25
        %s297 = smul.u32 2, %s23
        %p298 = scmp.lt.s32.totalorder %s297, 1
        %s299 = scalar_select %p298, %s297, 1
        %p300 = scmp.lt.s32.totalorder %s24, 0
        %s301 = scalar_select %p300, %s24, 0
        %s302 = sadd.s32 %s301, %s299
        %s303 = smul.addr %s302, 4
        %s304 = scalar_lea.vmem %s3, %s303
        %s305 = smul.u32 2, %s23
        %p307 = scmp.eq.s32.totalorder %s25, 0
        // Predicated region
        $region67: #{_lambda_.4} parent=53 // pred_check
          %p308 = pneg %p307
        $region68: #{_lambda_.4} parent=53 // pred_check_branch
          %310 = sbr.rel (%p308) target = $region70
        $region69: #{_lambda_.4} parent=53 // pred_region
          %311 = vst [vmem:[#allocation2] sm:$0xff] 0.0
          %312 = vst [vmem:[#allocation2 + $0x8] sm:$0xff] 0.0
        $region70: #{_lambda_.4} parent=53 // pred_fallthru
          _
        %v313 = vld [vmem:[#allocation2] sm:$0xff]
        %v314 = vld [vmem:[#allocation2 + $0x8] sm:$0xff]
        %v315 = vld [vmem:[%s252] sm:$0xff]
        %v316 = vld [vmem:[%s252 + $0x8] sm:$0xf]
        %v317 = vld [vmem:[%s252 + $0xc] sm:$0xff]
        %v318 = vld [vmem:[%s252 + $0x14] sm:$0xf]
        %v319 = vld [vmem:[%s260] sm:$0xf]
        %v320 = vld [vmem:[%s260 + $0x4] sm:$0xf]
        %v321 = vld [vmem:[%s260 + $0x8] sm:$0xf]
        %v322 = vld [vmem:[%s260 + $0xc] sm:$0xf]
        %v323 = vld [vmem:[%s260 + $0x10] sm:$0xf]
        %v324 = vld [vmem:[%s260 + $0x14] sm:$0xf]
        %v325 = vld [vmem:[%s260 + $0x18] sm:$0xf]
        %v326 = vld [vmem:[%s260 + $0x1c] sm:$0xf]
        %v327 = vld [vmem:[%s260 + $0x20] sm:$0xf]
        %v328 = vld [vmem:[%s260 + $0x24] sm:$0xf]
        %v329 = vld [vmem:[%s260 + $0x28] sm:$0xf]
        %v330 = vld [vmem:[%s260 + $0x2c] sm:$0xf]
        %v331 = vld [vmem:[%s260 + $0x30] sm:$0xf]
        %v332 = vld [vmem:[%s260 + $0x34] sm:$0xf]
        %v333 = vld [vmem:[%s260 + $0x38] sm:$0xf]
        %v334 = vld [vmem:[%s260 + $0x3c] sm:$0xf]
        %v335 = vld [vmem:[%s260 + $0x40] sm:$0xf]
        %v336 = vld [vmem:[%s260 + $0x44] sm:$0xf]
        %v337 = vld [vmem:[%s260 + $0x48] sm:$0xf]
        %v338 = vld [vmem:[%s260 + $0x4c] sm:$0xf]
        %v339 = vld [vmem:[%s260 + $0x50] sm:$0xf]
        %v340 = vld [vmem:[%s260 + $0x54] sm:$0xf]
        %v341 = vld [vmem:[%s260 + $0x58] sm:$0xf]
        %v342 = vld [vmem:[%s260 + $0x5c] sm:$0xf]
        %v343 = vld [vmem:[%s260 + $0x60] sm:$0xf]
        %v344 = vld [vmem:[%s260 + $0x64] sm:$0xf]
        %v345 = vld [vmem:[%s260 + $0x68] sm:$0xf]
        %v346 = vld [vmem:[%s260 + $0x6c] sm:$0xf]
        %v347 = vld [vmem:[%s260 + $0x70] sm:$0xf]
        %v348 = vld [vmem:[%s260 + $0x74] sm:$0xf]
        %v349 = vld [vmem:[%s260 + $0x78] sm:$0xf]
        %v350 = vld [vmem:[%s260 + $0x7c] sm:$0xf]
        %v351 = vld [vmem:[%s260 + $0x80] sm:$0xf]
        %v352 = vld [vmem:[%s260 + $0x84] sm:$0xf]
        %v353 = vld [vmem:[%s260 + $0x88] sm:$0xf]
        %v354 = vld [vmem:[%s260 + $0x8c] sm:$0xf]
        %v355 = vld [vmem:[%s260 + $0x90] sm:$0xf]
        %v356 = vld [vmem:[%s260 + $0x94] sm:$0xf]
        %v357 = vld [vmem:[%s260 + $0x98] sm:$0xf]
        %v358 = vld [vmem:[%s260 + $0x9c] sm:$0xf]
        %v359 = vld [vmem:[%s260 + $0xa0] sm:$0xf]
        %v360 = vld [vmem:[%s260 + $0xa4] sm:$0xf]
        %v361 = vld [vmem:[%s260 + $0xa8] sm:$0xf]
        %v362 = vld [vmem:[%s260 + $0xac] sm:$0xf]
        %v363 = vld [vmem:[%s260 + $0xb0] sm:$0xf]
        %v364 = vld [vmem:[%s260 + $0xb4] sm:$0xf]
        %v365 = vld [vmem:[%s260 + $0xb8] sm:$0xf]
        %v366 = vld [vmem:[%s260 + $0xbc] sm:$0xf]
        %v371 = vunpack.c.l.b16 %v315
        %v372 = vunpack.c.h.b16 %v315
        %v373 = vunpack.c.l.b16 %v316
        %v374 = vunpack.c.l.b16 %v317
        %v375 = vunpack.c.h.b16 %v317
        %v376 = vunpack.c.l.b16 %v318
        %v377 = vpack.c.b16 %v374, %v371
        %v378 = vpack.c.b16 %v375, %v372
        %v379 = vpack.c.b16 %v376, %v373
        %v431 = vunpack.c.l.b16 %v319
        %v432 = vunpack.c.l.b16 %v320
        %v433 = vunpack.c.l.b16 %v321
        %v434 = vunpack.c.l.b16 %v322
        %v435 = vunpack.c.l.b16 %v323
        %v436 = vunpack.c.l.b16 %v324
        %v437 = vunpack.c.l.b16 %v325
        %v438 = vunpack.c.l.b16 %v326
        %v439 = vunpack.c.l.b16 %v327
        %v440 = vunpack.c.l.b16 %v328
        %v441 = vunpack.c.l.b16 %v329
        %v442 = vunpack.c.l.b16 %v330
        %v443 = vunpack.c.l.b16 %v331
        %v444 = vunpack.c.l.b16 %v332
        %v445 = vunpack.c.l.b16 %v333
        %v446 = vunpack.c.l.b16 %v334
        %v447 = vunpack.c.l.b16 %v335
        %v448 = vunpack.c.l.b16 %v336
        %v449 = vunpack.c.l.b16 %v337
        %v450 = vunpack.c.l.b16 %v338
        %v451 = vunpack.c.l.b16 %v339
        %v452 = vunpack.c.l.b16 %v340
        %v453 = vunpack.c.l.b16 %v341
        %v454 = vunpack.c.l.b16 %v342
        %v455 = vunpack.c.l.b16 %v343
        %v456 = vunpack.c.l.b16 %v344
        %v457 = vunpack.c.l.b16 %v345
        %v458 = vunpack.c.l.b16 %v346
        %v459 = vunpack.c.l.b16 %v347
        %v460 = vunpack.c.l.b16 %v348
        %v461 = vunpack.c.l.b16 %v349
        %v462 = vunpack.c.l.b16 %v350
        %v463 = vunpack.c.l.b16 %v351
        %v464 = vunpack.c.l.b16 %v352
        %v465 = vunpack.c.l.b16 %v353
        %v466 = vunpack.c.l.b16 %v354
        %v467 = vunpack.c.l.b16 %v355
        %v468 = vunpack.c.l.b16 %v356
        %v469 = vunpack.c.l.b16 %v357
        %v470 = vunpack.c.l.b16 %v358
        %v471 = vunpack.c.l.b16 %v359
        %v472 = vunpack.c.l.b16 %v360
        %v473 = vunpack.c.l.b16 %v361
        %v474 = vunpack.c.l.b16 %v362
        %v475 = vunpack.c.l.b16 %v363
        %v476 = vunpack.c.l.b16 %v364
        %v477 = vunpack.c.l.b16 %v365
        %v478 = vunpack.c.l.b16 %v366
        %v479 = vpack.c.b16 %v432, %v431
        %v480 = vpack.c.b16 %v434, %v433
        %v481 = vpack.c.b16 %v436, %v435
        %v482 = vpack.c.b16 %v438, %v437
        %v483 = vpack.c.b16 %v440, %v439
        %v484 = vpack.c.b16 %v442, %v441
        %v485 = vpack.c.b16 %v444, %v443
        %v486 = vpack.c.b16 %v446, %v445
        %v487 = vpack.c.b16 %v448, %v447
        %v488 = vpack.c.b16 %v450, %v449
        %v489 = vpack.c.b16 %v452, %v451
        %v490 = vpack.c.b16 %v454, %v453
        %v491 = vpack.c.b16 %v456, %v455
        %v492 = vpack.c.b16 %v458, %v457
        %v493 = vpack.c.b16 %v460, %v459
        %v494 = vpack.c.b16 %v462, %v461
        %v495 = vpack.c.b16 %v464, %v463
        %v496 = vpack.c.b16 %v466, %v465
        %v497 = vpack.c.b16 %v468, %v467
        %v498 = vpack.c.b16 %v470, %v469
        %v499 = vpack.c.b16 %v472, %v471
        %v500 = vpack.c.b16 %v474, %v473
        %v501 = vpack.c.b16 %v476, %v475
        %v502 = vpack.c.b16 %v478, %v477
        %527 = vmatprep.subr.bf16.mxu0 0
        %528 = vmatpush1.bf16.msra.mxu0 %v486
        %529 = vmatprep.subr.bf16.mxu0 0
        %530 = vmatpush1.bf16.msra.mxu0 %v485
        %531 = vmatprep.subr.bf16.mxu0 0
        %532 = vmatpush1.bf16.msra.mxu0 %v484
        %533 = vmatprep.subr.bf16.mxu0 0
        %534 = vmatpush1.bf16.msra.mxu0 %v483
        %535 = vmatprep.subr.bf16.mxu0 0
        %536 = vmatpush1.bf16.msra.mxu0 %v482
        %537 = vmatprep.subr.bf16.mxu0 0
        %538 = vmatpush1.bf16.msra.mxu0 %v481
        %539 = vmatprep.subr.bf16.mxu0 0
        %540 = vmatpush1.bf16.msra.mxu0 %v480
        %541 = vmatprep.subr.bf16.mxu0 0
        %542 = vmatpush1.bf16.msra.mxu0 %v479
        %543 = vmatprep.subr.bf16.mxu0 0
        %544 = vmatpush2.bf16.msra.mxu0 %v494
        %545 = vmatprep.subr.bf16.mxu0 0
        %546 = vmatpush2.bf16.msra.mxu0 %v493
        %547 = vmatprep.subr.bf16.mxu0 0
        %548 = vmatpush2.bf16.msra.mxu0 %v492
        %549 = vmatprep.subr.bf16.mxu0 0
        %550 = vmatpush2.bf16.msra.mxu0 %v491
        %551 = vmatprep.subr.bf16.mxu0 0
        %552 = vmatpush2.bf16.msra.mxu0 %v490
        %553 = vmatprep.subr.bf16.mxu0 0
        %554 = vmatpush2.bf16.msra.mxu0 %v489
        %555 = vmatprep.subr.bf16.mxu0 0
        %556 = vmatpush2.bf16.msra.mxu0 %v488
        %557 = vmatprep.subr.bf16.mxu0 0
        %558 = vmatpush2.bf16.msra.mxu0 %v487
        %559 = vmatprep.mubr.bf16.mxu0 %v378
        %560 = vmatmul.mubr.bf16.gmra.mxu0 %v377
        %v561 = vpop.f32.mrf.mxu0
        %v562 = vadd.f32 0.0, %v561
        %v563 = vpop.f32.mrf.mxu0
        %v564 = vpop.f32.mrf.mxu0
        %v565 = vadd.f32 0.0, %v564
        %v566 = vpop.f32.mrf.mxu0
        %567 = vdwg.mxu0
        %568 = vmatprep.subr.bf16.mxu0 0
        %569 = vmatpush1.bf16.msra.mxu0 %v502
        %570 = vmatprep.subr.bf16.mxu0 0
        %571 = vmatpush1.bf16.msra.mxu0 %v501
        %572 = vmatprep.subr.bf16.mxu0 0
        %573 = vmatpush1.bf16.msra.mxu0 %v500
        %574 = vmatprep.subr.bf16.mxu0 0
        %575 = vmatpush1.bf16.msra.mxu0 %v499
        %576 = vmatprep.subr.bf16.mxu0 0
        %577 = vmatpush1.bf16.msra.mxu0 %v498
        %578 = vmatprep.subr.bf16.mxu0 0
        %579 = vmatpush1.bf16.msra.mxu0 %v497
        %580 = vmatprep.subr.bf16.mxu0 0
        %581 = vmatpush1.bf16.msra.mxu0 %v496
        %582 = vmatprep.subr.bf16.mxu0 0
        %583 = vmatpush1.bf16.msra.mxu0 %v495
        %584 = vmatprep.subr.bf16.mxu0 0
        %585 = vmatpush2.bf16.msra.mxu0 0
        %586 = vmatprep.subr.bf16.mxu0 0
        %587 = vmatpush2.bf16.msra.mxu0 0
        %588 = vmatprep.subr.bf16.mxu0 0
        %589 = vmatpush2.bf16.msra.mxu0 0
        %590 = vmatprep.subr.bf16.mxu0 0
        %591 = vmatpush2.bf16.msra.mxu0 0
        %592 = vmatprep.subr.bf16.mxu0 0
        %593 = vmatpush2.bf16.msra.mxu0 0
        %594 = vmatprep.subr.bf16.mxu0 0
        %595 = vmatpush2.bf16.msra.mxu0 0
        %596 = vmatprep.subr.bf16.mxu0 0
        %597 = vmatpush2.bf16.msra.mxu0 0
        %598 = vmatprep.subr.bf16.mxu0 0
        %599 = vmatpush2.bf16.msra.mxu0 0
        %600 = vmatprep.mubr.bf16.mxu0 0
        %601 = vmatmul.mubr.bf16.gmra.mxu0 %v379
        %v602 = vpop.f32.mrf.mxu0
        %v603 = vadd.f32 %v562, %v602
        %v604 = vpop.f32.mrf.mxu0
        %v605 = vpop.f32.mrf.mxu0
        %v606 = vadd.f32 %v565, %v605
        %v607 = vpop.f32.mrf.mxu0
        %608 = vdwg.mxu0
        %v609 = vadd.f32 %v313, %v603
        %v610 = vadd.f32 %v314, %v606
        %611 = vst [vmem:[#allocation2] sm:$0xff] %v609
        %612 = vst [vmem:[#allocation2 + $0x8] sm:$0xff] %v610
        %p613 = scmp.eq.s32.totalorder %s25, 1
        // Predicated region
        $region71: #{_lambda_.4} parent=53 // pred_check
          %p614 = pneg %p613
        $region72: #{_lambda_.4} parent=53 // pred_check_branch
          %616 = sbr.rel (%p614) target = $region74
        $region73: #{_lambda_.4} parent=53 // pred_region
          %v617 = vld [vmem:[#allocation2] sm:$0xff]
          %v618 = vld [vmem:[#allocation2 + $0x8] sm:$0xff]
          %v619 = vld [vmem:[#allocation6] sm:$0x1]
          %v621 = vlaneseq
          %v622 = vshrl.u32 %v621, 7
          %v623 = vsub.s32 0, %v622
          %v624 = vrot.slane %v619, %v623
          %v626 = vadd.f32 %v617, %v624
          %v627 = vadd.f32 %v618, %v624
          %v628 = vmax.f32 %v626, 0.0
          %v629 = vmax.f32 %v627, 0.0
          %v630 = vpack.c.bf16 %v629, %v628
          %v632 = vunpack.c.l.b16 %v630
          %v633 = vunpack.c.h.b16 %v630
          %v634 = vpack.c.b16 %v632, %v632
          %v635 = vpack.c.b16 %v633, %v633
          %638 = vst [vmem:[%s304] sm:$0xf] %v634
          %639 = vst [vmem:[%s304 + $0x4] sm:$0xf] %v635
        $region74: #{_lambda_.4} parent=53 // pred_fallthru
          _
        %s640 = smul.u32 2, %s23
        %p641 = scmp.lt.s32.totalorder %s640, 1
        %s642 = scalar_select %p641, %s640, 1
        %p643 = scmp.lt.s32.totalorder %s24, 0
        %s644 = scalar_select %p643, %s24, 0
        %s645 = sadd.s32 %s644, %s642
        %s646 = smul.addr %s645, 4
        %s647 = scalar_lea.vmem %s3, %s646
        // Predicated region
        $region75: #{_lambda_.4} parent=53 // pred_check
          %p648 = pneg %p139
        $region76: #{_lambda_.4} parent=53 // pred_check_branch
          %650 = sbr.rel (%p648) target = $region78
        $region77: #{_lambda_.4} parent=53 // pred_region
          %s651 = smul.u32 2, %s23
        $region78: #{_lambda_.4} parent=53 // pred_fallthru
          _
        // Predicated region
        $region79: #{_lambda_.4} parent=53 // pred_check
          %p652 = pneg %p139
        $region80: #{_lambda_.4} parent=53 // pred_check_branch
          %654 = sbr.rel (%p652) target = $region82
        $region81: #{_lambda_.4} parent=53 // pred_region
          %s655 = smul.u32 2, %s23
          %p656 = scmp.lt.s32.totalorder %s655, 1
          %s657 = scalar_select %p656, %s655, 1
          %p658 = scmp.lt.s32.totalorder %s24, 0
          %s659 = scalar_select %p658, %s24, 0
          %s660 = sadd.s32 %s659, %s657
          %s661 = smul.addr %s660, 4
          %s662 = scalar_lea.vmem %s3, %s661
        $region82: #{_lambda_.4} parent=53 // pred_fallthru
          _
      $region54: #{_lambda_.4} parent=5 // pred_fallthru
        _
      %p663 = scmp.le.s32.totalorder 2, %s13
      // Predicated region
      $region83: #{_lambda_.4} parent=5 // pred_check
        %p664 = pneg %p663
      $region84: #{_lambda_.4} parent=5 // pred_check_branch
        %666 = sbr.rel (%p664) target = $region86
      $region85: #{_lambda_.4} parent=5 // pred_region
        %s667 = ssub.s32 %s13, 2
      $region86: #{_lambda_.4} parent=5 // pred_fallthru
        _
    $region6: #{_lambda_.4} parent=1 // loop_footer
      %s17 = sadd.s32 1, %s13
    $region7: #{_lambda_.4} parent=1 // loop_footer_branch
      %12 = sbr.rel target = $region3
    $region8: #{_lambda_.4} parent=1 // loop_exit
      _
    %668 = vsyncpa [#allocation5], 1
    %s669 = scalar_lea.sflag [#allocation5], 1
    %670 = vsyncpa %s669, 1
    %671 = vsyncpa [#allocation7], 1

// kernel: _lambda_.6
$region0: #{_lambda_.6}
  #allocation0 [shape = 'u32[]', space=smem, size = 0x4, offset = 0x4, fixed_abs, tag = 'smem constant byte address 0x4 - core index']
  #allocation1 [shape = 'u32[144,128]{1,0:T(1,128)}', space=vmem, size = 0x12000, scoped, tag = 'internal scratch']
  %s0 = inlined_call_operand.vmem [shape: f32[32,768], index: 0, kind: input, shape index: {}]
  %s1 = inlined_call_operand.vmem [shape: f32[32,512], index: 1, kind: input, shape index: {}]
  %s2 = inlined_call_operand.vmem [shape: f32[32,512], index: 2, kind: output, shape index: {0}]
  %s3 = inlined_call_operand.vmem [shape: f32[32,128], index: 3, kind: output, shape index: {1}]
  %4 = xla_tuple %s2, %s3
  %s5 = sld [smem:[#allocation0]]
  $region26: #{_lambda_.6} parent=0
    _
  %s7 = ssub.s32 1, %s5
  %s8 = scalar_select 0, %s7, %s5
  // Predicated region
  $region2: #{_lambda_.6} parent=0 // pred_check
    _
  $region3: #{_lambda_.6} parent=0 // pred_check_branch
    %10 = sbr.rel (0) target = $region5
  $region4: #{_lambda_.6} parent=0 // pred_region
    _
  $region5: #{_lambda_.6} parent=0 // pred_fallthru
    _
  // Predicated region
  $region6: #{_lambda_.6} parent=0 // pred_check
    _
  $region7: #{_lambda_.6} parent=0 // pred_check_branch
    %12 = sbr.rel (0) target = $region9
  $region8: #{_lambda_.6} parent=0 // pred_region
    _
  $region9: #{_lambda_.6} parent=0 // pred_fallthru
    _
  %v13 = vld [vmem:[%s1] sm:$0xff]
  %v14 = vld [vmem:[%s1 + $0x8] sm:$0xff]
  %v15 = vld [vmem:[%s1 + $0x10] sm:$0xff]
  %v16 = vld [vmem:[%s1 + $0x18] sm:$0xff]
  %v17 = vld [vmem:[%s1 + $0x20] sm:$0xff]
  %v18 = vld [vmem:[%s1 + $0x28] sm:$0xff]
  %v19 = vld [vmem:[%s1 + $0x30] sm:$0xff]
  %v20 = vld [vmem:[%s1 + $0x38] sm:$0xff]
  %v21 = vld [vmem:[%s1 + $0x40] sm:$0xff]
  %v22 = vld [vmem:[%s1 + $0x48] sm:$0xff]
  %v23 = vld [vmem:[%s1 + $0x50] sm:$0xff]
  %v24 = vld [vmem:[%s1 + $0x58] sm:$0xff]
  %v25 = vld [vmem:[%s1 + $0x60] sm:$0xff]
  %v26 = vld [vmem:[%s1 + $0x68] sm:$0xff]
  %v27 = vld [vmem:[%s1 + $0x70] sm:$0xff]
  %v28 = vld [vmem:[%s1 + $0x78] sm:$0xff]
  %v29 = vld [vmem:[%s0] sm:$0xff]
  %v30 = vld [vmem:[%s0 + $0x8] sm:$0xff]
  %v31 = vld [vmem:[%s0 + $0x10] sm:$0xff]
  %v32 = vld [vmem:[%s0 + $0x18] sm:$0xff]
  %v33 = vld [vmem:[%s0 + $0x20] sm:$0xff]
  %v34 = vld [vmem:[%s0 + $0x28] sm:$0xff]
  %v35 = vld [vmem:[%s0 + $0x30] sm:$0xff]
  %v36 = vld [vmem:[%s0 + $0x38] sm:$0xff]
  %v37 = vld [vmem:[%s0 + $0x40] sm:$0xff]
  %v38 = vld [vmem:[%s0 + $0x48] sm:$0xff]
  %v39 = vld [vmem:[%s0 + $0x50] sm:$0xff]
  %v40 = vld [vmem:[%s0 + $0x58] sm:$0xff]
  %v41 = vld [vmem:[%s0 + $0x60] sm:$0xff]
  %v42 = vld [vmem:[%s0 + $0x68] sm:$0xff]
  %v43 = vld [vmem:[%s0 + $0x70] sm:$0xff]
  %v44 = vld [vmem:[%s0 + $0x78] sm:$0xff]
  %v45 = vld [vmem:[%s0 + $0x80] sm:$0xff]
  %v46 = vld [vmem:[%s0 + $0x88] sm:$0xff]
  %v47 = vld [vmem:[%s0 + $0x90] sm:$0xff]
  %v48 = vld [vmem:[%s0 + $0x98] sm:$0xff]
  %v49 = vld [vmem:[%s0 + $0xa0] sm:$0xff]
  %v50 = vld [vmem:[%s0 + $0xa8] sm:$0xff]
  %v51 = vld [vmem:[%s0 + $0xb0] sm:$0xff]
  %v52 = vld [vmem:[%s0 + $0xb8] sm:$0xff]
  %v53 = vmin.f32 %v31, 4.1351666
  %v54 = vmin.f32 %v37, 4.1351666
  %v55 = vmin.f32 %v43, 4.1351666
  %v56 = vmin.f32 %v49, 4.1351666
  %v57 = vmin.f32 %v32, 4.1351666
  %v58 = vmin.f32 %v38, 4.1351666
  %v59 = vmin.f32 %v44, 4.1351666
  %v60 = vmin.f32 %v50, 4.1351666
  %v61 = vsub.f32 %v15, %v13
  %v62 = vsub.f32 %v19, %v17
  %v63 = vsub.f32 %v23, %v21
  %v64 = vsub.f32 %v27, %v25
  %v65 = vsub.f32 %v16, %v14
  %v66 = vsub.f32 %v20, %v18
  %v67 = vsub.f32 %v24, %v22
  %v68 = vsub.f32 %v28, %v26
  %v69 = vmul.f32 %v61, 0.5
  %v70 = vmul.f32 %v62, 0.5
  %v71 = vmul.f32 %v63, 0.5
  %v72 = vmul.f32 %v64, 0.5
  %v73 = vadd.f32 %v13, %v69
  %v74 = vadd.f32 %v17, %v70
  %v75 = vadd.f32 %v21, %v71
  %v76 = vadd.f32 %v25, %v72
  %v77 = vmul.f32 %v65, 0.5
  %v78 = vmul.f32 %v66, 0.5
  %v79 = vmul.f32 %v67, 0.5
  %v80 = vmul.f32 %v68, 0.5
  %v81 = vadd.f32 %v14, %v77
  %v82 = vadd.f32 %v18, %v78
  %v83 = vadd.f32 %v22, %v79
  %v84 = vadd.f32 %v26, %v80
  %v85 = vmul.f32 %v29, %v61
  %v86 = vmul.f32 %v35, %v62
  %v87 = vmul.f32 %v41, %v63
  %v88 = vmul.f32 %v47, %v64
  %v89 = vadd.f32 %v85, %v73
  %v90 = vadd.f32 %v86, %v74
  %v91 = vadd.f32 %v87, %v75
  %v92 = vadd.f32 %v88, %v76
  %v93 = vmul.f32 %v30, %v65
  %v94 = vmul.f32 %v36, %v66
  %v95 = vmul.f32 %v42, %v67
  %v96 = vmul.f32 %v48, %v68
  %v97 = vadd.f32 %v93, %v81
  %v98 = vadd.f32 %v94, %v82
  %v99 = vadd.f32 %v95, %v83
  %v100 = vadd.f32 %v96, %v84
  %v101 = vmul.f32 %v53, 1.442695
  %v102 = vpow.pop %v101
  %v103 = vmul.f32 %v54, 1.442695
  %v104 = vpow.pop %v103
  %v105 = vmul.f32 %v55, 1.442695
  %v106 = vpow.pop %v105
  %v107 = vmul.f32 %v56, 1.442695
  %v108 = vpow.pop %v107
  %v109 = vmul.f32 %v102, %v61
  %v110 = vmul.f32 %v104, %v62
  %v111 = vmul.f32 %v106, %v63
  %v112 = vmul.f32 %v108, %v64
  %v113 = vmul.f32 %v57, 1.442695
  %v114 = vpow.pop %v113
  %v115 = vmul.f32 %v58, 1.442695
  %v116 = vpow.pop %v115
  %v117 = vmul.f32 %v59, 1.442695
  %v118 = vpow.pop %v117
  %v119 = vmul.f32 %v60, 1.442695
  %v120 = vpow.pop %v119
  %v121 = vmul.f32 %v114, %v65
  %v122 = vmul.f32 %v116, %v66
  %v123 = vmul.f32 %v118, %v67
  %v124 = vmul.f32 %v120, %v68
  %v125 = vmul.f32 %v109, 0.5
  %v126 = vmul.f32 %v110, 0.5
  %v127 = vmul.f32 %v111, 0.5
  %v128 = vmul.f32 %v112, 0.5
  %v129 = vsub.f32 %v89, %v125
  %v130 = vsub.f32 %v90, %v126
  %v131 = vsub.f32 %v91, %v127
  %v132 = vsub.f32 %v92, %v128
  %v133 = vmax.f32 %v129, 0.0
  %v134 = vmax.f32 %v130, 0.0
  %v135 = vmax.f32 %v131, 0.0
  %v136 = vmax.f32 %v132, 0.0
  %v137 = vmin.f32 %v133, 64.0
  %v138 = vmin.f32 %v134, 64.0
  %v139 = vmin.f32 %v135, 64.0
  %v140 = vmin.f32 %v136, 64.0
  %141 = vst [vmem:[%s2] sm:$0xff] %v137
  %142 = vst [vmem:[%s2 + $0x20] sm:$0xff] %v138
  %143 = vst [vmem:[%s2 + $0x40] sm:$0xff] %v139
  %144 = vst [vmem:[%s2 + $0x60] sm:$0xff] %v140
  %v145 = vmul.f32 %v121, 0.5
  %v146 = vmul.f32 %v122, 0.5
  %v147 = vmul.f32 %v123, 0.5
  %v148 = vmul.f32 %v124, 0.5
  %v149 = vsub.f32 %v97, %v145
  %v150 = vsub.f32 %v98, %v146
  %v151 = vsub.f32 %v99, %v147
  %v152 = vsub.f32 %v100, %v148
  %v153 = vmax.f32 %v149, 0.0
  %v154 = vmax.f32 %v150, 0.0
  %v155 = vmax.f32 %v151, 0.0
  %v156 = vmax.f32 %v152, 0.0
  %v157 = vmin.f32 %v153, 64.0
  %v158 = vmin.f32 %v154, 64.0
  %v159 = vmin.f32 %v155, 64.0
  %v160 = vmin.f32 %v156, 64.0
  %161 = vst [vmem:[%s2 + $0x8] sm:$0xff] %v157
  %162 = vst [vmem:[%s2 + $0x28] sm:$0xff] %v158
  %163 = vst [vmem:[%s2 + $0x48] sm:$0xff] %v159
  %164 = vst [vmem:[%s2 + $0x68] sm:$0xff] %v160
  %v165 = vadd.f32 %v89, %v125
  %v166 = vadd.f32 %v90, %v126
  %v167 = vadd.f32 %v91, %v127
  %v168 = vadd.f32 %v92, %v128
  %v169 = vmax.f32 %v165, 0.0
  %v170 = vmax.f32 %v166, 0.0
  %v171 = vmax.f32 %v167, 0.0
  %v172 = vmax.f32 %v168, 0.0
  %v173 = vmin.f32 %v169, 64.0
  %v174 = vmin.f32 %v170, 64.0
  %v175 = vmin.f32 %v171, 64.0
  %v176 = vmin.f32 %v172, 64.0
  %177 = vst [vmem:[%s2 + $0x10] sm:$0xff] %v173
  %178 = vst [vmem:[%s2 + $0x30] sm:$0xff] %v174
  %179 = vst [vmem:[%s2 + $0x50] sm:$0xff] %v175
  %180 = vst [vmem:[%s2 + $0x70] sm:$0xff] %v176
  %v181 = vadd.f32 %v97, %v145
  %v182 = vadd.f32 %v98, %v146
  %v183 = vadd.f32 %v99, %v147
  %v184 = vadd.f32 %v100, %v148
  %v185 = vmax.f32 %v181, 0.0
  %v186 = vmax.f32 %v182, 0.0
  %v187 = vmax.f32 %v183, 0.0
  %v188 = vmax.f32 %v184, 0.0
  %v189 = vmin.f32 %v185, 64.0
  %v190 = vmin.f32 %v186, 64.0
  %v191 = vmin.f32 %v187, 64.0
  %v192 = vmin.f32 %v188, 64.0
  %193 = vst [vmem:[%s2 + $0x18] sm:$0xff] %v189
  %194 = vst [vmem:[%s2 + $0x38] sm:$0xff] %v190
  %195 = vst [vmem:[%s2 + $0x58] sm:$0xff] %v191
  %196 = vst [vmem:[%s2 + $0x78] sm:$0xff] %v192
  %v197 = vsub.f32 %v33, %v34
  %v198 = vsub.f32 %v39, %v40
  %v199 = vsub.f32 %v45, %v46
  %v200 = vsub.f32 %v51, %v52
  %v201 = vmul.f32 %v197, 1.442695
  %v202 = vpow.pop %v201
  %v203 = vmul.f32 %v198, 1.442695
  %v204 = vpow.pop %v203
  %v205 = vmul.f32 %v199, 1.442695
  %v206 = vpow.pop %v205
  %v207 = vmul.f32 %v200, 1.442695
  %v208 = vpow.pop %v207
  %v209 = vadd.f32 %v202, 1.0
  %v210 = vadd.f32 %v204, 1.0
  %v211 = vadd.f32 %v206, 1.0
  %v212 = vadd.f32 %v208, 1.0
  %v213 = vrcp.pop %v209
  %v214 = vrcp.pop %v210
  %v215 = vrcp.pop %v211
  %v216 = vrcp.pop %v212
  %217 = vst [vmem:[%s3] sm:$0xff] %v213
  %218 = vst [vmem:[%s3 + $0x8] sm:$0xff] %v214
  %219 = vst [vmem:[%s3 + $0x10] sm:$0xff] %v215
  %220 = vst [vmem:[%s3 + $0x18] sm:$0xff] %v216
  // Predicated region
  $region10: #{_lambda_.6} parent=0 // pred_check
    _
  $region11: #{_lambda_.6} parent=0 // pred_check_branch
    %222 = sbr.rel (0) target = $region13
  $region12: #{_lambda_.6} parent=0 // pred_region
    _
  $region13: #{_lambda_.6} parent=0 // pred_fallthru
    _
  // Predicated region
  $region14: #{_lambda_.6} parent=0 // pred_check
    _
  $region15: #{_lambda_.6} parent=0 // pred_check_branch
    %224 = sbr.rel (0) target = $region17
  $region16: #{_lambda_.6} parent=0 // pred_region
    _
  $region17: #{_lambda_.6} parent=0 // pred_fallthru
    _
  // Predicated region
  $region18: #{_lambda_.6} parent=0 // pred_check
    _
  $region19: #{_lambda_.6} parent=0 // pred_check_branch
    %226 = sbr.rel (0) target = $region21
  $region20: #{_lambda_.6} parent=0 // pred_region
    _
  $region21: #{_lambda_.6} parent=0 // pred_fallthru
    _
  // Predicated region
  $region22: #{_lambda_.6} parent=0 // pred_check
    _
  $region23: #{_lambda_.6} parent=0 // pred_check_branch
    %228 = sbr.rel (0) target = $region25
  $region24: #{_lambda_.6} parent=0 // pred_region
    _
  $region25: #{_lambda_.6} parent=0 // pred_fallthru
    _

// kernel: sub.13
$region0: #{sub.13}
  #allocation0 [shape = 's32[1]{0}', space=sflag, size = 0x4, scoped, tag = 'scoped memory for sub.13']
  %s0 = inlined_call_operand.vmem [shape: f32[8], index: 0, kind: input, shape index: {}]
  %s1 = inlined_call_operand.vmem [shape: f32[8], index: 1, kind: input, shape index: {}]
  %s2 = inlined_call_operand.vmem [shape: f32[8], index: 2, kind: output, shape index: {}]
  %v3 = vld [vmem:[%s0] sm:$0x1]
  %v4 = vld [vmem:[%s1] sm:$0x1]
  %5 = xla_tuple %v3, %v4
  %6 = xla_tuple %5
  %v7 = vsub.f32 %v3, %v4
  %8 = xla_tuple %v7
  %9 = vst [vmem:[%s2] sm:$0x1] %v7

// kernel: _lambda_.5
$region0: #{_lambda_.5}
  #allocation0 [shape = 'u32[]', space=smem, size = 0x4, offset = 0x4, fixed_abs, tag = 'smem constant byte address 0x4 - core index']
  #allocation1 [shape = 'u32[144,128]{1,0:T(1,128)}', space=vmem, size = 0x12000, scoped, tag = 'internal scratch']
  %s0 = inlined_call_operand.vmem [shape: bf16[48,128], index: 0, kind: input, shape index: {}]
  %s1 = inlined_call_operand.hbm [shape: bf16[1152,128], index: 1, kind: input, shape index: {}]
  %s2 = inlined_call_operand.hbm [shape: f32[1,128], index: 2, kind: input, shape index: {}]
  %s3 = inlined_call_operand.hbm [shape: bf16[128,768], index: 3, kind: input, shape index: {}]
  %s4 = inlined_call_operand.hbm [shape: f32[1,768], index: 4, kind: input, shape index: {}]
  %s5 = inlined_call_operand.vmem [shape: f32[32,768], index: 5, kind: output, shape index: {}]
  %s6 = sld [smem:[#allocation0]]
  $region46: #{_lambda_.5} parent=0
    _
  %s8 = ssub.s32 1, %s6
  %s9 = scalar_select 0, %s8, %s6
  $region1: #{_lambda_.5} parent=0
    #allocation2 [shape = 'u8[294912]{0}', space=vmem, size = 0x48000, scoped, tag = 'input window, operand 1, single buffered']
    #allocation3 [shape = 's32[1]{0}', space=sflag, size = 0x4, scoped, tag = 'scoped memory for _lambda_.5']
    #allocation4 [shape = 'u8[512]{0}', space=vmem, size = 0x400, scoped, tag = 'input window, operand 2, single buffered']
    #allocation5 [shape = 's32[1]{0}', space=sflag, size = 0x4, scoped, tag = 'scoped memory for _lambda_.5']
    #allocation6 [shape = 'u8[196608]{0}', space=vmem, size = 0x30000, scoped, tag = 'input window, operand 3, single buffered']
    #allocation7 [shape = 'u8[3072]{0}', space=vmem, size = 0xc00, scoped, tag = 'input window, operand 4, single buffered']
    #allocation8 [shape = 's32[1]{0}', space=sflag, size = 0x4, scoped, tag = 'scoped memory for _lambda_.5']
    %10 = vsyncpa [#allocation3], 0
    %11 = vsyncpa [#allocation5], 0
    %12 = vsyncpa [#allocation8], 0
    // Predicated region
    $region2: #{_lambda_.5} parent=1 // pred_check
      _
    $region3: #{_lambda_.5} parent=1 // pred_check_branch
      %14 = sbr.rel (0) target = $region5
    $region4: #{_lambda_.5} parent=1 // pred_region
      _
    $region5: #{_lambda_.5} parent=1 // pred_fallthru
      _
    // Predicated region
    $region6: #{_lambda_.5} parent=1 // pred_check
      _
    $region7: #{_lambda_.5} parent=1 // pred_check_branch
      %16 = sbr.rel (0) target = $region9
    $region8: #{_lambda_.5} parent=1 // pred_region
      %s18 = ssub.s32 9216, 9216
      %19 = vsyncadd [#allocation3], %s18
      %s20 = sshll.u32 [#allocation2], 4
      %s21 = int_to_ptr.vmem [resolvable:$true] %s20
      %26 = dma.hbm_to_vmem [thread:$0]  %s1, 9216, %s21, [#allocation3], 64, 64, 4
    $region9: #{_lambda_.5} parent=1 // pred_fallthru
      _
    // Predicated region
    $region10: #{_lambda_.5} parent=1 // pred_check
      _
    $region11: #{_lambda_.5} parent=1 // pred_check_branch
      %28 = sbr.rel (0) target = $region13
    $region12: #{_lambda_.5} parent=1 // pred_region
      %s30 = ssub.s32 16, 16
      %31 = vsyncadd [#allocation5], %s30
      %s33 = sshll.u32 [#allocation4], 4
      %s34 = int_to_ptr.vmem [resolvable:$true] %s33
      %36 = dma.hbm_to_vmem [thread:$0]  %s2, 16, %s34, [#allocation5]
    $region13: #{_lambda_.5} parent=1 // pred_fallthru
      _
    // Predicated region
    $region14: #{_lambda_.5} parent=1 // pred_check
      _
    $region15: #{_lambda_.5} parent=1 // pred_check_branch
      %38 = sbr.rel (0) target = $region17
    $region16: #{_lambda_.5} parent=1 // pred_region
      %s40 = ssub.s32 6144, 6144
      %41 = vsyncadd [#allocation5], %s40
      %s42 = sshll.u32 [#allocation6], 4
      %s43 = int_to_ptr.vmem [resolvable:$true] %s42
      %48 = dma.hbm_to_vmem [thread:$0]  %s3, 6144, %s43, [#allocation5], 384, 384, 24
    $region17: #{_lambda_.5} parent=1 // pred_fallthru
      _
    // Predicated region
    $region18: #{_lambda_.5} parent=1 // pred_check
      _
    $region19: #{_lambda_.5} parent=1 // pred_check_branch
      %50 = sbr.rel (0) target = $region21
    $region20: #{_lambda_.5} parent=1 // pred_region
      %s52 = ssub.s32 96, 96
      %53 = vsyncadd [#allocation8], %s52
      %s55 = sshll.u32 [#allocation7], 4
      %s56 = int_to_ptr.vmem [resolvable:$true] %s55
      %58 = dma.hbm_to_vmem [thread:$0]  %s4, 96, %s56, [#allocation8]
    $region21: #{_lambda_.5} parent=1 // pred_fallthru
      _
    // Predicated region
    $region22: #{_lambda_.5} parent=1 // pred_check
      _
    $region23: #{_lambda_.5} parent=1 // pred_check_branch
      %60 = sbr.rel (0) target = $region25
    $region24: #{_lambda_.5} parent=1 // pred_region
      %61 = dma.done [#allocation3], 9216
    $region25: #{_lambda_.5} parent=1 // pred_fallthru
      _
    // Predicated region
    $region26: #{_lambda_.5} parent=1 // pred_check
      _
    $region27: #{_lambda_.5} parent=1 // pred_check_branch
      %63 = sbr.rel (0) target = $region29
    $region28: #{_lambda_.5} parent=1 // pred_region
      %64 = dma.done [#allocation5], 16
    $region29: #{_lambda_.5} parent=1 // pred_fallthru
      _
    // Predicated region
    $region30: #{_lambda_.5} parent=1 // pred_check
      _
    $region31: #{_lambda_.5} parent=1 // pred_check_branch
      %66 = sbr.rel (0) target = $region33
    $region32: #{_lambda_.5} parent=1 // pred_region
      %67 = dma.done [#allocation5], 6144
    $region33: #{_lambda_.5} parent=1 // pred_fallthru
      _
    // Predicated region
    $region34: #{_lambda_.5} parent=1 // pred_check
      _
    $region35: #{_lambda_.5} parent=1 // pred_check_branch
      %69 = sbr.rel (0) target = $region37
    $region36: #{_lambda_.5} parent=1 // pred_region
      %70 = dma.done [#allocation8], 96
    $region37: #{_lambda_.5} parent=1 // pred_fallthru
      _
    %v72 = vld [vmem:[%s0] sm:$0xf]
    %v73 = vld [vmem:[%s0 + $0x4] sm:$0xf]
    %v74 = vld [vmem:[%s0 + $0x8] sm:$0xf]
    %v75 = vld [vmem:[%s0 + $0xc] sm:$0xf]
    %v76 = vld [vmem:[#allocation2] sm:$0xf]
    %v77 = vld [vmem:[#allocation2 + $0x4] sm:$0xf]
    %v78 = vld [vmem:[#allocation2 + $0x8] sm:$0xf]
    %v79 = vld [vmem:[#allocation2 + $0xc] sm:$0xf]
    %v80 = vld [vmem:[#allocation2 + $0x10] sm:$0xf]
    %v81 = vld [vmem:[#allocation2 + $0x14] sm:$0xf]
    %v82 = vld [vmem:[#allocation2 + $0x18] sm:$0xf]
    %v83 = vld [vmem:[#allocation2 + $0x1c] sm:$0xf]
    %v84 = vld [vmem:[#allocation2 + $0x20] sm:$0xf]
    %v85 = vld [vmem:[#allocation2 + $0x24] sm:$0xf]
    %v86 = vld [vmem:[#allocation2 + $0x28] sm:$0xf]
    %v87 = vld [vmem:[#allocation2 + $0x2c] sm:$0xf]
    %v88 = vld [vmem:[#allocation2 + $0x30] sm:$0xf]
    %v89 = vld [vmem:[#allocation2 + $0x34] sm:$0xf]
    %v90 = vld [vmem:[#allocation2 + $0x38] sm:$0xf]
    %v91 = vld [vmem:[#allocation2 + $0x3c] sm:$0xf]
    %v92 = vld [vmem:[%s0 + $0x10] sm:$0x1]
    %v93 = vld [vmem:[#allocation2 + $0x40] sm:$0xf]
    %v94 = vld [vmem:[#allocation2 + $0x44] sm:$0xf]
    %v95 = vld [vmem:[#allocation2 + $0x48] sm:$0xf]
    %v96 = vld [vmem:[#allocation2 + $0x4c] sm:$0xf]
    %v97 = vld [vmem:[#allocation2 + $0x50] sm:$0xf]
    %v98 = vld [vmem:[#allocation2 + $0x54] sm:$0xf]
    %v99 = vld [vmem:[#allocation2 + $0x58] sm:$0xf]
    %v100 = vld [vmem:[#allocation2 + $0x5c] sm:$0xf]
    %v101 = vld [vmem:[#allocation2 + $0x60] sm:$0xf]
    %v102 = vld [vmem:[#allocation2 + $0x64] sm:$0xf]
    %v103 = vld [vmem:[#allocation2 + $0x68] sm:$0xf]
    %v104 = vld [vmem:[#allocation2 + $0x6c] sm:$0xf]
    %v105 = vld [vmem:[#allocation2 + $0x70] sm:$0xf]
    %v106 = vld [vmem:[#allocation2 + $0x74] sm:$0xf]
    %v107 = vld [vmem:[#allocation2 + $0x78] sm:$0xf]
    %v108 = vld [vmem:[#allocation2 + $0x7c] sm:$0xf]
    %v114 = vunpack.c.l.b16 %v72
    %v115 = vunpack.c.l.b16 %v73
    %v116 = vunpack.c.l.b16 %v74
    %v117 = vunpack.c.l.b16 %v75
    %v118 = vunpack.c.l.b16 %v92
    %v119 = vpack.c.b16 %v115, %v114
    %v120 = vpack.c.b16 %v117, %v116
    %v121 = vpack.c.b16 %v118, %v118
    %vm122 = vsmask.f32 7424
    %v124 = vshrl.u32 %v119, 16
    %v126 = vshll.u32 %v119, 16
    %v128 = vrot.slane %v126, 1
    %v129 = vor.u32 %v124, %v128
    %v131 = vshll.u32 %v120, 16
    %v133 = vrot.slane %v131, 1
    %v134 = vsel %vm122, %v129, %v133
    %v135 = vshrl.u32 %v120, 16
    %v137 = vor.u32 %v135, %v133
    %v139 = vshll.u32 %v121, 16
    %v141 = vrot.slane %v139, 1
    %v142 = vsel %vm122, %v137, %v141
    %v161 = vunpack.c.l.b16 %v93
    %v162 = vunpack.c.l.b16 %v94
    %v163 = vunpack.c.l.b16 %v95
    %v164 = vunpack.c.l.b16 %v96
    %v165 = vunpack.c.l.b16 %v97
    %v166 = vunpack.c.l.b16 %v98
    %v167 = vunpack.c.l.b16 %v99
    %v168 = vunpack.c.l.b16 %v100
    %v169 = vunpack.c.l.b16 %v101
    %v170 = vunpack.c.l.b16 %v102
    %v171 = vunpack.c.l.b16 %v103
    %v172 = vunpack.c.l.b16 %v104
    %v173 = vunpack.c.l.b16 %v105
    %v174 = vunpack.c.l.b16 %v106
    %v175 = vunpack.c.l.b16 %v107
    %v176 = vunpack.c.l.b16 %v108
    %v177 = vpack.c.b16 %v162, %v161
    %v178 = vpack.c.b16 %v164, %v163
    %v179 = vpack.c.b16 %v166, %v165
    %v180 = vpack.c.b16 %v168, %v167
    %v181 = vpack.c.b16 %v170, %v169
    %v182 = vpack.c.b16 %v172, %v171
    %v183 = vpack.c.b16 %v174, %v173
    %v184 = vpack.c.b16 %v176, %v175
    %193 = vmatprep.subr.bf16.mxu0 0
    %194 = vmatpush1.bf16.msra.mxu0 %v184
    %195 = vmatprep.subr.bf16.mxu0 0
    %196 = vmatpush1.bf16.msra.mxu0 %v183
    %197 = vmatprep.subr.bf16.mxu0 0
    %198 = vmatpush1.bf16.msra.mxu0 %v182
    %199 = vmatprep.subr.bf16.mxu0 0
    %200 = vmatpush1.bf16.msra.mxu0 %v181
    %201 = vmatprep.subr.bf16.mxu0 0
    %202 = vmatpush1.bf16.msra.mxu0 %v180
    %203 = vmatprep.subr.bf16.mxu0 0
    %204 = vmatpush1.bf16.msra.mxu0 %v179
    %205 = vmatprep.subr.bf16.mxu0 0
    %206 = vmatpush1.bf16.msra.mxu0 %v178
    %207 = vmatprep.subr.bf16.mxu0 0
    %208 = vmatpush1.bf16.msra.mxu0 %v177
    %209 = vmatprep.subr.bf16.mxu0 0
    %210 = vmatpush2.bf16.msra.mxu0 0
    %211 = vmatprep.subr.bf16.mxu0 0
    %212 = vmatpush2.bf16.msra.mxu0 0
    %213 = vmatprep.subr.bf16.mxu0 0
    %214 = vmatpush2.bf16.msra.mxu0 0
    %215 = vmatprep.subr.bf16.mxu0 0
    %216 = vmatpush2.bf16.msra.mxu0 0
    %217 = vmatprep.subr.bf16.mxu0 0
    %218 = vmatpush2.bf16.msra.mxu0 0
    %219 = vmatprep.subr.bf16.mxu0 0
    %220 = vmatpush2.bf16.msra.mxu0 0
    %221 = vmatprep.subr.bf16.mxu0 0
    %222 = vmatpush2.bf16.msra.mxu0 0
    %223 = vmatprep.subr.bf16.mxu0 0
    %224 = vmatpush2.bf16.msra.mxu0 0
    %225 = vmatprep.mubr.bf16.mxu0 0
    %226 = vmatmul.mubr.bf16.gmra.mxu0 %v134
    %v227 = vpop.f32.mrf.mxu0
    %v228 = vadd.f32 0.0, %v227
    %v229 = vpop.f32.mrf.mxu0
    %v230 = vpop.f32.mrf.mxu0
    %v231 = vadd.f32 0.0, %v230
    %v232 = vpop.f32.mrf.mxu0
    %233 = vmatprep.mubr.bf16.mxu0 0
    %234 = vmatmul.mubr.bf16.gmra.mxu0 %v142
    %v235 = vpop.f32.mrf.mxu0
    %v236 = vadd.f32 0.0, %v235
    %v237 = vpop.f32.mrf.mxu0
    %v238 = vpop.f32.mrf.mxu0
    %v239 = vadd.f32 0.0, %v238
    %v240 = vpop.f32.mrf.mxu0
    %241 = vdwg.mxu0
    %v260 = vunpack.c.l.b16 %v76
    %v261 = vunpack.c.l.b16 %v77
    %v262 = vunpack.c.l.b16 %v78
    %v263 = vunpack.c.l.b16 %v79
    %v264 = vunpack.c.l.b16 %v80
    %v265 = vunpack.c.l.b16 %v81
    %v266 = vunpack.c.l.b16 %v82
    %v267 = vunpack.c.l.b16 %v83
    %v268 = vunpack.c.l.b16 %v84
    %v269 = vunpack.c.l.b16 %v85
    %v270 = vunpack.c.l.b16 %v86
    %v271 = vunpack.c.l.b16 %v87
    %v272 = vunpack.c.l.b16 %v88
    %v273 = vunpack.c.l.b16 %v89
    %v274 = vunpack.c.l.b16 %v90
    %v275 = vunpack.c.l.b16 %v91
    %v276 = vpack.c.b16 %v261, %v260
    %v277 = vpack.c.b16 %v263, %v262
    %v278 = vpack.c.b16 %v265, %v264
    %v279 = vpack.c.b16 %v267, %v266
    %v280 = vpack.c.b16 %v269, %v268
    %v281 = vpack.c.b16 %v271, %v270
    %v282 = vpack.c.b16 %v273, %v272
    %v283 = vpack.c.b16 %v275, %v274
    %292 = vmatprep.subr.bf16.mxu0 0
    %293 = vmatpush1.bf16.msra.mxu0 %v283
    %294 = vmatprep.subr.bf16.mxu0 0
    %295 = vmatpush1.bf16.msra.mxu0 %v282
    %296 = vmatprep.subr.bf16.mxu0 0
    %297 = vmatpush1.bf16.msra.mxu0 %v281
    %298 = vmatprep.subr.bf16.mxu0 0
    %299 = vmatpush1.bf16.msra.mxu0 %v280
    %300 = vmatprep.subr.bf16.mxu0 0
    %301 = vmatpush1.bf16.msra.mxu0 %v279
    %302 = vmatprep.subr.bf16.mxu0 0
    %303 = vmatpush1.bf16.msra.mxu0 %v278
    %304 = vmatprep.subr.bf16.mxu0 0
    %305 = vmatpush1.bf16.msra.mxu0 %v277
    %306 = vmatprep.subr.bf16.mxu0 0
    %307 = vmatpush1.bf16.msra.mxu0 %v276
    %308 = vmatprep.subr.bf16.mxu0 0
    %309 = vmatpush2.bf16.msra.mxu0 0
    %310 = vmatprep.subr.bf16.mxu0 0
    %311 = vmatpush2.bf16.msra.mxu0 0
    %312 = vmatprep.subr.bf16.mxu0 0
    %313 = vmatpush2.bf16.msra.mxu0 0
    %314 = vmatprep.subr.bf16.mxu0 0
    %315 = vmatpush2.bf16.msra.mxu0 0
    %316 = vmatprep.subr.bf16.mxu0 0
    %317 = vmatpush2.bf16.msra.mxu0 0
    %318 = vmatprep.subr.bf16.mxu0 0
    %319 = vmatpush2.bf16.msra.mxu0 0
    %320 = vmatprep.subr.bf16.mxu0 0
    %321 = vmatpush2.bf16.msra.mxu0 0
    %322 = vmatprep.subr.bf16.mxu0 0
    %323 = vmatpush2.bf16.msra.mxu0 0
    %324 = vmatprep.mubr.bf16.mxu0 0
    %325 = vmatmul.mubr.bf16.gmra.mxu0 %v119
    %v326 = vpop.f32.mrf.mxu0
    %v327 = vadd.f32 %v228, %v326
    %v328 = vpop.f32.mrf.mxu0
    %v329 = vpop.f32.mrf.mxu0
    %v330 = vadd.f32 %v231, %v329
    %v331 = vpop.f32.mrf.mxu0
    %332 = vmatprep.mubr.bf16.mxu0 0
    %333 = vmatmul.mubr.bf16.gmra.mxu0 %v120
    %v334 = vpop.f32.mrf.mxu0
    %v335 = vadd.f32 %v236, %v334
    %v336 = vpop.f32.mrf.mxu0
    %v337 = vpop.f32.mrf.mxu0
    %v338 = vadd.f32 %v239, %v337
    %v339 = vpop.f32.mrf.mxu0
    %340 = vdwg.mxu0
    %v341 = vld [vmem:[%s0] sm:$0xe]
    %v342 = vld [vmem:[#allocation2 + $0x80] sm:$0xf]
    %v343 = vld [vmem:[#allocation2 + $0x84] sm:$0xf]
    %v344 = vld [vmem:[#allocation2 + $0x88] sm:$0xf]
    %v345 = vld [vmem:[#allocation2 + $0x8c] sm:$0xf]
    %v346 = vld [vmem:[#allocation2 + $0x90] sm:$0xf]
    %v347 = vld [vmem:[#allocation2 + $0x94] sm:$0xf]
    %v348 = vld [vmem:[#allocation2 + $0x98] sm:$0xf]
    %v349 = vld [vmem:[#allocation2 + $0x9c] sm:$0xf]
    %v350 = vld [vmem:[#allocation2 + $0xa0] sm:$0xf]
    %v351 = vld [vmem:[#allocation2 + $0xa4] sm:$0xf]
    %v352 = vld [vmem:[#allocation2 + $0xa8] sm:$0xf]
    %v353 = vld [vmem:[#allocation2 + $0xac] sm:$0xf]
    %v354 = vld [vmem:[#allocation2 + $0xb0] sm:$0xf]
    %v355 = vld [vmem:[#allocation2 + $0xb4] sm:$0xf]
    %v356 = vld [vmem:[#allocation2 + $0xb8] sm:$0xf]
    %v357 = vld [vmem:[#allocation2 + $0xbc] sm:$0xf]
    %v359 = vunpack.c.l.b16 %v341
    %v360 = vpack.c.b16 %v115, %v359
    %vm361 = vcmask 1046528
    %v362 = vrot.slane %v360, 1
    %v363 = vrot.slane %v120, 1
    %v364 = vsel %vm361, %v362, %v363
    %v365 = vrot.slane %v121, 1
    %v366 = vsel %vm361, %v363, %v365
    %v385 = vunpack.c.l.b16 %v342
    %v386 = vunpack.c.l.b16 %v343
    %v387 = vunpack.c.l.b16 %v344
    %v388 = vunpack.c.l.b16 %v345
    %v389 = vunpack.c.l.b16 %v346
    %v390 = vunpack.c.l.b16 %v347
    %v391 = vunpack.c.l.b16 %v348
    %v392 = vunpack.c.l.b16 %v349
    %v393 = vunpack.c.l.b16 %v350
    %v394 = vunpack.c.l.b16 %v351
    %v395 = vunpack.c.l.b16 %v352
    %v396 = vunpack.c.l.b16 %v353
    %v397 = vunpack.c.l.b16 %v354
    %v398 = vunpack.c.l.b16 %v355
    %v399 = vunpack.c.l.b16 %v356
    %v400 = vunpack.c.l.b16 %v357
    %v401 = vpack.c.b16 %v386, %v385
    %v402 = vpack.c.b16 %v388, %v387
    %v403 = vpack.c.b16 %v390, %v389
    %v404 = vpack.c.b16 %v392, %v391
    %v405 = vpack.c.b16 %v394, %v393
    %v406 = vpack.c.b16 %v396, %v395
    %v407 = vpack.c.b16 %v398, %v397
    %v408 = vpack.c.b16 %v400, %v399
    %417 = vmatprep.subr.bf16.mxu0 0
    %418 = vmatpush1.bf16.msra.mxu0 %v408
    %419 = vmatprep.subr.bf16.mxu0 0
    %420 = vmatpush1.bf16.msra.mxu0 %v407
    %421 = vmatprep.subr.bf16.mxu0 0
    %422 = vmatpush1.bf16.msra.mxu0 %v406
    %423 = vmatprep.subr.bf16.mxu0 0
    %424 = vmatpush1.bf16.msra.mxu0 %v405
    %425 = vmatprep.subr.bf16.mxu0 0
    %426 = vmatpush1.bf16.msra.mxu0 %v404
    %427 = vmatprep.subr.bf16.mxu0 0
    %428 = vmatpush1.bf16.msra.mxu0 %v403
    %429 = vmatprep.subr.bf16.mxu0 0
    %430 = vmatpush1.bf16.msra.mxu0 %v402
    %431 = vmatprep.subr.bf16.mxu0 0
    %432 = vmatpush1.bf16.msra.mxu0 %v401
    %433 = vmatprep.subr.bf16.mxu0 0
    %434 = vmatpush2.bf16.msra.mxu0 0
    %435 = vmatprep.subr.bf16.mxu0 0
    %436 = vmatpush2.bf16.msra.mxu0 0
    %437 = vmatprep.subr.bf16.mxu0 0
    %438 = vmatpush2.bf16.msra.mxu0 0
    %439 = vmatprep.subr.bf16.mxu0 0
    %440 = vmatpush2.bf16.msra.mxu0 0
    %441 = vmatprep.subr.bf16.mxu0 0
    %442 = vmatpush2.bf16.msra.mxu0 0
    %443 = vmatprep.subr.bf16.mxu0 0
    %444 = vmatpush2.bf16.msra.mxu0 0
    %445 = vmatprep.subr.bf16.mxu0 0
    %446 = vmatpush2.bf16.msra.mxu0 0
    %447 = vmatprep.subr.bf16.mxu0 0
    %448 = vmatpush2.bf16.msra.mxu0 0
    %449 = vmatprep.mubr.bf16.mxu0 0
    %450 = vmatmul.mubr.bf16.gmra.mxu0 %v364
    %v451 = vpop.f32.mrf.mxu0
    %v452 = vadd.f32 0.0, %v451
    %v453 = vpop.f32.mrf.mxu0
    %v454 = vpop.f32.mrf.mxu0
    %v455 = vadd.f32 0.0, %v454
    %v456 = vpop.f32.mrf.mxu0
    %457 = vmatprep.mubr.bf16.mxu0 0
    %458 = vmatmul.mubr.bf16.gmra.mxu0 %v366
    %v459 = vpop.f32.mrf.mxu0
    %v460 = vadd.f32 0.0, %v459
    %v461 = vpop.f32.mrf.mxu0
    %v462 = vpop.f32.mrf.mxu0
    %v463 = vadd.f32 0.0, %v462
    %v464 = vpop.f32.mrf.mxu0
    %465 = vdwg.mxu0
    %v466 = vadd.f32 %v327, %v452
    %v467 = vadd.f32 %v330, %v455
    %v468 = vadd.f32 %v335, %v460
    %v469 = vadd.f32 %v338, %v463
    %v470 = vld [vmem:[%s0] sm:$0x8]
    %v471 = vld [vmem:[%s0 + $0x10] sm:$0x7]
    %v472 = vld [vmem:[#allocation2 + $0xc0] sm:$0xf]
    %v473 = vld [vmem:[#allocation2 + $0xc4] sm:$0xf]
    %v474 = vld [vmem:[#allocation2 + $0xc8] sm:$0xf]
    %v475 = vld [vmem:[#allocation2 + $0xcc] sm:$0xf]
    %v476 = vld [vmem:[#allocation2 + $0xd0] sm:$0xf]
    %v477 = vld [vmem:[#allocation2 + $0xd4] sm:$0xf]
    %v478 = vld [vmem:[#allocation2 + $0xd8] sm:$0xf]
    %v479 = vld [vmem:[#allocation2 + $0xdc] sm:$0xf]
    %v480 = vld [vmem:[#allocation2 + $0xe0] sm:$0xf]
    %v481 = vld [vmem:[#allocation2 + $0xe4] sm:$0xf]
    %v482 = vld [vmem:[#allocation2 + $0xe8] sm:$0xf]
    %v483 = vld [vmem:[#allocation2 + $0xec] sm:$0xf]
    %v484 = vld [vmem:[#allocation2 + $0xf0] sm:$0xf]
    %v485 = vld [vmem:[#allocation2 + $0xf4] sm:$0xf]
    %v486 = vld [vmem:[#allocation2 + $0xf8] sm:$0xf]
    %v487 = vld [vmem:[#allocation2 + $0xfc] sm:$0xf]
    %v490 = vunpack.c.l.b16 %v470
    %v491 = vunpack.c.l.b16 %v471
    %v492 = vpack.c.b16 %v115, %v490
    %v493 = vpack.c.b16 %v491, %v491
    %vm494 = vcmask 1044480
    %v495 = vrot.slane %v492, 3
    %v496 = vrot.slane %v120, 3
    %v497 = vsel %vm494, %v495, %v496
    %v498 = vrot.slane %v493, 3
    %v499 = vsel %vm494, %v496, %v498
    %v518 = vunpack.c.l.b16 %v472
    %v519 = vunpack.c.l.b16 %v473
    %v520 = vunpack.c.l.b16 %v474
    %v521 = vunpack.c.l.b16 %v475
    %v522 = vunpack.c.l.b16 %v476
    %v523 = vunpack.c.l.b16 %v477
    %v524 = vunpack.c.l.b16 %v478
    %v525 = vunpack.c.l.b16 %v479
    %v526 = vunpack.c.l.b16 %v480
    %v527 = vunpack.c.l.b16 %v481
    %v528 = vunpack.c.l.b16 %v482
    %v529 = vunpack.c.l.b16 %v483
    %v530 = vunpack.c.l.b16 %v484
    %v531 = vunpack.c.l.b16 %v485
    %v532 = vunpack.c.l.b16 %v486
    %v533 = vunpack.c.l.b16 %v487
    %v534 = vpack.c.b16 %v519, %v518
    %v535 = vpack.c.b16 %v521, %v520
    %v536 = vpack.c.b16 %v523, %v522
    %v537 = vpack.c.b16 %v525, %v524
    %v538 = vpack.c.b16 %v527, %v526
    %v539 = vpack.c.b16 %v529, %v528
    %v540 = vpack.c.b16 %v531, %v530
    %v541 = vpack.c.b16 %v533, %v532
    %550 = vmatprep.subr.bf16.mxu0 0
    %551 = vmatpush1.bf16.msra.mxu0 %v541
    %552 = vmatprep.subr.bf16.mxu0 0
    %553 = vmatpush1.bf16.msra.mxu0 %v540
    %554 = vmatprep.subr.bf16.mxu0 0
    %555 = vmatpush1.bf16.msra.mxu0 %v539
    %556 = vmatprep.subr.bf16.mxu0 0
    %557 = vmatpush1.bf16.msra.mxu0 %v538
    %558 = vmatprep.subr.bf16.mxu0 0
    %559 = vmatpush1.bf16.msra.mxu0 %v537
    %560 = vmatprep.subr.bf16.mxu0 0
    %561 = vmatpush1.bf16.msra.mxu0 %v536
    %562 = vmatprep.subr.bf16.mxu0 0
    %563 = vmatpush1.bf16.msra.mxu0 %v535
    %564 = vmatprep.subr.bf16.mxu0 0
    %565 = vmatpush1.bf16.msra.mxu0 %v534
    %566 = vmatprep.subr.bf16.mxu0 0
    %567 = vmatpush2.bf16.msra.mxu0 0
    %568 = vmatprep.subr.bf16.mxu0 0
    %569 = vmatpush2.bf16.msra.mxu0 0
    %570 = vmatprep.subr.bf16.mxu0 0
    %571 = vmatpush2.bf16.msra.mxu0 0
    %572 = vmatprep.subr.bf16.mxu0 0
    %573 = vmatpush2.bf16.msra.mxu0 0
    %574 = vmatprep.subr.bf16.mxu0 0
    %575 = vmatpush2.bf16.msra.mxu0 0
    %576 = vmatprep.subr.bf16.mxu0 0
    %577 = vmatpush2.bf16.msra.mxu0 0
    %578 = vmatprep.subr.bf16.mxu0 0
    %579 = vmatpush2.bf16.msra.mxu0 0
    %580 = vmatprep.subr.bf16.mxu0 0
    %581 = vmatpush2.bf16.msra.mxu0 0
    %582 = vmatprep.mubr.bf16.mxu0 0
    %583 = vmatmul.mubr.bf16.gmra.mxu0 %v497
    %v584 = vpop.f32.mrf.mxu0
    %v585 = vadd.f32 0.0, %v584
    %v586 = vpop.f32.mrf.mxu0
    %v587 = vpop.f32.mrf.mxu0
    %v588 = vadd.f32 0.0, %v587
    %v589 = vpop.f32.mrf.mxu0
    %590 = vmatprep.mubr.bf16.mxu0 0
    %591 = vmatmul.mubr.bf16.gmra.mxu0 %v499
    %v592 = vpop.f32.mrf.mxu0
    %v593 = vadd.f32 0.0, %v592
    %v594 = vpop.f32.mrf.mxu0
    %v595 = vpop.f32.mrf.mxu0
    %v596 = vadd.f32 0.0, %v595
    %v597 = vpop.f32.mrf.mxu0
    %598 = vdwg.mxu0
    %v599 = vadd.f32 %v466, %v585
    %v600 = vadd.f32 %v467, %v588
    %v601 = vadd.f32 %v468, %v593
    %v602 = vadd.f32 %v469, %v596
    %v603 = vld [vmem:[%s0 + $0x10] sm:$0xf]
    %v604 = vld [vmem:[#allocation2 + $0x100] sm:$0xf]
    %v605 = vld [vmem:[#allocation2 + $0x104] sm:$0xf]
    %v606 = vld [vmem:[#allocation2 + $0x108] sm:$0xf]
    %v607 = vld [vmem:[#allocation2 + $0x10c] sm:$0xf]
    %v608 = vld [vmem:[#allocation2 + $0x110] sm:$0xf]
    %v609 = vld [vmem:[#allocation2 + $0x114] sm:$0xf]
    %v610 = vld [vmem:[#allocation2 + $0x118] sm:$0xf]
    %v611 = vld [vmem:[#allocation2 + $0x11c] sm:$0xf]
    %v612 = vld [vmem:[#allocation2 + $0x120] sm:$0xf]
    %v613 = vld [vmem:[#allocation2 + $0x124] sm:$0xf]
    %v614 = vld [vmem:[#allocation2 + $0x128] sm:$0xf]
    %v615 = vld [vmem:[#allocation2 + $0x12c] sm:$0xf]
    %v616 = vld [vmem:[#allocation2 + $0x130] sm:$0xf]
    %v617 = vld [vmem:[#allocation2 + $0x134] sm:$0xf]
    %v618 = vld [vmem:[#allocation2 + $0x138] sm:$0xf]
    %v619 = vld [vmem:[#allocation2 + $0x13c] sm:$0xf]
    %v621 = vunpack.c.l.b16 %v603
    %v622 = vpack.c.b16 %v621, %v621
    %vm623 = vsmask.f32 4352
    %v625 = vshrl.u32 %v492, 16
    %v627 = vrot.slane %v625, 3
    %v628 = vshll.u32 %v492, 16
    %v630 = vrot.slane %v628, 4
    %v631 = vor.u32 %v627, %v630
    %v632 = vrot.slane %v135, 3
    %v633 = vrot.slane %v131, 4
    %v634 = vor.u32 %v632, %v633
    %v635 = vsel %vm623, %v631, %v634
    %v637 = vshrl.u32 %v622, 16
    %v639 = vrot.slane %v637, 3
    %v640 = vshll.u32 %v622, 16
    %v642 = vrot.slane %v640, 4
    %v643 = vor.u32 %v639, %v642
    %v644 = vsel %vm623, %v634, %v643
    %v663 = vunpack.c.l.b16 %v604
    %v664 = vunpack.c.l.b16 %v605
    %v665 = vunpack.c.l.b16 %v606
    %v666 = vunpack.c.l.b16 %v607
    %v667 = vunpack.c.l.b16 %v608
    %v668 = vunpack.c.l.b16 %v609
    %v669 = vunpack.c.l.b16 %v610
    %v670 = vunpack.c.l.b16 %v611
    %v671 = vunpack.c.l.b16 %v612
    %v672 = vunpack.c.l.b16 %v613
    %v673 = vunpack.c.l.b16 %v614
    %v674 = vunpack.c.l.b16 %v615
    %v675 = vunpack.c.l.b16 %v616
    %v676 = vunpack.c.l.b16 %v617
    %v677 = vunpack.c.l.b16 %v618
    %v678 = vunpack.c.l.b16 %v619
    %v679 = vpack.c.b16 %v664, %v663
    %v680 = vpack.c.b16 %v666, %v665
    %v681 = vpack.c.b16 %v668, %v667
    %v682 = vpack.c.b16 %v670, %v669
    %v683 = vpack.c.b16 %v672, %v671
    %v684 = vpack.c.b16 %v674, %v673
    %v685 = vpack.c.b16 %v676, %v675
    %v686 = vpack.c.b16 %v678, %v677
    %695 = vmatprep.subr.bf16.mxu0 0
    %696 = vmatpush1.bf16.msra.mxu0 %v686
    %697 = vmatprep.subr.bf16.mxu0 0
    %698 = vmatpush1.bf16.msra.mxu0 %v685
    %699 = vmatprep.subr.bf16.mxu0 0
    %700 = vmatpush1.bf16.msra.mxu0 %v684
    %701 = vmatprep.subr.bf16.mxu0 0
    %702 = vmatpush1.bf16.msra.mxu0 %v683
    %703 = vmatprep.subr.bf16.mxu0 0
    %704 = vmatpush1.bf16.msra.mxu0 %v682
    %705 = vmatprep.subr.bf16.mxu0 0
    %706 = vmatpush1.bf16.msra.mxu0 %v681
    %707 = vmatprep.subr.bf16.mxu0 0
    %708 = vmatpush1.bf16.msra.mxu0 %v680
    %709 = vmatprep.subr.bf16.mxu0 0
    %710 = vmatpush1.bf16.msra.mxu0 %v679
    %711 = vmatprep.subr.bf16.mxu0 0
    %712 = vmatpush2.bf16.msra.mxu0 0
    %713 = vmatprep.subr.bf16.mxu0 0
    %714 = vmatpush2.bf16.msra.mxu0 0
    %715 = vmatprep.subr.bf16.mxu0 0
    %716 = vmatpush2.bf16.msra.mxu0 0
    %717 = vmatprep.subr.bf16.mxu0 0
    %718 = vmatpush2.bf16.msra.mxu0 0
    %719 = vmatprep.subr.bf16.mxu0 0
    %720 = vmatpush2.bf16.msra.mxu0 0
    %721 = vmatprep.subr.bf16.mxu0 0
    %722 = vmatpush2.bf16.msra.mxu0 0
    %723 = vmatprep.subr.bf16.mxu0 0
    %724 = vmatpush2.bf16.msra.mxu0 0
    %725 = vmatprep.subr.bf16.mxu0 0
    %726 = vmatpush2.bf16.msra.mxu0 0
    %727 = vmatprep.mubr.bf16.mxu0 0
    %728 = vmatmul.mubr.bf16.gmra.mxu0 %v635
    %v729 = vpop.f32.mrf.mxu0
    %v730 = vadd.f32 0.0, %v729
    %v731 = vpop.f32.mrf.mxu0
    %v732 = vpop.f32.mrf.mxu0
    %v733 = vadd.f32 0.0, %v732
    %v734 = vpop.f32.mrf.mxu0
    %735 = vmatprep.mubr.bf16.mxu0 0
    %736 = vmatmul.mubr.bf16.gmra.mxu0 %v644
    %v737 = vpop.f32.mrf.mxu0
    %v738 = vadd.f32 0.0, %v737
    %v739 = vpop.f32.mrf.mxu0
    %v740 = vpop.f32.mrf.mxu0
    %v741 = vadd.f32 0.0, %v740
    %v742 = vpop.f32.mrf.mxu0
    %743 = vdwg.mxu0
    %v744 = vadd.f32 %v599, %v730
    %v745 = vadd.f32 %v600, %v733
    %v746 = vadd.f32 %v601, %v738
    %v747 = vadd.f32 %v602, %v741
    %v748 = vld [vmem:[#allocation2 + $0x140] sm:$0xf]
    %v749 = vld [vmem:[#allocation2 + $0x144] sm:$0xf]
    %v750 = vld [vmem:[#allocation2 + $0x148] sm:$0xf]
    %v751 = vld [vmem:[#allocation2 + $0x14c] sm:$0xf]
    %v752 = vld [vmem:[#allocation2 + $0x150] sm:$0xf]
    %v753 = vld [vmem:[#allocation2 + $0x154] sm:$0xf]
    %v754 = vld [vmem:[#allocation2 + $0x158] sm:$0xf]
    %v755 = vld [vmem:[#allocation2 + $0x15c] sm:$0xf]
    %v756 = vld [vmem:[#allocation2 + $0x160] sm:$0xf]
    %v757 = vld [vmem:[#allocation2 + $0x164] sm:$0xf]
    %v758 = vld [vmem:[#allocation2 + $0x168] sm:$0xf]
    %v759 = vld [vmem:[#allocation2 + $0x16c] sm:$0xf]
    %v760 = vld [vmem:[#allocation2 + $0x170] sm:$0xf]
    %v761 = vld [vmem:[#allocation2 + $0x174] sm:$0xf]
    %v762 = vld [vmem:[#allocation2 + $0x178] sm:$0xf]
    %v763 = vld [vmem:[#allocation2 + $0x17c] sm:$0xf]
    %v764 = vpack.c.b16 %v116, %v115
    %v765 = vpack.c.b16 %v621, %v117
    %v784 = vunpack.c.l.b16 %v748
    %v785 = vunpack.c.l.b16 %v749
    %v786 = vunpack.c.l.b16 %v750
    %v787 = vunpack.c.l.b16 %v751
    %v788 = vunpack.c.l.b16 %v752
    %v789 = vunpack.c.l.b16 %v753
    %v790 = vunpack.c.l.b16 %v754
    %v791 = vunpack.c.l.b16 %v755
    %v792 = vunpack.c.l.b16 %v756
    %v793 = vunpack.c.l.b16 %v757
    %v794 = vunpack.c.l.b16 %v758
    %v795 = vunpack.c.l.b16 %v759
    %v796 = vunpack.c.l.b16 %v760
    %v797 = vunpack.c.l.b16 %v761
    %v798 = vunpack.c.l.b16 %v762
    %v799 = vunpack.c.l.b16 %v763
    %v800 = vpack.c.b16 %v785, %v784
    %v801 = vpack.c.b16 %v787, %v786
    %v802 = vpack.c.b16 %v789, %v788
    %v803 = vpack.c.b16 %v791, %v790
    %v804 = vpack.c.b16 %v793, %v792
    %v805 = vpack.c.b16 %v795, %v794
    %v806 = vpack.c.b16 %v797, %v796
    %v807 = vpack.c.b16 %v799, %v798
    %816 = vmatprep.subr.bf16.mxu0 0
    %817 = vmatpush1.bf16.msra.mxu0 %v807
    %818 = vmatprep.subr.bf16.mxu0 0
    %819 = vmatpush1.bf16.msra.mxu0 %v806
    %820 = vmatprep.subr.bf16.mxu0 0
    %821 = vmatpush1.bf16.msra.mxu0 %v805
    %822 = vmatprep.subr.bf16.mxu0 0
    %823 = vmatpush1.bf16.msra.mxu0 %v804
    %824 = vmatprep.subr.bf16.mxu0 0
    %825 = vmatpush1.bf16.msra.mxu0 %v803
    %826 = vmatprep.subr.bf16.mxu0 0
    %827 = vmatpush1.bf16.msra.mxu0 %v802
    %828 = vmatprep.subr.bf16.mxu0 0
    %829 = vmatpush1.bf16.msra.mxu0 %v801
    %830 = vmatprep.subr.bf16.mxu0 0
    %831 = vmatpush1.bf16.msra.mxu0 %v800
    %832 = vmatprep.subr.bf16.mxu0 0
    %833 = vmatpush2.bf16.msra.mxu0 0
    %834 = vmatprep.subr.bf16.mxu0 0
    %835 = vmatpush2.bf16.msra.mxu0 0
    %836 = vmatprep.subr.bf16.mxu0 0
    %837 = vmatpush2.bf16.msra.mxu0 0
    %838 = vmatprep.subr.bf16.mxu0 0
    %839 = vmatpush2.bf16.msra.mxu0 0
    %840 = vmatprep.subr.bf16.mxu0 0
    %841 = vmatpush2.bf16.msra.mxu0 0
    %842 = vmatprep.subr.bf16.mxu0 0
    %843 = vmatpush2.bf16.msra.mxu0 0
    %844 = vmatprep.subr.bf16.mxu0 0
    %845 = vmatpush2.bf16.msra.mxu0 0
    %846 = vmatprep.subr.bf16.mxu0 0
    %847 = vmatpush2.bf16.msra.mxu0 0
    %848 = vmatprep.mubr.bf16.mxu0 0
    %849 = vmatmul.mubr.bf16.gmra.mxu0 %v764
    %v850 = vpop.f32.mrf.mxu0
    %v851 = vadd.f32 0.0, %v850
    %v852 = vpop.f32.mrf.mxu0
    %v853 = vpop.f32.mrf.mxu0
    %v854 = vadd.f32 0.0, %v853
    %v855 = vpop.f32.mrf.mxu0
    %856 = vmatprep.mubr.bf16.mxu0 0
    %857 = vmatmul.mubr.bf16.gmra.mxu0 %v765
    %v858 = vpop.f32.mrf.mxu0
    %v859 = vadd.f32 0.0, %v858
    %v860 = vpop.f32.mrf.mxu0
    %v861 = vpop.f32.mrf.mxu0
    %v862 = vadd.f32 0.0, %v861
    %v863 = vpop.f32.mrf.mxu0
    %864 = vdwg.mxu0
    %v865 = vadd.f32 %v744, %v851
    %v866 = vadd.f32 %v745, %v854
    %v867 = vadd.f32 %v746, %v859
    %v868 = vadd.f32 %v747, %v862
    %v869 = vld [vmem:[%s0 + $0x4] sm:$0xc]
    %v870 = vld [vmem:[%s0 + $0x8] sm:$0xf]
    %v871 = vld [vmem:[%s0 + $0xc] sm:$0xf]
    %v872 = vld [vmem:[%s0 + $0x10] sm:$0xf]
    %v873 = vld [vmem:[%s0 + $0x14] sm:$0x3]
    %v874 = vld [vmem:[#allocation2 + $0x180] sm:$0xf]
    %v875 = vld [vmem:[#allocation2 + $0x184] sm:$0xf]
    %v876 = vld [vmem:[#allocation2 + $0x188] sm:$0xf]
    %v877 = vld [vmem:[#allocation2 + $0x18c] sm:$0xf]
    %v878 = vld [vmem:[#allocation2 + $0x190] sm:$0xf]
    %v879 = vld [vmem:[#allocation2 + $0x194] sm:$0xf]
    %v880 = vld [vmem:[#allocation2 + $0x198] sm:$0xf]
    %v881 = vld [vmem:[#allocation2 + $0x19c] sm:$0xf]
    %v882 = vld [vmem:[#allocation2 + $0x1a0] sm:$0xf]
    %v883 = vld [vmem:[#allocation2 + $0x1a4] sm:$0xf]
    %v884 = vld [vmem:[#allocation2 + $0x1a8] sm:$0xf]
    %v885 = vld [vmem:[#allocation2 + $0x1ac] sm:$0xf]
    %v886 = vld [vmem:[#allocation2 + $0x1b0] sm:$0xf]
    %v887 = vld [vmem:[#allocation2 + $0x1b4] sm:$0xf]
    %v888 = vld [vmem:[#allocation2 + $0x1b8] sm:$0xf]
    %v889 = vld [vmem:[#allocation2 + $0x1bc] sm:$0xf]
    %v895 = vunpack.c.l.b16 %v869
    %v896 = vunpack.c.l.b16 %v870
    %v897 = vunpack.c.l.b16 %v871
    %v898 = vunpack.c.l.b16 %v872
    %v899 = vunpack.c.l.b16 %v873
    %v900 = vpack.c.b16 %v896, %v895
    %v901 = vpack.c.b16 %v898, %v897
    %v902 = vpack.c.b16 %v899, %v899
    %vm903 = vcmask 1045504
    %v904 = vrot.slane %v900, 2
    %v905 = vrot.slane %v901, 2
    %v906 = vsel %vm903, %v904, %v905
    %v907 = vrot.slane %v902, 2
    %v908 = vsel %vm903, %v905, %v907
    %v927 = vunpack.c.l.b16 %v874
    %v928 = vunpack.c.l.b16 %v875
    %v929 = vunpack.c.l.b16 %v876
    %v930 = vunpack.c.l.b16 %v877
    %v931 = vunpack.c.l.b16 %v878
    %v932 = vunpack.c.l.b16 %v879
    %v933 = vunpack.c.l.b16 %v880
    %v934 = vunpack.c.l.b16 %v881
    %v935 = vunpack.c.l.b16 %v882
    %v936 = vunpack.c.l.b16 %v883
    %v937 = vunpack.c.l.b16 %v884
    %v938 = vunpack.c.l.b16 %v885
    %v939 = vunpack.c.l.b16 %v886
    %v940 = vunpack.c.l.b16 %v887
    %v941 = vunpack.c.l.b16 %v888
    %v942 = vunpack.c.l.b16 %v889
    %v943 = vpack.c.b16 %v928, %v927
    %v944 = vpack.c.b16 %v930, %v929
    %v945 = vpack.c.b16 %v932, %v931
    %v946 = vpack.c.b16 %v934, %v933
    %v947 = vpack.c.b16 %v936, %v935
    %v948 = vpack.c.b16 %v938, %v937
    %v949 = vpack.c.b16 %v940, %v939
    %v950 = vpack.c.b16 %v942, %v941
    %959 = vmatprep.subr.bf16.mxu0 0
    %960 = vmatpush1.bf16.msra.mxu0 %v950
    %961 = vmatprep.subr.bf16.mxu0 0
    %962 = vmatpush1.bf16.msra.mxu0 %v949
    %963 = vmatprep.subr.bf16.mxu0 0
    %964 = vmatpush1.bf16.msra.mxu0 %v948
    %965 = vmatprep.subr.bf16.mxu0 0
    %966 = vmatpush1.bf16.msra.mxu0 %v947
    %967 = vmatprep.subr.bf16.mxu0 0
    %968 = vmatpush1.bf16.msra.mxu0 %v946
    %969 = vmatprep.subr.bf16.mxu0 0
    %970 = vmatpush1.bf16.msra.mxu0 %v945
    %971 = vmatprep.subr.bf16.mxu0 0
    %972 = vmatpush1.bf16.msra.mxu0 %v944
    %973 = vmatprep.subr.bf16.mxu0 0
    %974 = vmatpush1.bf16.msra.mxu0 %v943
    %975 = vmatprep.subr.bf16.mxu0 0
    %976 = vmatpush2.bf16.msra.mxu0 0
    %977 = vmatprep.subr.bf16.mxu0 0
    %978 = vmatpush2.bf16.msra.mxu0 0
    %979 = vmatprep.subr.bf16.mxu0 0
    %980 = vmatpush2.bf16.msra.mxu0 0
    %981 = vmatprep.subr.bf16.mxu0 0
    %982 = vmatpush2.bf16.msra.mxu0 0
    %983 = vmatprep.subr.bf16.mxu0 0
    %984 = vmatpush2.bf16.msra.mxu0 0
    %985 = vmatprep.subr.bf16.mxu0 0
    %986 = vmatpush2.bf16.msra.mxu0 0
    %987 = vmatprep.subr.bf16.mxu0 0
    %988 = vmatpush2.bf16.msra.mxu0 0
    %989 = vmatprep.subr.bf16.mxu0 0
    %990 = vmatpush2.bf16.msra.mxu0 0
    %991 = vmatprep.mubr.bf16.mxu0 0
    %992 = vmatmul.mubr.bf16.gmra.mxu0 %v906
    %v993 = vpop.f32.mrf.mxu0
    %v994 = vadd.f32 0.0, %v993
    %v995 = vpop.f32.mrf.mxu0
    %v996 = vpop.f32.mrf.mxu0
    %v997 = vadd.f32 0.0, %v996
    %v998 = vpop.f32.mrf.mxu0
    %999 = vmatprep.mubr.bf16.mxu0 0
    %1000 = vmatmul.mubr.bf16.gmra.mxu0 %v908
    %v1001 = vpop.f32.mrf.mxu0
    %v1002 = vadd.f32 0.0, %v1001
    %v1003 = vpop.f32.mrf.mxu0
    %v1004 = vpop.f32.mrf.mxu0
    %v1005 = vadd.f32 0.0, %v1004
    %v1006 = vpop.f32.mrf.mxu0
    %1007 = vdwg.mxu0
    %v1008 = vadd.f32 %v865, %v994
    %v1009 = vadd.f32 %v866, %v997
    %v1010 = vadd.f32 %v867, %v1002
    %v1011 = vadd.f32 %v868, %v1005
    %v1012 = vld [vmem:[%s0 + $0x14] sm:$0x7]
    %v1013 = vld [vmem:[#allocation2 + $0x1c0] sm:$0xf]
    %v1014 = vld [vmem:[#allocation2 + $0x1c4] sm:$0xf]
    %v1015 = vld [vmem:[#allocation2 + $0x1c8] sm:$0xf]
    %v1016 = vld [vmem:[#allocation2 + $0x1cc] sm:$0xf]
    %v1017 = vld [vmem:[#allocation2 + $0x1d0] sm:$0xf]
    %v1018 = vld [vmem:[#allocation2 + $0x1d4] sm:$0xf]
    %v1019 = vld [vmem:[#allocation2 + $0x1d8] sm:$0xf]
    %v1020 = vld [vmem:[#allocation2 + $0x1dc] sm:$0xf]
    %v1021 = vld [vmem:[#allocation2 + $0x1e0] sm:$0xf]
    %v1022 = vld [vmem:[#allocation2 + $0x1e4] sm:$0xf]
    %v1023 = vld [vmem:[#allocation2 + $0x1e8] sm:$0xf]
    %v1024 = vld [vmem:[#allocation2 + $0x1ec] sm:$0xf]
    %v1025 = vld [vmem:[#allocation2 + $0x1f0] sm:$0xf]
    %v1026 = vld [vmem:[#allocation2 + $0x1f4] sm:$0xf]
    %v1027 = vld [vmem:[#allocation2 + $0x1f8] sm:$0xf]
    %v1028 = vld [vmem:[#allocation2 + $0x1fc] sm:$0xf]
    %v1030 = vunpack.c.l.b16 %v1012
    %v1031 = vpack.c.b16 %v1030, %v1030
    %vm1032 = vsmask.f32 5376
    %v1034 = vshrl.u32 %v900, 16
    %v1036 = vrot.slane %v1034, 2
    %v1037 = vshll.u32 %v900, 16
    %v1039 = vrot.slane %v1037, 3
    %v1040 = vor.u32 %v1036, %v1039
    %v1042 = vshrl.u32 %v901, 16
    %v1044 = vrot.slane %v1042, 2
    %v1045 = vshll.u32 %v901, 16
    %v1047 = vrot.slane %v1045, 3
    %v1048 = vor.u32 %v1044, %v1047
    %v1049 = vsel %vm1032, %v1040, %v1048
    %v1051 = vshrl.u32 %v1031, 16
    %v1053 = vrot.slane %v1051, 2
    %v1054 = vshll.u32 %v1031, 16
    %v1056 = vrot.slane %v1054, 3
    %v1057 = vor.u32 %v1053, %v1056
    %v1058 = vsel %vm1032, %v1048, %v1057
    %v1077 = vunpack.c.l.b16 %v1013
    %v1078 = vunpack.c.l.b16 %v1014
    %v1079 = vunpack.c.l.b16 %v1015
    %v1080 = vunpack.c.l.b16 %v1016
    %v1081 = vunpack.c.l.b16 %v1017
    %v1082 = vunpack.c.l.b16 %v1018
    %v1083 = vunpack.c.l.b16 %v1019
    %v1084 = vunpack.c.l.b16 %v1020
    %v1085 = vunpack.c.l.b16 %v1021
    %v1086 = vunpack.c.l.b16 %v1022
    %v1087 = vunpack.c.l.b16 %v1023
    %v1088 = vunpack.c.l.b16 %v1024
    %v1089 = vunpack.c.l.b16 %v1025
    %v1090 = vunpack.c.l.b16 %v1026
    %v1091 = vunpack.c.l.b16 %v1027
    %v1092 = vunpack.c.l.b16 %v1028
    %v1093 = vpack.c.b16 %v1078, %v1077
    %v1094 = vpack.c.b16 %v1080, %v1079
    %v1095 = vpack.c.b16 %v1082, %v1081
    %v1096 = vpack.c.b16 %v1084, %v1083
    %v1097 = vpack.c.b16 %v1086, %v1085
    %v1098 = vpack.c.b16 %v1088, %v1087
    %v1099 = vpack.c.b16 %v1090, %v1089
    %v1100 = vpack.c.b16 %v1092, %v1091
    %1109 = vmatprep.subr.bf16.mxu0 0
    %1110 = vmatpush1.bf16.msra.mxu0 %v1100
    %1111 = vmatprep.subr.bf16.mxu0 0
    %1112 = vmatpush1.bf16.msra.mxu0 %v1099
    %1113 = vmatprep.subr.bf16.mxu0 0
    %1114 = vmatpush1.bf16.msra.mxu0 %v1098
    %1115 = vmatprep.subr.bf16.mxu0 0
    %1116 = vmatpush1.bf16.msra.mxu0 %v1097
    %1117 = vmatprep.subr.bf16.mxu0 0
    %1118 = vmatpush1.bf16.msra.mxu0 %v1096
    %1119 = vmatprep.subr.bf16.mxu0 0
    %1120 = vmatpush1.bf16.msra.mxu0 %v1095
    %1121 = vmatprep.subr.bf16.mxu0 0
    %1122 = vmatpush1.bf16.msra.mxu0 %v1094
    %1123 = vmatprep.subr.bf16.mxu0 0
    %1124 = vmatpush1.bf16.msra.mxu0 %v1093
    %1125 = vmatprep.subr.bf16.mxu0 0
    %1126 = vmatpush2.bf16.msra.mxu0 0
    %1127 = vmatprep.subr.bf16.mxu0 0
    %1128 = vmatpush2.bf16.msra.mxu0 0
    %1129 = vmatprep.subr.bf16.mxu0 0
    %1130 = vmatpush2.bf16.msra.mxu0 0
    %1131 = vmatprep.subr.bf16.mxu0 0
    %1132 = vmatpush2.bf16.msra.mxu0 0
    %1133 = vmatprep.subr.bf16.mxu0 0
    %1134 = vmatpush2.bf16.msra.mxu0 0
    %1135 = vmatprep.subr.bf16.mxu0 0
    %1136 = vmatpush2.bf16.msra.mxu0 0
    %1137 = vmatprep.subr.bf16.mxu0 0
    %1138 = vmatpush2.bf16.msra.mxu0 0
    %1139 = vmatprep.subr.bf16.mxu0 0
    %1140 = vmatpush2.bf16.msra.mxu0 0
    %1141 = vmatprep.mubr.bf16.mxu0 0
    %1142 = vmatmul.mubr.bf16.gmra.mxu0 %v1049
    %v1143 = vpop.f32.mrf.mxu0
    %v1144 = vadd.f32 0.0, %v1143
    %v1145 = vpop.f32.mrf.mxu0
    %v1146 = vpop.f32.mrf.mxu0
    %v1147 = vadd.f32 0.0, %v1146
    %v1148 = vpop.f32.mrf.mxu0
    %1149 = vmatprep.mubr.bf16.mxu0 0
    %1150 = vmatmul.mubr.bf16.gmra.mxu0 %v1058
    %v1151 = vpop.f32.mrf.mxu0
    %v1152 = vadd.f32 0.0, %v1151
    %v1153 = vpop.f32.mrf.mxu0
    %v1154 = vpop.f32.mrf.mxu0
    %v1155 = vadd.f32 0.0, %v1154
    %v1156 = vpop.f32.mrf.mxu0
    %1157 = vdwg.mxu0
    %v1158 = vadd.f32 %v1008, %v1144
    %v1159 = vadd.f32 %v1009, %v1147
    %v1160 = vadd.f32 %v1010, %v1152
    %v1161 = vadd.f32 %v1011, %v1155
    %v1162 = vld [vmem:[%s0 + $0x4] sm:$0x8]
    %v1163 = vld [vmem:[#allocation2 + $0x200] sm:$0xf]
    %v1164 = vld [vmem:[#allocation2 + $0x204] sm:$0xf]
    %v1165 = vld [vmem:[#allocation2 + $0x208] sm:$0xf]
    %v1166 = vld [vmem:[#allocation2 + $0x20c] sm:$0xf]
    %v1167 = vld [vmem:[#allocation2 + $0x210] sm:$0xf]
    %v1168 = vld [vmem:[#allocation2 + $0x214] sm:$0xf]
    %v1169 = vld [vmem:[#allocation2 + $0x218] sm:$0xf]
    %v1170 = vld [vmem:[#allocation2 + $0x21c] sm:$0xf]
    %v1171 = vld [vmem:[#allocation2 + $0x220] sm:$0xf]
    %v1172 = vld [vmem:[#allocation2 + $0x224] sm:$0xf]
    %v1173 = vld [vmem:[#allocation2 + $0x228] sm:$0xf]
    %v1174 = vld [vmem:[#allocation2 + $0x22c] sm:$0xf]
    %v1175 = vld [vmem:[#allocation2 + $0x230] sm:$0xf]
    %v1176 = vld [vmem:[#allocation2 + $0x234] sm:$0xf]
    %v1177 = vld [vmem:[#allocation2 + $0x238] sm:$0xf]
    %v1178 = vld [vmem:[#allocation2 + $0x23c] sm:$0xf]
    %v1180 = vunpack.c.l.b16 %v1162
    %v1181 = vpack.c.b16 %v896, %v1180
    %v1182 = vrot.slane %v1181, 3
    %v1183 = vrot.slane %v901, 3
    %v1184 = vsel %vm494, %v1182, %v1183
    %v1185 = vrot.slane %v1031, 3
    %v1186 = vsel %vm494, %v1183, %v1185
    %v1205 = vunpack.c.l.b16 %v1163
    %v1206 = vunpack.c.l.b16 %v1164
    %v1207 = vunpack.c.l.b16 %v1165
    %v1208 = vunpack.c.l.b16 %v1166
    %v1209 = vunpack.c.l.b16 %v1167
    %v1210 = vunpack.c.l.b16 %v1168
    %v1211 = vunpack.c.l.b16 %v1169
    %v1212 = vunpack.c.l.b16 %v1170
    %v1213 = vunpack.c.l.b16 %v1171
    %v1214 = vunpack.c.l.b16 %v1172
    %v1215 = vunpack.c.l.b16 %v1173
    %v1216 = vunpack.c.l.b16 %v1174
    %v1217 = vunpack.c.l.b16 %v1175
    %v1218 = vunpack.c.l.b16 %v1176
    %v1219 = vunpack.c.l.b16 %v1177
    %v1220 = vunpack.c.l.b16 %v1178
    %v1221 = vpack.c.b16 %v1206, %v1205
    %v1222 = vpack.c.b16 %v1208, %v1207
    %v1223 = vpack.c.b16 %v1210, %v1209
    %v1224 = vpack.c.b16 %v1212, %v1211
    %v1225 = vpack.c.b16 %v1214, %v1213
    %v1226 = vpack.c.b16 %v1216, %v1215
    %v1227 = vpack.c.b16 %v1218, %v1217
    %v1228 = vpack.c.b16 %v1220, %v1219
    %1237 = vmatprep.subr.bf16.mxu0 0
    %1238 = vmatpush1.bf16.msra.mxu0 %v1228
    %1239 = vmatprep.subr.bf16.mxu0 0
    %1240 = vmatpush1.bf16.msra.mxu0 %v1227
    %1241 = vmatprep.subr.bf16.mxu0 0
    %1242 = vmatpush1.bf16.msra.mxu0 %v1226
    %1243 = vmatprep.subr.bf16.mxu0 0
    %1244 = vmatpush1.bf16.msra.mxu0 %v1225
    %1245 = vmatprep.subr.bf16.mxu0 0
    %1246 = vmatpush1.bf16.msra.mxu0 %v1224
    %1247 = vmatprep.subr.bf16.mxu0 0
    %1248 = vmatpush1.bf16.msra.mxu0 %v1223
    %1249 = vmatprep.subr.bf16.mxu0 0
    %1250 = vmatpush1.bf16.msra.mxu0 %v1222
    %1251 = vmatprep.subr.bf16.mxu0 0
    %1252 = vmatpush1.bf16.msra.mxu0 %v1221
    %1253 = vmatprep.subr.bf16.mxu0 0
    %1254 = vmatpush2.bf16.msra.mxu0 0
    %1255 = vmatprep.subr.bf16.mxu0 0
    %1256 = vmatpush2.bf16.msra.mxu0 0
    %1257 = vmatprep.subr.bf16.mxu0 0
    %1258 = vmatpush2.bf16.msra.mxu0 0
    %1259 = vmatprep.subr.bf16.mxu0 0
    %1260 = vmatpush2.bf16.msra.mxu0 0
    %1261 = vmatprep.subr.bf16.mxu0 0
    %1262 = vmatpush2.bf16.msra.mxu0 0
    %1263 = vmatprep.subr.bf16.mxu0 0
    %1264 = vmatpush2.bf16.msra.mxu0 0
    %1265 = vmatprep.subr.bf16.mxu0 0
    %1266 = vmatpush2.bf16.msra.mxu0 0
    %1267 = vmatprep.subr.bf16.mxu0 0
    %1268 = vmatpush2.bf16.msra.mxu0 0
    %1269 = vmatprep.mubr.bf16.mxu0 0
    %1270 = vmatmul.mubr.bf16.gmra.mxu0 %v1184
    %v1271 = vpop.f32.mrf.mxu0
    %v1272 = vadd.f32 0.0, %v1271
    %v1273 = vpop.f32.mrf.mxu0
    %v1274 = vpop.f32.mrf.mxu0
    %v1275 = vadd.f32 0.0, %v1274
    %v1276 = vpop.f32.mrf.mxu0
    %1277 = vmatprep.mubr.bf16.mxu0 0
    %1278 = vmatmul.mubr.bf16.gmra.mxu0 %v1186
    %v1279 = vpop.f32.mrf.mxu0
    %v1280 = vadd.f32 0.0, %v1279
    %v1281 = vpop.f32.mrf.mxu0
    %v1282 = vpop.f32.mrf.mxu0
    %v1283 = vadd.f32 0.0, %v1282
    %v1284 = vpop.f32.mrf.mxu0
    %1285 = vdwg.mxu0
    %v1286 = vadd.f32 %v1158, %v1272
    %v1287 = vadd.f32 %v1159, %v1275
    %v1288 = vadd.f32 %v1160, %v1280
    %v1289 = vadd.f32 %v1161, %v1283
    %v1290 = vld [vmem:[#allocation4] sm:$0x1]
    %v1292 = vlaneseq
    %v1293 = vshrl.u32 %v1292, 7
    %v1294 = vsub.s32 0, %v1293
    %v1295 = vrot.slane %v1290, %v1294
    %v1297 = vadd.f32 %v1286, %v1295
    %v1298 = vadd.f32 %v1287, %v1295
    %v1299 = vadd.f32 %v1288, %v1295
    %v1300 = vadd.f32 %v1289, %v1295
    %v1301 = vmax.f32 %v1297, 0.0
    %v1302 = vmax.f32 %v1298, 0.0
    %v1303 = vmax.f32 %v1299, 0.0
    %v1304 = vmax.f32 %v1300, 0.0
    %v1305 = vpack.c.bf16 %v1302, %v1301
    %v1306 = vpack.c.bf16 %v1304, %v1303
    %v1307 = vld [vmem:[#allocation6] sm:$0xff]
    %v1308 = vld [vmem:[#allocation6 + $0x8] sm:$0xff]
    %v1309 = vld [vmem:[#allocation6 + $0x10] sm:$0xff]
    %v1310 = vld [vmem:[#allocation6 + $0x18] sm:$0xff]
    %v1311 = vld [vmem:[#allocation6 + $0x20] sm:$0xff]
    %v1312 = vld [vmem:[#allocation6 + $0x28] sm:$0xff]
    %v1313 = vld [vmem:[#allocation6 + $0x30] sm:$0xff]
    %v1314 = vld [vmem:[#allocation6 + $0x38] sm:$0xff]
    %v1315 = vld [vmem:[#allocation6 + $0x40] sm:$0xff]
    %v1316 = vld [vmem:[#allocation6 + $0x48] sm:$0xff]
    %v1317 = vld [vmem:[#allocation6 + $0x50] sm:$0xff]
    %v1318 = vld [vmem:[#allocation6 + $0x58] sm:$0xff]
    %v1319 = vld [vmem:[#allocation6 + $0x60] sm:$0xff]
    %v1320 = vld [vmem:[#allocation6 + $0x68] sm:$0xff]
    %v1321 = vld [vmem:[#allocation6 + $0x70] sm:$0xff]
    %v1322 = vld [vmem:[#allocation6 + $0x78] sm:$0xff]
    %v1323 = vld [vmem:[#allocation6 + $0x80] sm:$0xff]
    %v1324 = vld [vmem:[#allocation6 + $0x88] sm:$0xff]
    %v1325 = vld [vmem:[#allocation6 + $0x90] sm:$0xff]
    %v1326 = vld [vmem:[#allocation6 + $0x98] sm:$0xff]
    %v1327 = vld [vmem:[#allocation6 + $0xa0] sm:$0xff]
    %v1328 = vld [vmem:[#allocation6 + $0xa8] sm:$0xff]
    %v1329 = vld [vmem:[#allocation6 + $0xb0] sm:$0xff]
    %v1330 = vld [vmem:[#allocation6 + $0xb8] sm:$0xff]
    %v1331 = vld [vmem:[#allocation6 + $0xc0] sm:$0xff]
    %v1332 = vld [vmem:[#allocation6 + $0xc8] sm:$0xff]
    %v1333 = vld [vmem:[#allocation6 + $0xd0] sm:$0xff]
    %v1334 = vld [vmem:[#allocation6 + $0xd8] sm:$0xff]
    %v1335 = vld [vmem:[#allocation6 + $0xe0] sm:$0xff]
    %v1336 = vld [vmem:[#allocation6 + $0xe8] sm:$0xff]
    %v1337 = vld [vmem:[#allocation6 + $0xf0] sm:$0xff]
    %v1338 = vld [vmem:[#allocation6 + $0xf8] sm:$0xff]
    %v1339 = vld [vmem:[#allocation6 + $0x100] sm:$0xff]
    %v1340 = vld [vmem:[#allocation6 + $0x108] sm:$0xff]
    %v1341 = vld [vmem:[#allocation6 + $0x110] sm:$0xff]
    %v1342 = vld [vmem:[#allocation6 + $0x118] sm:$0xff]
    %v1343 = vld [vmem:[#allocation6 + $0x120] sm:$0xff]
    %v1344 = vld [vmem:[#allocation6 + $0x128] sm:$0xff]
    %v1345 = vld [vmem:[#allocation6 + $0x130] sm:$0xff]
    %v1346 = vld [vmem:[#allocation6 + $0x138] sm:$0xff]
    %v1347 = vld [vmem:[#allocation6 + $0x140] sm:$0xff]
    %v1348 = vld [vmem:[#allocation6 + $0x148] sm:$0xff]
    %v1349 = vld [vmem:[#allocation6 + $0x150] sm:$0xff]
    %v1350 = vld [vmem:[#allocation6 + $0x158] sm:$0xff]
    %v1351 = vld [vmem:[#allocation6 + $0x160] sm:$0xff]
    %v1352 = vld [vmem:[#allocation6 + $0x168] sm:$0xff]
    %v1353 = vld [vmem:[#allocation6 + $0x170] sm:$0xff]
    %v1354 = vld [vmem:[#allocation6 + $0x178] sm:$0xff]
    %v1355 = vld [vmem:[#allocation7] sm:$0x3f]
    %v1357 = vlaneseq
    %v1358 = vshrl.u32 %v1357, 7
    %v1359 = vsub.s32 0, %v1358
    %v1360 = vrot.slane %v1355, %v1359
    %v1361 = vlaneseq
    %v1362 = vshrl.u32 %v1361, 7
    %v1363 = vsub.s32 1, %v1362
    %v1364 = vrot.slane %v1355, %v1363
    %v1365 = vlaneseq
    %v1366 = vshrl.u32 %v1365, 7
    %v1367 = vsub.s32 2, %v1366
    %v1368 = vrot.slane %v1355, %v1367
    %v1369 = vlaneseq
    %v1370 = vshrl.u32 %v1369, 7
    %v1371 = vsub.s32 3, %v1370
    %v1372 = vrot.slane %v1355, %v1371
    %v1373 = vlaneseq
    %v1374 = vshrl.u32 %v1373, 7
    %v1375 = vsub.s32 4, %v1374
    %v1376 = vrot.slane %v1355, %v1375
    %v1377 = vlaneseq
    %v1378 = vshrl.u32 %v1377, 7
    %v1379 = vsub.s32 5, %v1378
    %v1380 = vrot.slane %v1355, %v1379
    %v1435 = vunpack.c.l.b16 %v1307
    %v1436 = vunpack.c.h.b16 %v1307
    %v1437 = vunpack.c.l.b16 %v1308
    %v1438 = vunpack.c.h.b16 %v1308
    %v1439 = vunpack.c.l.b16 %v1309
    %v1440 = vunpack.c.h.b16 %v1309
    %v1441 = vunpack.c.l.b16 %v1310
    %v1442 = vunpack.c.h.b16 %v1310
    %v1443 = vunpack.c.l.b16 %v1311
    %v1444 = vunpack.c.h.b16 %v1311
    %v1445 = vunpack.c.l.b16 %v1312
    %v1446 = vunpack.c.h.b16 %v1312
    %v1447 = vunpack.c.l.b16 %v1313
    %v1448 = vunpack.c.h.b16 %v1313
    %v1449 = vunpack.c.l.b16 %v1314
    %v1450 = vunpack.c.h.b16 %v1314
    %v1451 = vunpack.c.l.b16 %v1315
    %v1452 = vunpack.c.h.b16 %v1315
    %v1453 = vunpack.c.l.b16 %v1316
    %v1454 = vunpack.c.h.b16 %v1316
    %v1455 = vunpack.c.l.b16 %v1317
    %v1456 = vunpack.c.h.b16 %v1317
    %v1457 = vunpack.c.l.b16 %v1318
    %v1458 = vunpack.c.h.b16 %v1318
    %v1459 = vunpack.c.l.b16 %v1319
    %v1460 = vunpack.c.h.b16 %v1319
    %v1461 = vunpack.c.l.b16 %v1320
    %v1462 = vunpack.c.h.b16 %v1320
    %v1463 = vunpack.c.l.b16 %v1321
    %v1464 = vunpack.c.h.b16 %v1321
    %v1465 = vunpack.c.l.b16 %v1322
    %v1466 = vunpack.c.h.b16 %v1322
    %v1467 = vunpack.c.l.b16 %v1323
    %v1468 = vunpack.c.h.b16 %v1323
    %v1469 = vunpack.c.l.b16 %v1324
    %v1470 = vunpack.c.h.b16 %v1324
    %v1471 = vunpack.c.l.b16 %v1325
    %v1472 = vunpack.c.h.b16 %v1325
    %v1473 = vunpack.c.l.b16 %v1326
    %v1474 = vunpack.c.h.b16 %v1326
    %v1475 = vunpack.c.l.b16 %v1327
    %v1476 = vunpack.c.h.b16 %v1327
    %v1477 = vunpack.c.l.b16 %v1328
    %v1478 = vunpack.c.h.b16 %v1328
    %v1479 = vunpack.c.l.b16 %v1329
    %v1480 = vunpack.c.h.b16 %v1329
    %v1481 = vunpack.c.l.b16 %v1330
    %v1482 = vunpack.c.h.b16 %v1330
    %v1483 = vunpack.c.l.b16 %v1331
    %v1484 = vunpack.c.h.b16 %v1331
    %v1485 = vunpack.c.l.b16 %v1332
    %v1486 = vunpack.c.h.b16 %v1332
    %v1487 = vunpack.c.l.b16 %v1333
    %v1488 = vunpack.c.h.b16 %v1333
    %v1489 = vunpack.c.l.b16 %v1334
    %v1490 = vunpack.c.h.b16 %v1334
    %v1491 = vunpack.c.l.b16 %v1335
    %v1492 = vunpack.c.h.b16 %v1335
    %v1493 = vunpack.c.l.b16 %v1336
    %v1494 = vunpack.c.h.b16 %v1336
    %v1495 = vunpack.c.l.b16 %v1337
    %v1496 = vunpack.c.h.b16 %v1337
    %v1497 = vunpack.c.l.b16 %v1338
    %v1498 = vunpack.c.h.b16 %v1338
    %v1499 = vunpack.c.l.b16 %v1339
    %v1500 = vunpack.c.h.b16 %v1339
    %v1501 = vunpack.c.l.b16 %v1340
    %v1502 = vunpack.c.h.b16 %v1340
    %v1503 = vunpack.c.l.b16 %v1341
    %v1504 = vunpack.c.h.b16 %v1341
    %v1505 = vunpack.c.l.b16 %v1342
    %v1506 = vunpack.c.h.b16 %v1342
    %v1507 = vunpack.c.l.b16 %v1343
    %v1508 = vunpack.c.h.b16 %v1343
    %v1509 = vunpack.c.l.b16 %v1344
    %v1510 = vunpack.c.h.b16 %v1344
    %v1511 = vunpack.c.l.b16 %v1345
    %v1512 = vunpack.c.h.b16 %v1345
    %v1513 = vunpack.c.l.b16 %v1346
    %v1514 = vunpack.c.h.b16 %v1346
    %v1515 = vunpack.c.l.b16 %v1347
    %v1516 = vunpack.c.h.b16 %v1347
    %v1517 = vunpack.c.l.b16 %v1348
    %v1518 = vunpack.c.h.b16 %v1348
    %v1519 = vunpack.c.l.b16 %v1349
    %v1520 = vunpack.c.h.b16 %v1349
    %v1521 = vunpack.c.l.b16 %v1350
    %v1522 = vunpack.c.h.b16 %v1350
    %v1523 = vunpack.c.l.b16 %v1351
    %v1524 = vunpack.c.h.b16 %v1351
    %v1525 = vunpack.c.l.b16 %v1352
    %v1526 = vunpack.c.h.b16 %v1352
    %v1527 = vunpack.c.l.b16 %v1353
    %v1528 = vunpack.c.h.b16 %v1353
    %v1529 = vunpack.c.l.b16 %v1354
    %v1530 = vunpack.c.h.b16 %v1354
    %v1531 = vpack.c.b16 %v1441, %v1435
    %v1532 = vpack.c.b16 %v1442, %v1436
    %v1533 = vpack.c.b16 %v1443, %v1437
    %v1534 = vpack.c.b16 %v1444, %v1438
    %v1535 = vpack.c.b16 %v1445, %v1439
    %v1536 = vpack.c.b16 %v1446, %v1440
    %v1537 = vpack.c.b16 %v1453, %v1447
    %v1538 = vpack.c.b16 %v1454, %v1448
    %v1539 = vpack.c.b16 %v1455, %v1449
    %v1540 = vpack.c.b16 %v1456, %v1450
    %v1541 = vpack.c.b16 %v1457, %v1451
    %v1542 = vpack.c.b16 %v1458, %v1452
    %v1543 = vpack.c.b16 %v1465, %v1459
    %v1544 = vpack.c.b16 %v1466, %v1460
    %v1545 = vpack.c.b16 %v1467, %v1461
    %v1546 = vpack.c.b16 %v1468, %v1462
    %v1547 = vpack.c.b16 %v1469, %v1463
    %v1548 = vpack.c.b16 %v1470, %v1464
    %v1549 = vpack.c.b16 %v1477, %v1471
    %v1550 = vpack.c.b16 %v1478, %v1472
    %v1551 = vpack.c.b16 %v1479, %v1473
    %v1552 = vpack.c.b16 %v1480, %v1474
    %v1553 = vpack.c.b16 %v1481, %v1475
    %v1554 = vpack.c.b16 %v1482, %v1476
    %v1555 = vpack.c.b16 %v1489, %v1483
    %v1556 = vpack.c.b16 %v1490, %v1484
    %v1557 = vpack.c.b16 %v1491, %v1485
    %v1558 = vpack.c.b16 %v1492, %v1486
    %v1559 = vpack.c.b16 %v1493, %v1487
    %v1560 = vpack.c.b16 %v1494, %v1488
    %v1561 = vpack.c.b16 %v1501, %v1495
    %v1562 = vpack.c.b16 %v1502, %v1496
    %v1563 = vpack.c.b16 %v1503, %v1497
    %v1564 = vpack.c.b16 %v1504, %v1498
    %v1565 = vpack.c.b16 %v1505, %v1499
    %v1566 = vpack.c.b16 %v1506, %v1500
    %v1567 = vpack.c.b16 %v1513, %v1507
    %v1568 = vpack.c.b16 %v1514, %v1508
    %v1569 = vpack.c.b16 %v1515, %v1509
    %v1570 = vpack.c.b16 %v1516, %v1510
    %v1571 = vpack.c.b16 %v1517, %v1511
    %v1572 = vpack.c.b16 %v1518, %v1512
    %v1573 = vpack.c.b16 %v1525, %v1519
    %v1574 = vpack.c.b16 %v1526, %v1520
    %v1575 = vpack.c.b16 %v1527, %v1521
    %v1576 = vpack.c.b16 %v1528, %v1522
    %v1577 = vpack.c.b16 %v1529, %v1523
    %v1578 = vpack.c.b16 %v1530, %v1524
    %1627 = vmatprep.subr.bf16.mxu0 %v1574
    %1628 = vmatpush1.bf16.msra.mxu0 %v1573
    %1629 = vmatprep.subr.bf16.mxu0 %v1568
    %1630 = vmatpush1.bf16.msra.mxu0 %v1567
    %1631 = vmatprep.subr.bf16.mxu0 %v1562
    %1632 = vmatpush1.bf16.msra.mxu0 %v1561
    %1633 = vmatprep.subr.bf16.mxu0 %v1556
    %1634 = vmatpush1.bf16.msra.mxu0 %v1555
    %1635 = vmatprep.subr.bf16.mxu0 %v1550
    %1636 = vmatpush1.bf16.msra.mxu0 %v1549
    %1637 = vmatprep.subr.bf16.mxu0 %v1544
    %1638 = vmatpush1.bf16.msra.mxu0 %v1543
    %1639 = vmatprep.subr.bf16.mxu0 %v1538
    %1640 = vmatpush1.bf16.msra.mxu0 %v1537
    %1641 = vmatprep.subr.bf16.mxu0 %v1532
    %1642 = vmatpush1.bf16.msra.mxu0 %v1531
    %1643 = vmatprep.subr.bf16.mxu0 0
    %1644 = vmatpush2.bf16.msra.mxu0 0
    %1645 = vmatprep.subr.bf16.mxu0 0
    %1646 = vmatpush2.bf16.msra.mxu0 0
    %1647 = vmatprep.subr.bf16.mxu0 0
    %1648 = vmatpush2.bf16.msra.mxu0 0
    %1649 = vmatprep.subr.bf16.mxu0 0
    %1650 = vmatpush2.bf16.msra.mxu0 0
    %1651 = vmatprep.subr.bf16.mxu0 0
    %1652 = vmatpush2.bf16.msra.mxu0 0
    %1653 = vmatprep.subr.bf16.mxu0 0
    %1654 = vmatpush2.bf16.msra.mxu0 0
    %1655 = vmatprep.subr.bf16.mxu0 0
    %1656 = vmatpush2.bf16.msra.mxu0 0
    %1657 = vmatprep.subr.bf16.mxu0 0
    %1658 = vmatpush2.bf16.msra.mxu0 0
    %1659 = vmatprep.mubr.bf16.mxu0 0
    %1660 = vmatmul.mubr.bf16.gmra.mxu0 %v1305
    %v1661 = vpop.f32.mrf.mxu0
    %v1662 = vadd.f32 %v1360, %v1661
    %v1663 = vpop.f32.mrf.mxu0
    %v1664 = vadd.f32 %v1364, %v1663
    %v1665 = vpop.f32.mrf.mxu0
    %v1666 = vadd.f32 %v1360, %v1665
    %v1667 = vpop.f32.mrf.mxu0
    %v1668 = vadd.f32 %v1364, %v1667
    %1669 = vmatprep.mubr.bf16.mxu0 0
    %1670 = vmatmul.mubr.bf16.gmra.mxu0 %v1306
    %v1671 = vpop.f32.mrf.mxu0
    %v1672 = vadd.f32 %v1360, %v1671
    %v1673 = vpop.f32.mrf.mxu0
    %v1674 = vadd.f32 %v1364, %v1673
    %v1675 = vpop.f32.mrf.mxu0
    %v1676 = vadd.f32 %v1360, %v1675
    %v1677 = vpop.f32.mrf.mxu0
    %v1678 = vadd.f32 %v1364, %v1677
    %1679 = vdwg.mxu0
    %1680 = vmatprep.subr.bf16.mxu0 %v1576
    %1681 = vmatpush1.bf16.msra.mxu0 %v1575
    %1682 = vmatprep.subr.bf16.mxu0 %v1570
    %1683 = vmatpush1.bf16.msra.mxu0 %v1569
    %1684 = vmatprep.subr.bf16.mxu0 %v1564
    %1685 = vmatpush1.bf16.msra.mxu0 %v1563
    %1686 = vmatprep.subr.bf16.mxu0 %v1558
    %1687 = vmatpush1.bf16.msra.mxu0 %v1557
    %1688 = vmatprep.subr.bf16.mxu0 %v1552
    %1689 = vmatpush1.bf16.msra.mxu0 %v1551
    %1690 = vmatprep.subr.bf16.mxu0 %v1546
    %1691 = vmatpush1.bf16.msra.mxu0 %v1545
    %1692 = vmatprep.subr.bf16.mxu0 %v1540
    %1693 = vmatpush1.bf16.msra.mxu0 %v1539
    %1694 = vmatprep.subr.bf16.mxu0 %v1534
    %1695 = vmatpush1.bf16.msra.mxu0 %v1533
    %1696 = vmatprep.subr.bf16.mxu0 0
    %1697 = vmatpush2.bf16.msra.mxu0 0
    %1698 = vmatprep.subr.bf16.mxu0 0
    %1699 = vmatpush2.bf16.msra.mxu0 0
    %1700 = vmatprep.subr.bf16.mxu0 0
    %1701 = vmatpush2.bf16.msra.mxu0 0
    %1702 = vmatprep.subr.bf16.mxu0 0
    %1703 = vmatpush2.bf16.msra.mxu0 0
    %1704 = vmatprep.subr.bf16.mxu0 0
    %1705 = vmatpush2.bf16.msra.mxu0 0
    %1706 = vmatprep.subr.bf16.mxu0 0
    %1707 = vmatpush2.bf16.msra.mxu0 0
    %1708 = vmatprep.subr.bf16.mxu0 0
    %1709 = vmatpush2.bf16.msra.mxu0 0
    %1710 = vmatprep.subr.bf16.mxu0 0
    %1711 = vmatpush2.bf16.msra.mxu0 0
    %1712 = vmatprep.mubr.bf16.mxu0 0
    %1713 = vmatmul.mubr.bf16.gmra.mxu0 %v1305
    %v1714 = vpop.f32.mrf.mxu0
    %v1715 = vadd.f32 %v1368, %v1714
    %v1716 = vpop.f32.mrf.mxu0
    %v1717 = vadd.f32 %v1372, %v1716
    %v1718 = vpop.f32.mrf.mxu0
    %v1719 = vadd.f32 %v1368, %v1718
    %v1720 = vpop.f32.mrf.mxu0
    %v1721 = vadd.f32 %v1372, %v1720
    %1722 = vmatprep.mubr.bf16.mxu0 0
    %1723 = vmatmul.mubr.bf16.gmra.mxu0 %v1306
    %v1724 = vpop.f32.mrf.mxu0
    %v1725 = vadd.f32 %v1368, %v1724
    %v1726 = vpop.f32.mrf.mxu0
    %v1727 = vadd.f32 %v1372, %v1726
    %v1728 = vpop.f32.mrf.mxu0
    %v1729 = vadd.f32 %v1368, %v1728
    %v1730 = vpop.f32.mrf.mxu0
    %v1731 = vadd.f32 %v1372, %v1730
    %1732 = vdwg.mxu0
    %1733 = vmatprep.subr.bf16.mxu0 %v1578
    %1734 = vmatpush1.bf16.msra.mxu0 %v1577
    %1735 = vmatprep.subr.bf16.mxu0 %v1572
    %1736 = vmatpush1.bf16.msra.mxu0 %v1571
    %1737 = vmatprep.subr.bf16.mxu0 %v1566
    %1738 = vmatpush1.bf16.msra.mxu0 %v1565
    %1739 = vmatprep.subr.bf16.mxu0 %v1560
    %1740 = vmatpush1.bf16.msra.mxu0 %v1559
    %1741 = vmatprep.subr.bf16.mxu0 %v1554
    %1742 = vmatpush1.bf16.msra.mxu0 %v1553
    %1743 = vmatprep.subr.bf16.mxu0 %v1548
    %1744 = vmatpush1.bf16.msra.mxu0 %v1547
    %1745 = vmatprep.subr.bf16.mxu0 %v1542
    %1746 = vmatpush1.bf16.msra.mxu0 %v1541
    %1747 = vmatprep.subr.bf16.mxu0 %v1536
    %1748 = vmatpush1.bf16.msra.mxu0 %v1535
    %1749 = vmatprep.subr.bf16.mxu0 0
    %1750 = vmatpush2.bf16.msra.mxu0 0
    %1751 = vmatprep.subr.bf16.mxu0 0
    %1752 = vmatpush2.bf16.msra.mxu0 0
    %1753 = vmatprep.subr.bf16.mxu0 0
    %1754 = vmatpush2.bf16.msra.mxu0 0
    %1755 = vmatprep.subr.bf16.mxu0 0
    %1756 = vmatpush2.bf16.msra.mxu0 0
    %1757 = vmatprep.subr.bf16.mxu0 0
    %1758 = vmatpush2.bf16.msra.mxu0 0
    %1759 = vmatprep.subr.bf16.mxu0 0
    %1760 = vmatpush2.bf16.msra.mxu0 0
    %1761 = vmatprep.subr.bf16.mxu0 0
    %1762 = vmatpush2.bf16.msra.mxu0 0
    %1763 = vmatprep.subr.bf16.mxu0 0
    %1764 = vmatpush2.bf16.msra.mxu0 0
    %1765 = vmatprep.mubr.bf16.mxu0 0
    %1766 = vmatmul.mubr.bf16.gmra.mxu0 %v1305
    %v1767 = vpop.f32.mrf.mxu0
    %v1768 = vadd.f32 %v1376, %v1767
    %v1769 = vpop.f32.mrf.mxu0
    %v1770 = vadd.f32 %v1380, %v1769
    %v1771 = vpop.f32.mrf.mxu0
    %v1772 = vadd.f32 %v1376, %v1771
    %v1773 = vpop.f32.mrf.mxu0
    %v1774 = vadd.f32 %v1380, %v1773
    %1775 = vmatprep.mubr.bf16.mxu0 0
    %1776 = vmatmul.mubr.bf16.gmra.mxu0 %v1306
    %v1777 = vpop.f32.mrf.mxu0
    %v1778 = vadd.f32 %v1376, %v1777
    %v1779 = vpop.f32.mrf.mxu0
    %v1780 = vadd.f32 %v1380, %v1779
    %v1781 = vpop.f32.mrf.mxu0
    %v1782 = vadd.f32 %v1376, %v1781
    %v1783 = vpop.f32.mrf.mxu0
    %v1784 = vadd.f32 %v1380, %v1783
    %1785 = vdwg.mxu0
    %1786 = vst [vmem:[%s5] sm:$0xff] %v1662
    %1787 = vst [vmem:[%s5 + $0x8] sm:$0xff] %v1664
    %1788 = vst [vmem:[%s5 + $0x10] sm:$0xff] %v1715
    %1789 = vst [vmem:[%s5 + $0x18] sm:$0xff] %v1717
    %1790 = vst [vmem:[%s5 + $0x20] sm:$0xff] %v1768
    %1791 = vst [vmem:[%s5 + $0x28] sm:$0xff] %v1770
    %1792 = vst [vmem:[%s5 + $0x30] sm:$0xff] %v1666
    %1793 = vst [vmem:[%s5 + $0x38] sm:$0xff] %v1668
    %1794 = vst [vmem:[%s5 + $0x40] sm:$0xff] %v1719
    %1795 = vst [vmem:[%s5 + $0x48] sm:$0xff] %v1721
    %1796 = vst [vmem:[%s5 + $0x50] sm:$0xff] %v1772
    %1797 = vst [vmem:[%s5 + $0x58] sm:$0xff] %v1774
    %1798 = vst [vmem:[%s5 + $0x60] sm:$0xff] %v1672
    %1799 = vst [vmem:[%s5 + $0x68] sm:$0xff] %v1674
    %1800 = vst [vmem:[%s5 + $0x70] sm:$0xff] %v1725
    %1801 = vst [vmem:[%s5 + $0x78] sm:$0xff] %v1727
    %1802 = vst [vmem:[%s5 + $0x80] sm:$0xff] %v1778
    %1803 = vst [vmem:[%s5 + $0x88] sm:$0xff] %v1780
    %1804 = vst [vmem:[%s5 + $0x90] sm:$0xff] %v1676
    %1805 = vst [vmem:[%s5 + $0x98] sm:$0xff] %v1678
    %1806 = vst [vmem:[%s5 + $0xa0] sm:$0xff] %v1729
    %1807 = vst [vmem:[%s5 + $0xa8] sm:$0xff] %v1731
    %1808 = vst [vmem:[%s5 + $0xb0] sm:$0xff] %v1782
    %1809 = vst [vmem:[%s5 + $0xb8] sm:$0xff] %v1784
    // Predicated region
    $region38: #{_lambda_.5} parent=1 // pred_check
      _
    $region39: #{_lambda_.5} parent=1 // pred_check_branch
      %1811 = sbr.rel (0) target = $region41
    $region40: #{_lambda_.5} parent=1 // pred_region
      _
    $region41: #{_lambda_.5} parent=1 // pred_fallthru
      _
    // Predicated region
    $region42: #{_lambda_.5} parent=1 // pred_check
      _
    $region43: #{_lambda_.5} parent=1 // pred_check_branch
      %1813 = sbr.rel (0) target = $region45
    $region44: #{_lambda_.5} parent=1 // pred_region
      _
    $region45: #{_lambda_.5} parent=1 // pred_fallthru
      _
    %1814 = vsyncpa [#allocation3], 1
    %1815 = vsyncpa [#allocation5], 1
    %1816 = vsyncpa [#allocation8], 1

// kernel: _lambda_.7
$region0: #{_lambda_.7}
  #allocation0 [shape = 'u32[]', space=smem, size = 0x4, offset = 0x4, fixed_abs, tag = 'smem constant byte address 0x4 - core index']
  #allocation1 [shape = 'u32[144,128]{1,0:T(1,128)}', space=vmem, size = 0x12000, scoped, tag = 'internal scratch']
  #allocation2 [shape = 'f32[16,128]{1,0:T(8,128)}', space=vmem, size = 0x2000, scoped, tag = 'scratch operand']
  %s0 = inlined_call_operand.vmem [shape: bf16[16,25088], index: 0, kind: input, shape index: {}]
  %s1 = inlined_call_operand.vmem [shape: bf16[25088,128], index: 1, kind: input, shape index: {}]
  %s2 = inlined_call_operand.vmem [shape: f32[1,128], index: 2, kind: input, shape index: {}]
  %s3 = inlined_call_operand.vmem [shape: bf16[128,128], index: 3, kind: input, shape index: {}]
  %s4 = inlined_call_operand.vmem [shape: f32[1,128], index: 4, kind: input, shape index: {}]
  %s5 = inlined_call_operand.vmem [shape: f32[16,128], index: 5, kind: output, shape index: {}]
  %s6 = sld [smem:[#allocation0]]
  $region84: #{_lambda_.7} parent=0
    _
  %s8 = ssub.s32 1, %s6
  %s9 = scalar_select 0, %s8, %s6
  $region1: #{_lambda_.7} parent=0
    #allocation3 [shape = 'u8[114688]{0}', space=vmem, size = 0x1c000, scoped, tag = 'input window, operand 0']
    loop: start=0, step=1, limit=16
    $region2: #{_lambda_.7} parent=1 // loop_pre_header
      _
    $region3: #{_lambda_.7} parent=1 // loop_header
      %s11 = sphi 0, %s15
      %p12 = scmp.ge.s32.totalorder %s11, 16
      %s21 = sphi 0, %s23
      %s24 = sphi 0, %s21
      %s25 = sphi 0, %s24
      %s41 = sphi 0, %s25
      %s47 = sphi 0, %s49
      %s50 = sphi 0, %s47
      %s51 = sphi 0, %s50
      %s67 = sphi 0, %s51
      %s71 = sphi 0, %s71
      %s73 = sphi 0, %s71
      %s74 = sphi 0, %s73
      %s88 = sphi 0, %s74
      %s92 = sphi 0, %s92
      %s94 = sphi 0, %s92
      %s95 = sphi 0, %s94
      %s109 = sphi 0, %s95
      %s113 = sphi 0, %s113
      %s115 = sphi 0, %s113
      %s116 = sphi 0, %s115
      %s130 = sphi 0, %s116
      %s134 = sphi 0, %s134
      %s136 = sphi 0, %s134
      %s137 = sphi 0, %s136
      %s151 = sphi 0, %s137
    $region4: #{_lambda_.7} parent=1 // loop_header_branch
      %14 = sbr.rel (%p12) target = $region8
    $region5: #{_lambda_.7} parent=1 // loop_body
      %s16 = ssub.s32 %s11, 1
      %s17 = ssub.s32 %s11, 2
      %s18 = sadd.s32 %s11, 1
      %s19 = ssub.s32 %s11, %s18
      %p20 = scmp.eq.s32.totalorder %s19, 0
      %s22 = sadd.s32 %s21, 1
      %s23 = scalar_select %p20, %s21, %s22
      %p26 = pneg %p20
      %p27 = scmp.eq.s32.totalorder %s11, 13
      %p28 = por %p26, %p27
      %p29 = scmp.ne.s32.totalorder %s21, %s24
      %p30 = scmp.eq.s32.totalorder %s11, 0
      %p31 = por %p29, %p30
      %p32 = scmp.ne.s32.totalorder %s21, %s24
      %p33 = scmp.eq.s32.totalorder %s16, 13
      %p34 = por %p32, %p33
      %p35 = scmp.ne.s32.totalorder %s24, %s25
      %p36 = scmp.eq.s32.totalorder %s16, 0
      %p37 = por %p35, %p36
      %p38 = scmp.ne.s32.totalorder %s24, %s25
      %p39 = scmp.eq.s32.totalorder %s17, 13
      %p40 = por %p38, %p39
      %p42 = scmp.ne.s32.totalorder %s25, %s41
      %p43 = scmp.eq.s32.totalorder %s17, 0
      %p44 = por %p42, %p43
      %s45 = ssub.s32 %s11, %s18
      %p46 = scmp.eq.s32.totalorder %s45, 0
      %s48 = sadd.s32 %s47, 1
      %s49 = scalar_select %p46, %s47, %s48
      %p52 = pneg %p46
      %p53 = scmp.eq.s32.totalorder %s11, 13
      %p54 = por %p52, %p53
      %p55 = scmp.ne.s32.totalorder %s47, %s50
      %p56 = scmp.eq.s32.totalorder %s11, 0
      %p57 = por %p55, %p56
      %p58 = scmp.ne.s32.totalorder %s47, %s50
      %p59 = scmp.eq.s32.totalorder %s16, 13
      %p60 = por %p58, %p59
      %p61 = scmp.ne.s32.totalorder %s50, %s51
      %p62 = scmp.eq.s32.totalorder %s16, 0
      %p63 = por %p61, %p62
      %p64 = scmp.ne.s32.totalorder %s50, %s51
      %p65 = scmp.eq.s32.totalorder %s17, 13
      %p66 = por %p64, %p65
      %p68 = scmp.ne.s32.totalorder %s51, %s67
      %p69 = scmp.eq.s32.totalorder %s17, 0
      %p70 = por %p68, %p69
      %s72 = sadd.s32 %s71, 1
      %p75 = scmp.eq.s32.totalorder %s11, 13
      %p76 = scmp.ne.s32.totalorder %s71, %s73
      %p77 = scmp.eq.s32.totalorder %s11, 0
      %p78 = por %p76, %p77
      %p79 = scmp.ne.s32.totalorder %s71, %s73
      %p80 = scmp.eq.s32.totalorder %s16, 13
      %p81 = por %p79, %p80
      %p82 = scmp.ne.s32.totalorder %s73, %s74
      %p83 = scmp.eq.s32.totalorder %s16, 0
      %p84 = por %p82, %p83
      %p85 = scmp.ne.s32.totalorder %s73, %s74
      %p86 = scmp.eq.s32.totalorder %s17, 13
      %p87 = por %p85, %p86
      %p89 = scmp.ne.s32.totalorder %s74, %s88
      %p90 = scmp.eq.s32.totalorder %s17, 0
      %p91 = por %p89, %p90
      %s93 = sadd.s32 %s92, 1
      %p96 = scmp.eq.s32.totalorder %s11, 13
      %p97 = scmp.ne.s32.totalorder %s92, %s94
      %p98 = scmp.eq.s32.totalorder %s11, 0
      %p99 = por %p97, %p98
      %p100 = scmp.ne.s32.totalorder %s92, %s94
      %p101 = scmp.eq.s32.totalorder %s16, 13
      %p102 = por %p100, %p101
      %p103 = scmp.ne.s32.totalorder %s94, %s95
      %p104 = scmp.eq.s32.totalorder %s16, 0
      %p105 = por %p103, %p104
      %p106 = scmp.ne.s32.totalorder %s94, %s95
      %p107 = scmp.eq.s32.totalorder %s17, 13
      %p108 = por %p106, %p107
      %p110 = scmp.ne.s32.totalorder %s95, %s109
      %p111 = scmp.eq.s32.totalorder %s17, 0
      %p112 = por %p110, %p111
      %s114 = sadd.s32 %s113, 1
      %p117 = scmp.eq.s32.totalorder %s11, 13
      %p118 = scmp.ne.s32.totalorder %s113, %s115
      %p119 = scmp.eq.s32.totalorder %s11, 0
      %p120 = por %p118, %p119
      %p121 = scmp.ne.s32.totalorder %s113, %s115
      %p122 = scmp.eq.s32.totalorder %s16, 13
      %p123 = por %p121, %p122
      %p124 = scmp.ne.s32.totalorder %s115, %s116
      %p125 = scmp.eq.s32.totalorder %s16, 0
      %p126 = por %p124, %p125
      %p127 = scmp.ne.s32.totalorder %s115, %s116
      %p128 = scmp.eq.s32.totalorder %s17, 13
      %p129 = por %p127, %p128
      %p131 = scmp.ne.s32.totalorder %s116, %s130
      %p132 = scmp.eq.s32.totalorder %s17, 0
      %p133 = por %p131, %p132
      %s135 = sadd.s32 %s134, 1
      %p138 = scmp.eq.s32.totalorder %s11, 13
      %p139 = scmp.ne.s32.totalorder %s134, %s136
      %p140 = scmp.eq.s32.totalorder %s11, 0
      %p141 = por %p139, %p140
      %p142 = scmp.ne.s32.totalorder %s134, %s136
      %p143 = scmp.eq.s32.totalorder %s16, 13
      %p144 = por %p142, %p143
      %p145 = scmp.ne.s32.totalorder %s136, %s137
      %p146 = scmp.eq.s32.totalorder %s16, 0
      %p147 = por %p145, %p146
      %p148 = scmp.ne.s32.totalorder %s136, %s137
      %p149 = scmp.eq.s32.totalorder %s17, 13
      %p150 = por %p148, %p149
      %p152 = scmp.ne.s32.totalorder %s137, %s151
      %p153 = scmp.eq.s32.totalorder %s17, 0
      %p154 = por %p152, %p153
      %p155 = scmp.le.s32.totalorder 1, %s11
      %p156 = scmp.lt.s32.totalorder %s11, 15
      %p157 = pnand %p155, %p156
      %p158 = pneg %p157
      // Predicated region
      $region9: #{_lambda_.7} parent=5 // pred_check
        _
      $region10: #{_lambda_.7} parent=5 // pred_check_branch
        %160 = sbr.rel (%p157) target = $region12
      $region11: #{_lambda_.7} parent=5 // pred_region
        %s161 = ssub.s32 %s11, 1
        // Predicated region
        $region13: #{_lambda_.7} parent=11 // pred_check
          %p162 = pneg %p84
        $region14: #{_lambda_.7} parent=11 // pred_check_branch
          %164 = sbr.rel (%p162) target = $region16
        $region15: #{_lambda_.7} parent=11 // pred_region
          _
        $region16: #{_lambda_.7} parent=11 // pred_fallthru
          _
        // Predicated region
        $region17: #{_lambda_.7} parent=11 // pred_check
          %p165 = pneg %p105
        $region18: #{_lambda_.7} parent=11 // pred_check_branch
          %167 = sbr.rel (%p165) target = $region20
        $region19: #{_lambda_.7} parent=11 // pred_region
          _
        $region20: #{_lambda_.7} parent=11 // pred_fallthru
          _
        // Predicated region
        $region21: #{_lambda_.7} parent=11 // pred_check
          %p168 = pneg %p126
        $region22: #{_lambda_.7} parent=11 // pred_check_branch
          %170 = sbr.rel (%p168) target = $region24
        $region23: #{_lambda_.7} parent=11 // pred_region
          _
        $region24: #{_lambda_.7} parent=11 // pred_fallthru
          _
      $region12: #{_lambda_.7} parent=5 // pred_fallthru
        _
      %p171 = scmp.lt.s32.totalorder %s11, 14
      // Predicated region
      $region25: #{_lambda_.7} parent=5 // pred_check
        %p172 = pneg %p171
      $region26: #{_lambda_.7} parent=5 // pred_check_branch
        %174 = sbr.rel (%p172) target = $region28
      $region27: #{_lambda_.7} parent=5 // pred_region
        // Predicated region
        $region29: #{_lambda_.7} parent=27 // pred_check
          %p175 = pneg %p31
        $region30: #{_lambda_.7} parent=27 // pred_check_branch
          %177 = sbr.rel (%p175) target = $region32
        $region31: #{_lambda_.7} parent=27 // pred_region
          %s178 = sand.u32 %s21, 1
          %s179 = sand.u32 %s21, 1
          %s180 = smul.addr %s179, 112
          %s181 = scalar_lea.vmem [#allocation3], %s180
          %s182 = smul.u32 14, %s11
          %s183 = smul.addr %s182, 4
          %s184 = scalar_lea.vmem %s0, %s183
          // Predicated region
          $region33: #{_lambda_.7} parent=31 // pred_check
            _
          $region34: #{_lambda_.7} parent=31 // pred_check_branch
            %186 = sbr.rel (0) target = $region36
          $region35: #{_lambda_.7} parent=31 // pred_region
            // Predicated region
            $region37: #{_lambda_.7} parent=35 // pred_check
              _
            $region38: #{_lambda_.7} parent=35 // pred_check_branch
              %188 = sbr.rel (0) target = $region40
            $region39: #{_lambda_.7} parent=35 // pred_region
              loop: start=0, step=1, limit=1
              $region41: #{_lambda_.7} parent=39 // loop_pre_header
                _
              $region42: #{_lambda_.7} parent=39 // loop_header
                %s190 = sphi 0, %s194
                %p191 = scmp.ge.s32.totalorder %s190, 1
                %s195 = sphi %s184, %s184
                %s196 = sphi %s181, %s181
              $region43: #{_lambda_.7} parent=39 // loop_header_branch
                %193 = sbr.rel (%p191) target = $region47
              $region44: #{_lambda_.7} parent=39 // loop_body
                %v197 = vld [vmem:[%s195] sm:$0xff]
                %198 = vst [vmem:[%s196] sm:$0xff] %v197
                %v199 = vld [vmem:[%s195 + $0x8] sm:$0xff]
                %200 = vst [vmem:[%s196 + $0x8] sm:$0xff] %v199
                %v201 = vld [vmem:[%s195 + $0x10] sm:$0xff]
                %202 = vst [vmem:[%s196 + $0x10] sm:$0xff] %v201
                %v203 = vld [vmem:[%s195 + $0x18] sm:$0xff]
                %204 = vst [vmem:[%s196 + $0x18] sm:$0xff] %v203
                %v205 = vld [vmem:[%s195 + $0x20] sm:$0xff]
                %206 = vst [vmem:[%s196 + $0x20] sm:$0xff] %v205
                %v207 = vld [vmem:[%s195 + $0x28] sm:$0xff]
                %208 = vst [vmem:[%s196 + $0x28] sm:$0xff] %v207
                %v209 = vld [vmem:[%s195 + $0x30] sm:$0xff]
                %210 = vst [vmem:[%s196 + $0x30] sm:$0xff] %v209
                %v211 = vld [vmem:[%s195 + $0x310] sm:$0xff]
                %212 = vst [vmem:[%s196 + $0x38] sm:$0xff] %v211
                %v213 = vld [vmem:[%s195 + $0x318] sm:$0xff]
                %214 = vst [vmem:[%s196 + $0x40] sm:$0xff] %v213
                %v215 = vld [vmem:[%s195 + $0x320] sm:$0xff]
                %216 = vst [vmem:[%s196 + $0x48] sm:$0xff] %v215
                %v217 = vld [vmem:[%s195 + $0x328] sm:$0xff]
                %218 = vst [vmem:[%s196 + $0x50] sm:$0xff] %v217
                %v219 = vld [vmem:[%s195 + $0x330] sm:$0xff]
                %220 = vst [vmem:[%s196 + $0x58] sm:$0xff] %v219
                %v221 = vld [vmem:[%s195 + $0x338] sm:$0xff]
                %222 = vst [vmem:[%s196 + $0x60] sm:$0xff] %v221
                %v223 = vld [vmem:[%s195 + $0x340] sm:$0xff]
                %224 = vst [vmem:[%s196 + $0x68] sm:$0xff] %v223
              $region45: #{_lambda_.7} parent=39 // loop_footer
                %s194 = sadd.s32 1, %s190
              $region46: #{_lambda_.7} parent=39 // loop_footer_branch
                %189 = sbr.rel target = $region42
              $region47: #{_lambda_.7} parent=39 // loop_exit
                _
            $region40: #{_lambda_.7} parent=35 // pred_fallthru
              _
            // Predicated region
            $region48: #{_lambda_.7} parent=35 // pred_check
              _
            $region49: #{_lambda_.7} parent=35 // pred_check_branch
              %226 = sbr.rel target = $region51
            $region50: #{_lambda_.7} parent=35 // pred_region
              _
            $region51: #{_lambda_.7} parent=35 // pred_fallthru
              _
          $region36: #{_lambda_.7} parent=31 // pred_fallthru
            _
          %227 = vnop
        $region32: #{_lambda_.7} parent=27 // pred_fallthru
          _
        // Predicated region
        $region52: #{_lambda_.7} parent=27 // pred_check
          %p228 = pneg %p57
        $region53: #{_lambda_.7} parent=27 // pred_check_branch
          %230 = sbr.rel (%p228) target = $region55
        $region54: #{_lambda_.7} parent=27 // pred_region
          %s231 = smul.u32 224, %s11
          %p232 = scmp.lt.s32.totalorder %s231, 3135
          %s233 = scalar_select %p232, %s231, 3135
          %s234 = smul.addr %s233, 4
          %s235 = scalar_lea.vmem %s1, %s234
          %s236 = smul.u32 224, %s11
        $region55: #{_lambda_.7} parent=27 // pred_fallthru
          _
      $region28: #{_lambda_.7} parent=5 // pred_fallthru
        _
      %p237 = scmp.le.s32.totalorder 1, %s11
      %p238 = scmp.lt.s32.totalorder %s11, 15
      %p239 = pnand %p237, %p238
      %p240 = pneg %p239
      // Predicated region
      $region56: #{_lambda_.7} parent=5 // pred_check
        _
      $region57: #{_lambda_.7} parent=5 // pred_check_branch
        %242 = sbr.rel (%p239) target = $region59
      $region58: #{_lambda_.7} parent=5 // pred_region
        %s243 = ssub.s32 %s11, 1
        %s244 = sand.u32 %s24, 1
        %s245 = sand.u32 %s24, 1
        %s246 = smul.addr %s245, 112
        %s247 = scalar_lea.vmem [#allocation3], %s246
        // Predicated region
        $region60: #{_lambda_.7} parent=58 // pred_check
          %p248 = pneg %p37
        $region61: #{_lambda_.7} parent=58 // pred_check_branch
          %250 = sbr.rel (%p248) target = $region63
        $region62: #{_lambda_.7} parent=58 // pred_region
          _
        $region63: #{_lambda_.7} parent=58 // pred_fallthru
          _
        %s251 = sand.u32 %s24, 1
        %s252 = sand.u32 %s24, 1
        %s253 = smul.addr %s252, 112
        %s254 = scalar_lea.vmem [#allocation3], %s253
        %p255 = pneg %p37
        %p256 = pneg %p34
        %s257 = smul.u32 224, %s16
        %p258 = scmp.lt.s32.totalorder %s257, 3135
        %s259 = scalar_select %p258, %s257, 3135
        %s260 = smul.addr %s259, 4
        %s261 = scalar_lea.vmem %s1, %s260
        %p262 = pneg %p63
        %p263 = pneg %p60
        %p264 = pneg %p84
        %p265 = pneg %p81
        %p266 = pneg %p105
        %p267 = pneg %p102
        %p268 = pneg %p126
        %p269 = pneg %p123
        %p270 = pneg %p147
        %p271 = pneg %p144
        %s272 = smul.u32 14, %s16
        %s273 = smul.u32 224, %s16
        %p274 = scmp.lt.s32.totalorder %s273, 3135
        %s275 = scalar_select %p274, %s273, 3135
        %s276 = smul.addr %s275, 4
        %s277 = scalar_lea.vmem %s1, %s276
        %s278 = smul.u32 224, %s16
        %p280 = scmp.eq.s32.totalorder %s16, 0
        // Predicated region
        $region64: #{_lambda_.7} parent=58 // pred_check
          %p281 = pneg %p280
        $region65: #{_lambda_.7} parent=58 // pred_check_branch
          %283 = sbr.rel (%p281) target = $region67
        $region66: #{_lambda_.7} parent=58 // pred_region
          %284 = vst [vmem:[#allocation2] sm:$0xff] 0.0
          %285 = vst [vmem:[#allocation2 + $0x8] sm:$0xff] 0.0
        $region67: #{_lambda_.7} parent=58 // pred_fallthru
          _
        %v286 = vld [vmem:[#allocation2] sm:$0xff]
        %v287 = vld [vmem:[#allocation2 + $0x8] sm:$0xff]
        %v288 = vld [vmem:[%s247] sm:$0xff]
        %v289 = vld [vmem:[%s247 + $0x8] sm:$0xff]
        %v290 = vld [vmem:[%s247 + $0x10] sm:$0xff]
        %v291 = vld [vmem:[%s247 + $0x18] sm:$0xff]
        %v292 = vld [vmem:[%s247 + $0x20] sm:$0xff]
        %v293 = vld [vmem:[%s247 + $0x28] sm:$0xff]
        %v294 = vld [vmem:[%s247 + $0x30] sm:$0xff]
        %v295 = vld [vmem:[%s247 + $0x38] sm:$0xff]
        %v296 = vld [vmem:[%s247 + $0x40] sm:$0xff]
        %v297 = vld [vmem:[%s247 + $0x48] sm:$0xff]
        %v298 = vld [vmem:[%s247 + $0x50] sm:$0xff]
        %v299 = vld [vmem:[%s247 + $0x58] sm:$0xff]
        %v300 = vld [vmem:[%s247 + $0x60] sm:$0xff]
        %v301 = vld [vmem:[%s247 + $0x68] sm:$0xff]
        %v302 = vld [vmem:[%s277] sm:$0xf]
        %v303 = vld [vmem:[%s277 + $0x4] sm:$0xf]
        %v304 = vld [vmem:[%s277 + $0x8] sm:$0xf]
        %v305 = vld [vmem:[%s277 + $0xc] sm:$0xf]
        %v306 = vld [vmem:[%s277 + $0x10] sm:$0xf]
        %v307 = vld [vmem:[%s277 + $0x14] sm:$0xf]
        %v308 = vld [vmem:[%s277 + $0x18] sm:$0xf]
        %v309 = vld [vmem:[%s277 + $0x1c] sm:$0xf]
        %v310 = vld [vmem:[%s277 + $0x20] sm:$0xf]
        %v311 = vld [vmem:[%s277 + $0x24] sm:$0xf]
        %v312 = vld [vmem:[%s277 + $0x28] sm:$0xf]
        %v313 = vld [vmem:[%s277 + $0x2c] sm:$0xf]
        %v314 = vld [vmem:[%s277 + $0x30] sm:$0xf]
        %v315 = vld [vmem:[%s277 + $0x34] sm:$0xf]
        %v316 = vld [vmem:[%s277 + $0x38] sm:$0xf]
        %v317 = vld [vmem:[%s277 + $0x3c] sm:$0xf]
        %v318 = vld [vmem:[%s277 + $0x40] sm:$0xf]
        %v319 = vld [vmem:[%s277 + $0x44] sm:$0xf]
        %v320 = vld [vmem:[%s277 + $0x48] sm:$0xf]
        %v321 = vld [vmem:[%s277 + $0x4c] sm:$0xf]
        %v322 = vld [vmem:[%s277 + $0x50] sm:$0xf]
        %v323 = vld [vmem:[%s277 + $0x54] sm:$0xf]
        %v324 = vld [vmem:[%s277 + $0x58] sm:$0xf]
        %v325 = vld [vmem:[%s277 + $0x5c] sm:$0xf]
        %v326 = vld [vmem:[%s277 + $0x60] sm:$0xf]
        %v327 = vld [vmem:[%s277 + $0x64] sm:$0xf]
        %v328 = vld [vmem:[%s277 + $0x68] sm:$0xf]
        %v329 = vld [vmem:[%s277 + $0x6c] sm:$0xf]
        %v330 = vld [vmem:[%s277 + $0x70] sm:$0xf]
        %v331 = vld [vmem:[%s277 + $0x74] sm:$0xf]
        %v332 = vld [vmem:[%s277 + $0x78] sm:$0xf]
        %v333 = vld [vmem:[%s277 + $0x7c] sm:$0xf]
        %v334 = vld [vmem:[%s277 + $0x80] sm:$0xf]
        %v335 = vld [vmem:[%s277 + $0x84] sm:$0xf]
        %v336 = vld [vmem:[%s277 + $0x88] sm:$0xf]
        %v337 = vld [vmem:[%s277 + $0x8c] sm:$0xf]
        %v338 = vld [vmem:[%s277 + $0x90] sm:$0xf]
        %v339 = vld [vmem:[%s277 + $0x94] sm:$0xf]
        %v340 = vld [vmem:[%s277 + $0x98] sm:$0xf]
        %v341 = vld [vmem:[%s277 + $0x9c] sm:$0xf]
        %v342 = vld [vmem:[%s277 + $0xa0] sm:$0xf]
        %v343 = vld [vmem:[%s277 + $0xa4] sm:$0xf]
        %v344 = vld [vmem:[%s277 + $0xa8] sm:$0xf]
        %v345 = vld [vmem:[%s277 + $0xac] sm:$0xf]
        %v346 = vld [vmem:[%s277 + $0xb0] sm:$0xf]
        %v347 = vld [vmem:[%s277 + $0xb4] sm:$0xf]
        %v348 = vld [vmem:[%s277 + $0xb8] sm:$0xf]
        %v349 = vld [vmem:[%s277 + $0xbc] sm:$0xf]
        %v350 = vld [vmem:[%s277 + $0xc0] sm:$0xf]
        %v351 = vld [vmem:[%s277 + $0xc4] sm:$0xf]
        %v352 = vld [vmem:[%s277 + $0xc8] sm:$0xf]
        %v353 = vld [vmem:[%s277 + $0xcc] sm:$0xf]
        %v354 = vld [vmem:[%s277 + $0xd0] sm:$0xf]
        %v355 = vld [vmem:[%s277 + $0xd4] sm:$0xf]
        %v356 = vld [vmem:[%s277 + $0xd8] sm:$0xf]
        %v357 = vld [vmem:[%s277 + $0xdc] sm:$0xf]
        %v358 = vld [vmem:[%s277 + $0xe0] sm:$0xf]
        %v359 = vld [vmem:[%s277 + $0xe4] sm:$0xf]
        %v360 = vld [vmem:[%s277 + $0xe8] sm:$0xf]
        %v361 = vld [vmem:[%s277 + $0xec] sm:$0xf]
        %v362 = vld [vmem:[%s277 + $0xf0] sm:$0xf]
        %v363 = vld [vmem:[%s277 + $0xf4] sm:$0xf]
        %v364 = vld [vmem:[%s277 + $0xf8] sm:$0xf]
        %v365 = vld [vmem:[%s277 + $0xfc] sm:$0xf]
        %v366 = vld [vmem:[%s277 + $0x100] sm:$0xf]
        %v367 = vld [vmem:[%s277 + $0x104] sm:$0xf]
        %v368 = vld [vmem:[%s277 + $0x108] sm:$0xf]
        %v369 = vld [vmem:[%s277 + $0x10c] sm:$0xf]
        %v370 = vld [vmem:[%s277 + $0x110] sm:$0xf]
        %v371 = vld [vmem:[%s277 + $0x114] sm:$0xf]
        %v372 = vld [vmem:[%s277 + $0x118] sm:$0xf]
        %v373 = vld [vmem:[%s277 + $0x11c] sm:$0xf]
        %v374 = vld [vmem:[%s277 + $0x120] sm:$0xf]
        %v375 = vld [vmem:[%s277 + $0x124] sm:$0xf]
        %v376 = vld [vmem:[%s277 + $0x128] sm:$0xf]
        %v377 = vld [vmem:[%s277 + $0x12c] sm:$0xf]
        %v378 = vld [vmem:[%s277 + $0x130] sm:$0xf]
        %v379 = vld [vmem:[%s277 + $0x134] sm:$0xf]
        %v380 = vld [vmem:[%s277 + $0x138] sm:$0xf]
        %v381 = vld [vmem:[%s277 + $0x13c] sm:$0xf]
        %v382 = vld [vmem:[%s277 + $0x140] sm:$0xf]
        %v383 = vld [vmem:[%s277 + $0x144] sm:$0xf]
        %v384 = vld [vmem:[%s277 + $0x148] sm:$0xf]
        %v385 = vld [vmem:[%s277 + $0x14c] sm:$0xf]
        %v386 = vld [vmem:[%s277 + $0x150] sm:$0xf]
        %v387 = vld [vmem:[%s277 + $0x154] sm:$0xf]
        %v388 = vld [vmem:[%s277 + $0x158] sm:$0xf]
        %v389 = vld [vmem:[%s277 + $0x15c] sm:$0xf]
        %v390 = vld [vmem:[%s277 + $0x160] sm:$0xf]
        %v391 = vld [vmem:[%s277 + $0x164] sm:$0xf]
        %v392 = vld [vmem:[%s277 + $0x168] sm:$0xf]
        %v393 = vld [vmem:[%s277 + $0x16c] sm:$0xf]
        %v394 = vld [vmem:[%s277 + $0x170] sm:$0xf]
        %v395 = vld [vmem:[%s277 + $0x174] sm:$0xf]
        %v396 = vld [vmem:[%s277 + $0x178] sm:$0xf]
        %v397 = vld [vmem:[%s277 + $0x17c] sm:$0xf]
        %v398 = vld [vmem:[%s277 + $0x180] sm:$0xf]
        %v399 = vld [vmem:[%s277 + $0x184] sm:$0xf]
        %v400 = vld [vmem:[%s277 + $0x188] sm:$0xf]
        %v401 = vld [vmem:[%s277 + $0x18c] sm:$0xf]
        %v402 = vld [vmem:[%s277 + $0x190] sm:$0xf]
        %v403 = vld [vmem:[%s277 + $0x194] sm:$0xf]
        %v404 = vld [vmem:[%s277 + $0x198] sm:$0xf]
        %v405 = vld [vmem:[%s277 + $0x19c] sm:$0xf]
        %v406 = vld [vmem:[%s277 + $0x1a0] sm:$0xf]
        %v407 = vld [vmem:[%s277 + $0x1a4] sm:$0xf]
        %v408 = vld [vmem:[%s277 + $0x1a8] sm:$0xf]
        %v409 = vld [vmem:[%s277 + $0x1ac] sm:$0xf]
        %v410 = vld [vmem:[%s277 + $0x1b0] sm:$0xf]
        %v411 = vld [vmem:[%s277 + $0x1b4] sm:$0xf]
        %v412 = vld [vmem:[%s277 + $0x1b8] sm:$0xf]
        %v413 = vld [vmem:[%s277 + $0x1bc] sm:$0xf]
        %v414 = vld [vmem:[%s277 + $0x1c0] sm:$0xf]
        %v415 = vld [vmem:[%s277 + $0x1c4] sm:$0xf]
        %v416 = vld [vmem:[%s277 + $0x1c8] sm:$0xf]
        %v417 = vld [vmem:[%s277 + $0x1cc] sm:$0xf]
        %v418 = vld [vmem:[%s277 + $0x1d0] sm:$0xf]
        %v419 = vld [vmem:[%s277 + $0x1d4] sm:$0xf]
        %v420 = vld [vmem:[%s277 + $0x1d8] sm:$0xf]
        %v421 = vld [vmem:[%s277 + $0x1dc] sm:$0xf]
        %v422 = vld [vmem:[%s277 + $0x1e0] sm:$0xf]
        %v423 = vld [vmem:[%s277 + $0x1e4] sm:$0xf]
        %v424 = vld [vmem:[%s277 + $0x1e8] sm:$0xf]
        %v425 = vld [vmem:[%s277 + $0x1ec] sm:$0xf]
        %v426 = vld [vmem:[%s277 + $0x1f0] sm:$0xf]
        %v427 = vld [vmem:[%s277 + $0x1f4] sm:$0xf]
        %v428 = vld [vmem:[%s277 + $0x1f8] sm:$0xf]
        %v429 = vld [vmem:[%s277 + $0x1fc] sm:$0xf]
        %v430 = vld [vmem:[%s277 + $0x200] sm:$0xf]
        %v431 = vld [vmem:[%s277 + $0x204] sm:$0xf]
        %v432 = vld [vmem:[%s277 + $0x208] sm:$0xf]
        %v433 = vld [vmem:[%s277 + $0x20c] sm:$0xf]
        %v434 = vld [vmem:[%s277 + $0x210] sm:$0xf]
        %v435 = vld [vmem:[%s277 + $0x214] sm:$0xf]
        %v436 = vld [vmem:[%s277 + $0x218] sm:$0xf]
        %v437 = vld [vmem:[%s277 + $0x21c] sm:$0xf]
        %v438 = vld [vmem:[%s277 + $0x220] sm:$0xf]
        %v439 = vld [vmem:[%s277 + $0x224] sm:$0xf]
        %v440 = vld [vmem:[%s277 + $0x228] sm:$0xf]
        %v441 = vld [vmem:[%s277 + $0x22c] sm:$0xf]
        %v442 = vld [vmem:[%s277 + $0x230] sm:$0xf]
        %v443 = vld [vmem:[%s277 + $0x234] sm:$0xf]
        %v444 = vld [vmem:[%s277 + $0x238] sm:$0xf]
        %v445 = vld [vmem:[%s277 + $0x23c] sm:$0xf]
        %v446 = vld [vmem:[%s277 + $0x240] sm:$0xf]
        %v447 = vld [vmem:[%s277 + $0x244] sm:$0xf]
        %v448 = vld [vmem:[%s277 + $0x248] sm:$0xf]
        %v449 = vld [vmem:[%s277 + $0x24c] sm:$0xf]
        %v450 = vld [vmem:[%s277 + $0x250] sm:$0xf]
        %v451 = vld [vmem:[%s277 + $0x254] sm:$0xf]
        %v452 = vld [vmem:[%s277 + $0x258] sm:$0xf]
        %v453 = vld [vmem:[%s277 + $0x25c] sm:$0xf]
        %v454 = vld [vmem:[%s277 + $0x260] sm:$0xf]
        %v455 = vld [vmem:[%s277 + $0x264] sm:$0xf]
        %v456 = vld [vmem:[%s277 + $0x268] sm:$0xf]
        %v457 = vld [vmem:[%s277 + $0x26c] sm:$0xf]
        %v458 = vld [vmem:[%s277 + $0x270] sm:$0xf]
        %v459 = vld [vmem:[%s277 + $0x274] sm:$0xf]
        %v460 = vld [vmem:[%s277 + $0x278] sm:$0xf]
        %v461 = vld [vmem:[%s277 + $0x27c] sm:$0xf]
        %v462 = vld [vmem:[%s277 + $0x280] sm:$0xf]
        %v463 = vld [vmem:[%s277 + $0x284] sm:$0xf]
        %v464 = vld [vmem:[%s277 + $0x288] sm:$0xf]
        %v465 = vld [vmem:[%s277 + $0x28c] sm:$0xf]
        %v466 = vld [vmem:[%s277 + $0x290] sm:$0xf]
        %v467 = vld [vmem:[%s277 + $0x294] sm:$0xf]
        %v468 = vld [vmem:[%s277 + $0x298] sm:$0xf]
        %v469 = vld [vmem:[%s277 + $0x29c] sm:$0xf]
        %v470 = vld [vmem:[%s277 + $0x2a0] sm:$0xf]
        %v471 = vld [vmem:[%s277 + $0x2a4] sm:$0xf]
        %v472 = vld [vmem:[%s277 + $0x2a8] sm:$0xf]
        %v473 = vld [vmem:[%s277 + $0x2ac] sm:$0xf]
        %v474 = vld [vmem:[%s277 + $0x2b0] sm:$0xf]
        %v475 = vld [vmem:[%s277 + $0x2b4] sm:$0xf]
        %v476 = vld [vmem:[%s277 + $0x2b8] sm:$0xf]
        %v477 = vld [vmem:[%s277 + $0x2bc] sm:$0xf]
        %v478 = vld [vmem:[%s277 + $0x2c0] sm:$0xf]
        %v479 = vld [vmem:[%s277 + $0x2c4] sm:$0xf]
        %v480 = vld [vmem:[%s277 + $0x2c8] sm:$0xf]
        %v481 = vld [vmem:[%s277 + $0x2cc] sm:$0xf]
        %v482 = vld [vmem:[%s277 + $0x2d0] sm:$0xf]
        %v483 = vld [vmem:[%s277 + $0x2d4] sm:$0xf]
        %v484 = vld [vmem:[%s277 + $0x2d8] sm:$0xf]
        %v485 = vld [vmem:[%s277 + $0x2dc] sm:$0xf]
        %v486 = vld [vmem:[%s277 + $0x2e0] sm:$0xf]
        %v487 = vld [vmem:[%s277 + $0x2e4] sm:$0xf]
        %v488 = vld [vmem:[%s277 + $0x2e8] sm:$0xf]
        %v489 = vld [vmem:[%s277 + $0x2ec] sm:$0xf]
        %v490 = vld [vmem:[%s277 + $0x2f0] sm:$0xf]
        %v491 = vld [vmem:[%s277 + $0x2f4] sm:$0xf]
        %v492 = vld [vmem:[%s277 + $0x2f8] sm:$0xf]
        %v493 = vld [vmem:[%s277 + $0x2fc] sm:$0xf]
        %v494 = vld [vmem:[%s277 + $0x300] sm:$0xf]
        %v495 = vld [vmem:[%s277 + $0x304] sm:$0xf]
        %v496 = vld [vmem:[%s277 + $0x308] sm:$0xf]
        %v497 = vld [vmem:[%s277 + $0x30c] sm:$0xf]
        %v498 = vld [vmem:[%s277 + $0x310] sm:$0xf]
        %v499 = vld [vmem:[%s277 + $0x314] sm:$0xf]
        %v500 = vld [vmem:[%s277 + $0x318] sm:$0xf]
        %v501 = vld [vmem:[%s277 + $0x31c] sm:$0xf]
        %v502 = vld [vmem:[%s277 + $0x320] sm:$0xf]
        %v503 = vld [vmem:[%s277 + $0x324] sm:$0xf]
        %v504 = vld [vmem:[%s277 + $0x328] sm:$0xf]
        %v505 = vld [vmem:[%s277 + $0x32c] sm:$0xf]
        %v506 = vld [vmem:[%s277 + $0x330] sm:$0xf]
        %v507 = vld [vmem:[%s277 + $0x334] sm:$0xf]
        %v508 = vld [vmem:[%s277 + $0x338] sm:$0xf]
        %v509 = vld [vmem:[%s277 + $0x33c] sm:$0xf]
        %v510 = vld [vmem:[%s277 + $0x340] sm:$0xf]
        %v511 = vld [vmem:[%s277 + $0x344] sm:$0xf]
        %v512 = vld [vmem:[%s277 + $0x348] sm:$0xf]
        %v513 = vld [vmem:[%s277 + $0x34c] sm:$0xf]
        %v514 = vld [vmem:[%s277 + $0x350] sm:$0xf]
        %v515 = vld [vmem:[%s277 + $0x354] sm:$0xf]
        %v516 = vld [vmem:[%s277 + $0x358] sm:$0xf]
        %v517 = vld [vmem:[%s277 + $0x35c] sm:$0xf]
        %v518 = vld [vmem:[%s277 + $0x360] sm:$0xf]
        %v519 = vld [vmem:[%s277 + $0x364] sm:$0xf]
        %v520 = vld [vmem:[%s277 + $0x368] sm:$0xf]
        %v521 = vld [vmem:[%s277 + $0x36c] sm:$0xf]
        %v522 = vld [vmem:[%s277 + $0x370] sm:$0xf]
        %v523 = vld [vmem:[%s277 + $0x374] sm:$0xf]
        %v524 = vld [vmem:[%s277 + $0x378] sm:$0xf]
        %v525 = vld [vmem:[%s277 + $0x37c] sm:$0xf]
        %v540 = vunpack.c.l.b16 %v288
        %v541 = vunpack.c.h.b16 %v288
        %v542 = vunpack.c.l.b16 %v289
        %v543 = vunpack.c.h.b16 %v289
        %v544 = vunpack.c.l.b16 %v290
        %v545 = vunpack.c.h.b16 %v290
        %v546 = vunpack.c.l.b16 %v291
        %v547 = vunpack.c.h.b16 %v291
        %v548 = vunpack.c.l.b16 %v292
        %v549 = vunpack.c.h.b16 %v292
        %v550 = vunpack.c.l.b16 %v293
        %v551 = vunpack.c.h.b16 %v293
        %v552 = vunpack.c.l.b16 %v294
        %v553 = vunpack.c.h.b16 %v294
        %v554 = vunpack.c.l.b16 %v295
        %v555 = vunpack.c.h.b16 %v295
        %v556 = vunpack.c.l.b16 %v296
        %v557 = vunpack.c.h.b16 %v296
        %v558 = vunpack.c.l.b16 %v297
        %v559 = vunpack.c.h.b16 %v297
        %v560 = vunpack.c.l.b16 %v298
        %v561 = vunpack.c.h.b16 %v298
        %v562 = vunpack.c.l.b16 %v299
        %v563 = vunpack.c.h.b16 %v299
        %v564 = vunpack.c.l.b16 %v300
        %v565 = vunpack.c.h.b16 %v300
        %v566 = vunpack.c.l.b16 %v301
        %v567 = vunpack.c.h.b16 %v301
        %v568 = vpack.c.b16 %v554, %v540
        %v569 = vpack.c.b16 %v555, %v541
        %v570 = vpack.c.b16 %v556, %v542
        %v571 = vpack.c.b16 %v557, %v543
        %v572 = vpack.c.b16 %v558, %v544
        %v573 = vpack.c.b16 %v559, %v545
        %v574 = vpack.c.b16 %v560, %v546
        %v575 = vpack.c.b16 %v561, %v547
        %v576 = vpack.c.b16 %v562, %v548
        %v577 = vpack.c.b16 %v563, %v549
        %v578 = vpack.c.b16 %v564, %v550
        %v579 = vpack.c.b16 %v565, %v551
        %v580 = vpack.c.b16 %v566, %v552
        %v581 = vpack.c.b16 %v567, %v553
        %v820 = vunpack.c.l.b16 %v302
        %v821 = vunpack.c.l.b16 %v303
        %v822 = vunpack.c.l.b16 %v304
        %v823 = vunpack.c.l.b16 %v305
        %v824 = vunpack.c.l.b16 %v306
        %v825 = vunpack.c.l.b16 %v307
        %v826 = vunpack.c.l.b16 %v308
        %v827 = vunpack.c.l.b16 %v309
        %v828 = vunpack.c.l.b16 %v310
        %v829 = vunpack.c.l.b16 %v311
        %v830 = vunpack.c.l.b16 %v312
        %v831 = vunpack.c.l.b16 %v313
        %v832 = vunpack.c.l.b16 %v314
        %v833 = vunpack.c.l.b16 %v315
        %v834 = vunpack.c.l.b16 %v316
        %v835 = vunpack.c.l.b16 %v317
        %v836 = vunpack.c.l.b16 %v318
        %v837 = vunpack.c.l.b16 %v319
        %v838 = vunpack.c.l.b16 %v320
        %v839 = vunpack.c.l.b16 %v321
        %v840 = vunpack.c.l.b16 %v322
        %v841 = vunpack.c.l.b16 %v323
        %v842 = vunpack.c.l.b16 %v324
        %v843 = vunpack.c.l.b16 %v325
        %v844 = vunpack.c.l.b16 %v326
        %v845 = vunpack.c.l.b16 %v327
        %v846 = vunpack.c.l.b16 %v328
        %v847 = vunpack.c.l.b16 %v329
        %v848 = vunpack.c.l.b16 %v330
        %v849 = vunpack.c.l.b16 %v331
        %v850 = vunpack.c.l.b16 %v332
        %v851 = vunpack.c.l.b16 %v333
        %v852 = vunpack.c.l.b16 %v334
        %v853 = vunpack.c.l.b16 %v335
        %v854 = vunpack.c.l.b16 %v336
        %v855 = vunpack.c.l.b16 %v337
        %v856 = vunpack.c.l.b16 %v338
        %v857 = vunpack.c.l.b16 %v339
        %v858 = vunpack.c.l.b16 %v340
        %v859 = vunpack.c.l.b16 %v341
        %v860 = vunpack.c.l.b16 %v342
        %v861 = vunpack.c.l.b16 %v343
        %v862 = vunpack.c.l.b16 %v344
        %v863 = vunpack.c.l.b16 %v345
        %v864 = vunpack.c.l.b16 %v346
        %v865 = vunpack.c.l.b16 %v347
        %v866 = vunpack.c.l.b16 %v348
        %v867 = vunpack.c.l.b16 %v349
        %v868 = vunpack.c.l.b16 %v350
        %v869 = vunpack.c.l.b16 %v351
        %v870 = vunpack.c.l.b16 %v352
        %v871 = vunpack.c.l.b16 %v353
        %v872 = vunpack.c.l.b16 %v354
        %v873 = vunpack.c.l.b16 %v355
        %v874 = vunpack.c.l.b16 %v356
        %v875 = vunpack.c.l.b16 %v357
        %v876 = vunpack.c.l.b16 %v358
        %v877 = vunpack.c.l.b16 %v359
        %v878 = vunpack.c.l.b16 %v360
        %v879 = vunpack.c.l.b16 %v361
        %v880 = vunpack.c.l.b16 %v362
        %v881 = vunpack.c.l.b16 %v363
        %v882 = vunpack.c.l.b16 %v364
        %v883 = vunpack.c.l.b16 %v365
        %v884 = vunpack.c.l.b16 %v366
        %v885 = vunpack.c.l.b16 %v367
        %v886 = vunpack.c.l.b16 %v368
        %v887 = vunpack.c.l.b16 %v369
        %v888 = vunpack.c.l.b16 %v370
        %v889 = vunpack.c.l.b16 %v371
        %v890 = vunpack.c.l.b16 %v372
        %v891 = vunpack.c.l.b16 %v373
        %v892 = vunpack.c.l.b16 %v374
        %v893 = vunpack.c.l.b16 %v375
        %v894 = vunpack.c.l.b16 %v376
        %v895 = vunpack.c.l.b16 %v377
        %v896 = vunpack.c.l.b16 %v378
        %v897 = vunpack.c.l.b16 %v379
        %v898 = vunpack.c.l.b16 %v380
        %v899 = vunpack.c.l.b16 %v381
        %v900 = vunpack.c.l.b16 %v382
        %v901 = vunpack.c.l.b16 %v383
        %v902 = vunpack.c.l.b16 %v384
        %v903 = vunpack.c.l.b16 %v385
        %v904 = vunpack.c.l.b16 %v386
        %v905 = vunpack.c.l.b16 %v387
        %v906 = vunpack.c.l.b16 %v388
        %v907 = vunpack.c.l.b16 %v389
        %v908 = vunpack.c.l.b16 %v390
        %v909 = vunpack.c.l.b16 %v391
        %v910 = vunpack.c.l.b16 %v392
        %v911 = vunpack.c.l.b16 %v393
        %v912 = vunpack.c.l.b16 %v394
        %v913 = vunpack.c.l.b16 %v395
        %v914 = vunpack.c.l.b16 %v396
        %v915 = vunpack.c.l.b16 %v397
        %v916 = vunpack.c.l.b16 %v398
        %v917 = vunpack.c.l.b16 %v399
        %v918 = vunpack.c.l.b16 %v400
        %v919 = vunpack.c.l.b16 %v401
        %v920 = vunpack.c.l.b16 %v402
        %v921 = vunpack.c.l.b16 %v403
        %v922 = vunpack.c.l.b16 %v404
        %v923 = vunpack.c.l.b16 %v405
        %v924 = vunpack.c.l.b16 %v406
        %v925 = vunpack.c.l.b16 %v407
        %v926 = vunpack.c.l.b16 %v408
        %v927 = vunpack.c.l.b16 %v409
        %v928 = vunpack.c.l.b16 %v410
        %v929 = vunpack.c.l.b16 %v411
        %v930 = vunpack.c.l.b16 %v412
        %v931 = vunpack.c.l.b16 %v413
        %v932 = vunpack.c.l.b16 %v414
        %v933 = vunpack.c.l.b16 %v415
        %v934 = vunpack.c.l.b16 %v416
        %v935 = vunpack.c.l.b16 %v417
        %v936 = vunpack.c.l.b16 %v418
        %v937 = vunpack.c.l.b16 %v419
        %v938 = vunpack.c.l.b16 %v420
        %v939 = vunpack.c.l.b16 %v421
        %v940 = vunpack.c.l.b16 %v422
        %v941 = vunpack.c.l.b16 %v423
        %v942 = vunpack.c.l.b16 %v424
        %v943 = vunpack.c.l.b16 %v425
        %v944 = vunpack.c.l.b16 %v426
        %v945 = vunpack.c.l.b16 %v427
        %v946 = vunpack.c.l.b16 %v428
        %v947 = vunpack.c.l.b16 %v429
        %v948 = vunpack.c.l.b16 %v430
        %v949 = vunpack.c.l.b16 %v431
        %v950 = vunpack.c.l.b16 %v432
        %v951 = vunpack.c.l.b16 %v433
        %v952 = vunpack.c.l.b16 %v434
        %v953 = vunpack.c.l.b16 %v435
        %v954 = vunpack.c.l.b16 %v436
        %v955 = vunpack.c.l.b16 %v437
        %v956 = vunpack.c.l.b16 %v438
        %v957 = vunpack.c.l.b16 %v439
        %v958 = vunpack.c.l.b16 %v440
        %v959 = vunpack.c.l.b16 %v441
        %v960 = vunpack.c.l.b16 %v442
        %v961 = vunpack.c.l.b16 %v443
        %v962 = vunpack.c.l.b16 %v444
        %v963 = vunpack.c.l.b16 %v445
        %v964 = vunpack.c.l.b16 %v446
        %v965 = vunpack.c.l.b16 %v447
        %v966 = vunpack.c.l.b16 %v448
        %v967 = vunpack.c.l.b16 %v449
        %v968 = vunpack.c.l.b16 %v450
        %v969 = vunpack.c.l.b16 %v451
        %v970 = vunpack.c.l.b16 %v452
        %v971 = vunpack.c.l.b16 %v453
        %v972 = vunpack.c.l.b16 %v454
        %v973 = vunpack.c.l.b16 %v455
        %v974 = vunpack.c.l.b16 %v456
        %v975 = vunpack.c.l.b16 %v457
        %v976 = vunpack.c.l.b16 %v458
        %v977 = vunpack.c.l.b16 %v459
        %v978 = vunpack.c.l.b16 %v460
        %v979 = vunpack.c.l.b16 %v461
        %v980 = vunpack.c.l.b16 %v462
        %v981 = vunpack.c.l.b16 %v463
        %v982 = vunpack.c.l.b16 %v464
        %v983 = vunpack.c.l.b16 %v465
        %v984 = vunpack.c.l.b16 %v466
        %v985 = vunpack.c.l.b16 %v467
        %v986 = vunpack.c.l.b16 %v468
        %v987 = vunpack.c.l.b16 %v469
        %v988 = vunpack.c.l.b16 %v470
        %v989 = vunpack.c.l.b16 %v471
        %v990 = vunpack.c.l.b16 %v472
        %v991 = vunpack.c.l.b16 %v473
        %v992 = vunpack.c.l.b16 %v474
        %v993 = vunpack.c.l.b16 %v475
        %v994 = vunpack.c.l.b16 %v476
        %v995 = vunpack.c.l.b16 %v477
        %v996 = vunpack.c.l.b16 %v478
        %v997 = vunpack.c.l.b16 %v479
        %v998 = vunpack.c.l.b16 %v480
        %v999 = vunpack.c.l.b16 %v481
        %v1000 = vunpack.c.l.b16 %v482
        %v1001 = vunpack.c.l.b16 %v483
        %v1002 = vunpack.c.l.b16 %v484
        %v1003 = vunpack.c.l.b16 %v485
        %v1004 = vunpack.c.l.b16 %v486
        %v1005 = vunpack.c.l.b16 %v487
        %v1006 = vunpack.c.l.b16 %v488
        %v1007 = vunpack.c.l.b16 %v489
        %v1008 = vunpack.c.l.b16 %v490
        %v1009 = vunpack.c.l.b16 %v491
        %v1010 = vunpack.c.l.b16 %v492
        %v1011 = vunpack.c.l.b16 %v493
        %v1012 = vunpack.c.l.b16 %v494
        %v1013 = vunpack.c.l.b16 %v495
        %v1014 = vunpack.c.l.b16 %v496
        %v1015 = vunpack.c.l.b16 %v497
        %v1016 = vunpack.c.l.b16 %v498
        %v1017 = vunpack.c.l.b16 %v499
        %v1018 = vunpack.c.l.b16 %v500
        %v1019 = vunpack.c.l.b16 %v501
        %v1020 = vunpack.c.l.b16 %v502
        %v1021 = vunpack.c.l.b16 %v503
        %v1022 = vunpack.c.l.b16 %v504
        %v1023 = vunpack.c.l.b16 %v505
        %v1024 = vunpack.c.l.b16 %v506
        %v1025 = vunpack.c.l.b16 %v507
        %v1026 = vunpack.c.l.b16 %v508
        %v1027 = vunpack.c.l.b16 %v509
        %v1028 = vunpack.c.l.b16 %v510
        %v1029 = vunpack.c.l.b16 %v511
        %v1030 = vunpack.c.l.b16 %v512
        %v1031 = vunpack.c.l.b16 %v513
        %v1032 = vunpack.c.l.b16 %v514
        %v1033 = vunpack.c.l.b16 %v515
        %v1034 = vunpack.c.l.b16 %v516
        %v1035 = vunpack.c.l.b16 %v517
        %v1036 = vunpack.c.l.b16 %v518
        %v1037 = vunpack.c.l.b16 %v519
        %v1038 = vunpack.c.l.b16 %v520
        %v1039 = vunpack.c.l.b16 %v521
        %v1040 = vunpack.c.l.b16 %v522
        %v1041 = vunpack.c.l.b16 %v523
        %v1042 = vunpack.c.l.b16 %v524
        %v1043 = vunpack.c.l.b16 %v525
        %v1044 = vpack.c.b16 %v821, %v820
        %v1045 = vpack.c.b16 %v823, %v822
        %v1046 = vpack.c.b16 %v825, %v824
        %v1047 = vpack.c.b16 %v827, %v826
        %v1048 = vpack.c.b16 %v829, %v828
        %v1049 = vpack.c.b16 %v831, %v830
        %v1050 = vpack.c.b16 %v833, %v832
        %v1051 = vpack.c.b16 %v835, %v834
        %v1052 = vpack.c.b16 %v837, %v836
        %v1053 = vpack.c.b16 %v839, %v838
        %v1054 = vpack.c.b16 %v841, %v840
        %v1055 = vpack.c.b16 %v843, %v842
        %v1056 = vpack.c.b16 %v845, %v844
        %v1057 = vpack.c.b16 %v847, %v846
        %v1058 = vpack.c.b16 %v849, %v848
        %v1059 = vpack.c.b16 %v851, %v850
        %v1060 = vpack.c.b16 %v853, %v852
        %v1061 = vpack.c.b16 %v855, %v854
        %v1062 = vpack.c.b16 %v857, %v856
        %v1063 = vpack.c.b16 %v859, %v858
        %v1064 = vpack.c.b16 %v861, %v860
        %v1065 = vpack.c.b16 %v863, %v862
        %v1066 = vpack.c.b16 %v865, %v864
        %v1067 = vpack.c.b16 %v867, %v866
        %v1068 = vpack.c.b16 %v869, %v868
        %v1069 = vpack.c.b16 %v871, %v870
        %v1070 = vpack.c.b16 %v873, %v872
        %v1071 = vpack.c.b16 %v875, %v874
        %v1072 = vpack.c.b16 %v877, %v876
        %v1073 = vpack.c.b16 %v879, %v878
        %v1074 = vpack.c.b16 %v881, %v880
        %v1075 = vpack.c.b16 %v883, %v882
        %v1076 = vpack.c.b16 %v885, %v884
        %v1077 = vpack.c.b16 %v887, %v886
        %v1078 = vpack.c.b16 %v889, %v888
        %v1079 = vpack.c.b16 %v891, %v890
        %v1080 = vpack.c.b16 %v893, %v892
        %v1081 = vpack.c.b16 %v895, %v894
        %v1082 = vpack.c.b16 %v897, %v896
        %v1083 = vpack.c.b16 %v899, %v898
        %v1084 = vpack.c.b16 %v901, %v900
        %v1085 = vpack.c.b16 %v903, %v902
        %v1086 = vpack.c.b16 %v905, %v904
        %v1087 = vpack.c.b16 %v907, %v906
        %v1088 = vpack.c.b16 %v909, %v908
        %v1089 = vpack.c.b16 %v911, %v910
        %v1090 = vpack.c.b16 %v913, %v912
        %v1091 = vpack.c.b16 %v915, %v914
        %v1092 = vpack.c.b16 %v917, %v916
        %v1093 = vpack.c.b16 %v919, %v918
        %v1094 = vpack.c.b16 %v921, %v920
        %v1095 = vpack.c.b16 %v923, %v922
        %v1096 = vpack.c.b16 %v925, %v924
        %v1097 = vpack.c.b16 %v927, %v926
        %v1098 = vpack.c.b16 %v929, %v928
        %v1099 = vpack.c.b16 %v931, %v930
        %v1100 = vpack.c.b16 %v933, %v932
        %v1101 = vpack.c.b16 %v935, %v934
        %v1102 = vpack.c.b16 %v937, %v936
        %v1103 = vpack.c.b16 %v939, %v938
        %v1104 = vpack.c.b16 %v941, %v940
        %v1105 = vpack.c.b16 %v943, %v942
        %v1106 = vpack.c.b16 %v945, %v944
        %v1107 = vpack.c.b16 %v947, %v946
        %v1108 = vpack.c.b16 %v949, %v948
        %v1109 = vpack.c.b16 %v951, %v950
        %v1110 = vpack.c.b16 %v953, %v952
        %v1111 = vpack.c.b16 %v955, %v954
        %v1112 = vpack.c.b16 %v957, %v956
        %v1113 = vpack.c.b16 %v959, %v958
        %v1114 = vpack.c.b16 %v961, %v960
        %v1115 = vpack.c.b16 %v963, %v962
        %v1116 = vpack.c.b16 %v965, %v964
        %v1117 = vpack.c.b16 %v967, %v966
        %v1118 = vpack.c.b16 %v969, %v968
        %v1119 = vpack.c.b16 %v971, %v970
        %v1120 = vpack.c.b16 %v973, %v972
        %v1121 = vpack.c.b16 %v975, %v974
        %v1122 = vpack.c.b16 %v977, %v976
        %v1123 = vpack.c.b16 %v979, %v978
        %v1124 = vpack.c.b16 %v981, %v980
        %v1125 = vpack.c.b16 %v983, %v982
        %v1126 = vpack.c.b16 %v985, %v984
        %v1127 = vpack.c.b16 %v987, %v986
        %v1128 = vpack.c.b16 %v989, %v988
        %v1129 = vpack.c.b16 %v991, %v990
        %v1130 = vpack.c.b16 %v993, %v992
        %v1131 = vpack.c.b16 %v995, %v994
        %v1132 = vpack.c.b16 %v997, %v996
        %v1133 = vpack.c.b16 %v999, %v998
        %v1134 = vpack.c.b16 %v1001, %v1000
        %v1135 = vpack.c.b16 %v1003, %v1002
        %v1136 = vpack.c.b16 %v1005, %v1004
        %v1137 = vpack.c.b16 %v1007, %v1006
        %v1138 = vpack.c.b16 %v1009, %v1008
        %v1139 = vpack.c.b16 %v1011, %v1010
        %v1140 = vpack.c.b16 %v1013, %v1012
        %v1141 = vpack.c.b16 %v1015, %v1014
        %v1142 = vpack.c.b16 %v1017, %v1016
        %v1143 = vpack.c.b16 %v1019, %v1018
        %v1144 = vpack.c.b16 %v1021, %v1020
        %v1145 = vpack.c.b16 %v1023, %v1022
        %v1146 = vpack.c.b16 %v1025, %v1024
        %v1147 = vpack.c.b16 %v1027, %v1026
        %v1148 = vpack.c.b16 %v1029, %v1028
        %v1149 = vpack.c.b16 %v1031, %v1030
        %v1150 = vpack.c.b16 %v1033, %v1032
        %v1151 = vpack.c.b16 %v1035, %v1034
        %v1152 = vpack.c.b16 %v1037, %v1036
        %v1153 = vpack.c.b16 %v1039, %v1038
        %v1154 = vpack.c.b16 %v1041, %v1040
        %v1155 = vpack.c.b16 %v1043, %v1042
        %1268 = vmatprep.subr.bf16.mxu0 0
        %1269 = vmatpush1.bf16.msra.mxu0 %v1051
        %1270 = vmatprep.subr.bf16.mxu0 0
        %1271 = vmatpush1.bf16.msra.mxu0 %v1050
        %1272 = vmatprep.subr.bf16.mxu0 0
        %1273 = vmatpush1.bf16.msra.mxu0 %v1049
        %1274 = vmatprep.subr.bf16.mxu0 0
        %1275 = vmatpush1.bf16.msra.mxu0 %v1048
        %1276 = vmatprep.subr.bf16.mxu0 0
        %1277 = vmatpush1.bf16.msra.mxu0 %v1047
        %1278 = vmatprep.subr.bf16.mxu0 0
        %1279 = vmatpush1.bf16.msra.mxu0 %v1046
        %1280 = vmatprep.subr.bf16.mxu0 0
        %1281 = vmatpush1.bf16.msra.mxu0 %v1045
        %1282 = vmatprep.subr.bf16.mxu0 0
        %1283 = vmatpush1.bf16.msra.mxu0 %v1044
        %1284 = vmatprep.subr.bf16.mxu0 0
        %1285 = vmatpush2.bf16.msra.mxu0 %v1059
        %1286 = vmatprep.subr.bf16.mxu0 0
        %1287 = vmatpush2.bf16.msra.mxu0 %v1058
        %1288 = vmatprep.subr.bf16.mxu0 0
        %1289 = vmatpush2.bf16.msra.mxu0 %v1057
        %1290 = vmatprep.subr.bf16.mxu0 0
        %1291 = vmatpush2.bf16.msra.mxu0 %v1056
        %1292 = vmatprep.subr.bf16.mxu0 0
        %1293 = vmatpush2.bf16.msra.mxu0 %v1055
        %1294 = vmatprep.subr.bf16.mxu0 0
        %1295 = vmatpush2.bf16.msra.mxu0 %v1054
        %1296 = vmatprep.subr.bf16.mxu0 0
        %1297 = vmatpush2.bf16.msra.mxu0 %v1053
        %1298 = vmatprep.subr.bf16.mxu0 0
        %1299 = vmatpush2.bf16.msra.mxu0 %v1052
        %1300 = vmatprep.mubr.bf16.mxu0 %v569
        %1301 = vmatmul.mubr.bf16.gmra.mxu0 %v568
        %v1302 = vpop.f32.mrf.mxu0
        %v1303 = vadd.f32 0.0, %v1302
        %v1304 = vpop.f32.mrf.mxu0
        %v1305 = vpop.f32.mrf.mxu0
        %v1306 = vadd.f32 0.0, %v1305
        %v1307 = vpop.f32.mrf.mxu0
        %1308 = vdwg.mxu0
        %1309 = vmatprep.subr.bf16.mxu0 0
        %1310 = vmatpush1.bf16.msra.mxu0 %v1067
        %1311 = vmatprep.subr.bf16.mxu0 0
        %1312 = vmatpush1.bf16.msra.mxu0 %v1066
        %1313 = vmatprep.subr.bf16.mxu0 0
        %1314 = vmatpush1.bf16.msra.mxu0 %v1065
        %1315 = vmatprep.subr.bf16.mxu0 0
        %1316 = vmatpush1.bf16.msra.mxu0 %v1064
        %1317 = vmatprep.subr.bf16.mxu0 0
        %1318 = vmatpush1.bf16.msra.mxu0 %v1063
        %1319 = vmatprep.subr.bf16.mxu0 0
        %1320 = vmatpush1.bf16.msra.mxu0 %v1062
        %1321 = vmatprep.subr.bf16.mxu0 0
        %1322 = vmatpush1.bf16.msra.mxu0 %v1061
        %1323 = vmatprep.subr.bf16.mxu0 0
        %1324 = vmatpush1.bf16.msra.mxu0 %v1060
        %1325 = vmatprep.subr.bf16.mxu0 0
        %1326 = vmatpush2.bf16.msra.mxu0 %v1075
        %1327 = vmatprep.subr.bf16.mxu0 0
        %1328 = vmatpush2.bf16.msra.mxu0 %v1074
        %1329 = vmatprep.subr.bf16.mxu0 0
        %1330 = vmatpush2.bf16.msra.mxu0 %v1073
        %1331 = vmatprep.subr.bf16.mxu0 0
        %1332 = vmatpush2.bf16.msra.mxu0 %v1072
        %1333 = vmatprep.subr.bf16.mxu0 0
        %1334 = vmatpush2.bf16.msra.mxu0 %v1071
        %1335 = vmatprep.subr.bf16.mxu0 0
        %1336 = vmatpush2.bf16.msra.mxu0 %v1070
        %1337 = vmatprep.subr.bf16.mxu0 0
        %1338 = vmatpush2.bf16.msra.mxu0 %v1069
        %1339 = vmatprep.subr.bf16.mxu0 0
        %1340 = vmatpush2.bf16.msra.mxu0 %v1068
        %1341 = vmatprep.mubr.bf16.mxu0 %v571
        %1342 = vmatmul.mubr.bf16.gmra.mxu0 %v570
        %v1343 = vpop.f32.mrf.mxu0
        %v1344 = vadd.f32 %v1303, %v1343
        %v1345 = vpop.f32.mrf.mxu0
        %v1346 = vpop.f32.mrf.mxu0
        %v1347 = vadd.f32 %v1306, %v1346
        %v1348 = vpop.f32.mrf.mxu0
        %1349 = vdwg.mxu0
        %1350 = vmatprep.subr.bf16.mxu0 0
        %1351 = vmatpush1.bf16.msra.mxu0 %v1083
        %1352 = vmatprep.subr.bf16.mxu0 0
        %1353 = vmatpush1.bf16.msra.mxu0 %v1082
        %1354 = vmatprep.subr.bf16.mxu0 0
        %1355 = vmatpush1.bf16.msra.mxu0 %v1081
        %1356 = vmatprep.subr.bf16.mxu0 0
        %1357 = vmatpush1.bf16.msra.mxu0 %v1080
        %1358 = vmatprep.subr.bf16.mxu0 0
        %1359 = vmatpush1.bf16.msra.mxu0 %v1079
        %1360 = vmatprep.subr.bf16.mxu0 0
        %1361 = vmatpush1.bf16.msra.mxu0 %v1078
        %1362 = vmatprep.subr.bf16.mxu0 0
        %1363 = vmatpush1.bf16.msra.mxu0 %v1077
        %1364 = vmatprep.subr.bf16.mxu0 0
        %1365 = vmatpush1.bf16.msra.mxu0 %v1076
        %1366 = vmatprep.subr.bf16.mxu0 0
        %1367 = vmatpush2.bf16.msra.mxu0 %v1091
        %1368 = vmatprep.subr.bf16.mxu0 0
        %1369 = vmatpush2.bf16.msra.mxu0 %v1090
        %1370 = vmatprep.subr.bf16.mxu0 0
        %1371 = vmatpush2.bf16.msra.mxu0 %v1089
        %1372 = vmatprep.subr.bf16.mxu0 0
        %1373 = vmatpush2.bf16.msra.mxu0 %v1088
        %1374 = vmatprep.subr.bf16.mxu0 0
        %1375 = vmatpush2.bf16.msra.mxu0 %v1087
        %1376 = vmatprep.subr.bf16.mxu0 0
        %1377 = vmatpush2.bf16.msra.mxu0 %v1086
        %1378 = vmatprep.subr.bf16.mxu0 0
        %1379 = vmatpush2.bf16.msra.mxu0 %v1085
        %1380 = vmatprep.subr.bf16.mxu0 0
        %1381 = vmatpush2.bf16.msra.mxu0 %v1084
        %1382 = vmatprep.mubr.bf16.mxu0 %v573
        %1383 = vmatmul.mubr.bf16.gmra.mxu0 %v572
        %v1384 = vpop.f32.mrf.mxu0
        %v1385 = vadd.f32 %v1344, %v1384
        %v1386 = vpop.f32.mrf.mxu0
        %v1387 = vpop.f32.mrf.mxu0
        %v1388 = vadd.f32 %v1347, %v1387
        %v1389 = vpop.f32.mrf.mxu0
        %1390 = vdwg.mxu0
        %1391 = vmatprep.subr.bf16.mxu0 0
        %1392 = vmatpush1.bf16.msra.mxu0 %v1099
        %1393 = vmatprep.subr.bf16.mxu0 0
        %1394 = vmatpush1.bf16.msra.mxu0 %v1098
        %1395 = vmatprep.subr.bf16.mxu0 0
        %1396 = vmatpush1.bf16.msra.mxu0 %v1097
        %1397 = vmatprep.subr.bf16.mxu0 0
        %1398 = vmatpush1.bf16.msra.mxu0 %v1096
        %1399 = vmatprep.subr.bf16.mxu0 0
        %1400 = vmatpush1.bf16.msra.mxu0 %v1095
        %1401 = vmatprep.subr.bf16.mxu0 0
        %1402 = vmatpush1.bf16.msra.mxu0 %v1094
        %1403 = vmatprep.subr.bf16.mxu0 0
        %1404 = vmatpush1.bf16.msra.mxu0 %v1093
        %1405 = vmatprep.subr.bf16.mxu0 0
        %1406 = vmatpush1.bf16.msra.mxu0 %v1092
        %1407 = vmatprep.subr.bf16.mxu0 0
        %1408 = vmatpush2.bf16.msra.mxu0 %v1107
        %1409 = vmatprep.subr.bf16.mxu0 0
        %1410 = vmatpush2.bf16.msra.mxu0 %v1106
        %1411 = vmatprep.subr.bf16.mxu0 0
        %1412 = vmatpush2.bf16.msra.mxu0 %v1105
        %1413 = vmatprep.subr.bf16.mxu0 0
        %1414 = vmatpush2.bf16.msra.mxu0 %v1104
        %1415 = vmatprep.subr.bf16.mxu0 0
        %1416 = vmatpush2.bf16.msra.mxu0 %v1103
        %1417 = vmatprep.subr.bf16.mxu0 0
        %1418 = vmatpush2.bf16.msra.mxu0 %v1102
        %1419 = vmatprep.subr.bf16.mxu0 0
        %1420 = vmatpush2.bf16.msra.mxu0 %v1101
        %1421 = vmatprep.subr.bf16.mxu0 0
        %1422 = vmatpush2.bf16.msra.mxu0 %v1100
        %1423 = vmatprep.mubr.bf16.mxu0 %v575
        %1424 = vmatmul.mubr.bf16.gmra.mxu0 %v574
        %v1425 = vpop.f32.mrf.mxu0
        %v1426 = vadd.f32 %v1385, %v1425
        %v1427 = vpop.f32.mrf.mxu0
        %v1428 = vpop.f32.mrf.mxu0
        %v1429 = vadd.f32 %v1388, %v1428
        %v1430 = vpop.f32.mrf.mxu0
        %1431 = vdwg.mxu0
        %1432 = vmatprep.subr.bf16.mxu0 0
        %1433 = vmatpush1.bf16.msra.mxu0 %v1115
        %1434 = vmatprep.subr.bf16.mxu0 0
        %1435 = vmatpush1.bf16.msra.mxu0 %v1114
        %1436 = vmatprep.subr.bf16.mxu0 0
        %1437 = vmatpush1.bf16.msra.mxu0 %v1113
        %1438 = vmatprep.subr.bf16.mxu0 0
        %1439 = vmatpush1.bf16.msra.mxu0 %v1112
        %1440 = vmatprep.subr.bf16.mxu0 0
        %1441 = vmatpush1.bf16.msra.mxu0 %v1111
        %1442 = vmatprep.subr.bf16.mxu0 0
        %1443 = vmatpush1.bf16.msra.mxu0 %v1110
        %1444 = vmatprep.subr.bf16.mxu0 0
        %1445 = vmatpush1.bf16.msra.mxu0 %v1109
        %1446 = vmatprep.subr.bf16.mxu0 0
        %1447 = vmatpush1.bf16.msra.mxu0 %v1108
        %1448 = vmatprep.subr.bf16.mxu0 0
        %1449 = vmatpush2.bf16.msra.mxu0 %v1123
        %1450 = vmatprep.subr.bf16.mxu0 0
        %1451 = vmatpush2.bf16.msra.mxu0 %v1122
        %1452 = vmatprep.subr.bf16.mxu0 0
        %1453 = vmatpush2.bf16.msra.mxu0 %v1121
        %1454 = vmatprep.subr.bf16.mxu0 0
        %1455 = vmatpush2.bf16.msra.mxu0 %v1120
        %1456 = vmatprep.subr.bf16.mxu0 0
        %1457 = vmatpush2.bf16.msra.mxu0 %v1119
        %1458 = vmatprep.subr.bf16.mxu0 0
        %1459 = vmatpush2.bf16.msra.mxu0 %v1118
        %1460 = vmatprep.subr.bf16.mxu0 0
        %1461 = vmatpush2.bf16.msra.mxu0 %v1117
        %1462 = vmatprep.subr.bf16.mxu0 0
        %1463 = vmatpush2.bf16.msra.mxu0 %v1116
        %1464 = vmatprep.mubr.bf16.mxu0 %v577
        %1465 = vmatmul.mubr.bf16.gmra.mxu0 %v576
        %v1466 = vpop.f32.mrf.mxu0
        %v1467 = vadd.f32 %v1426, %v1466
        %v1468 = vpop.f32.mrf.mxu0
        %v1469 = vpop.f32.mrf.mxu0
        %v1470 = vadd.f32 %v1429, %v1469
        %v1471 = vpop.f32.mrf.mxu0
        %1472 = vdwg.mxu0
        %1473 = vmatprep.subr.bf16.mxu0 0
        %1474 = vmatpush1.bf16.msra.mxu0 %v1131
        %1475 = vmatprep.subr.bf16.mxu0 0
        %1476 = vmatpush1.bf16.msra.mxu0 %v1130
        %1477 = vmatprep.subr.bf16.mxu0 0
        %1478 = vmatpush1.bf16.msra.mxu0 %v1129
        %1479 = vmatprep.subr.bf16.mxu0 0
        %1480 = vmatpush1.bf16.msra.mxu0 %v1128
        %1481 = vmatprep.subr.bf16.mxu0 0
        %1482 = vmatpush1.bf16.msra.mxu0 %v1127
        %1483 = vmatprep.subr.bf16.mxu0 0
        %1484 = vmatpush1.bf16.msra.mxu0 %v1126
        %1485 = vmatprep.subr.bf16.mxu0 0
        %1486 = vmatpush1.bf16.msra.mxu0 %v1125
        %1487 = vmatprep.subr.bf16.mxu0 0
        %1488 = vmatpush1.bf16.msra.mxu0 %v1124
        %1489 = vmatprep.subr.bf16.mxu0 0
        %1490 = vmatpush2.bf16.msra.mxu0 %v1139
        %1491 = vmatprep.subr.bf16.mxu0 0
        %1492 = vmatpush2.bf16.msra.mxu0 %v1138
        %1493 = vmatprep.subr.bf16.mxu0 0
        %1494 = vmatpush2.bf16.msra.mxu0 %v1137
        %1495 = vmatprep.subr.bf16.mxu0 0
        %1496 = vmatpush2.bf16.msra.mxu0 %v1136
        %1497 = vmatprep.subr.bf16.mxu0 0
        %1498 = vmatpush2.bf16.msra.mxu0 %v1135
        %1499 = vmatprep.subr.bf16.mxu0 0
        %1500 = vmatpush2.bf16.msra.mxu0 %v1134
        %1501 = vmatprep.subr.bf16.mxu0 0
        %1502 = vmatpush2.bf16.msra.mxu0 %v1133
        %1503 = vmatprep.subr.bf16.mxu0 0
        %1504 = vmatpush2.bf16.msra.mxu0 %v1132
        %1505 = vmatprep.mubr.bf16.mxu0 %v579
        %1506 = vmatmul.mubr.bf16.gmra.mxu0 %v578
        %v1507 = vpop.f32.mrf.mxu0
        %v1508 = vadd.f32 %v1467, %v1507
        %v1509 = vpop.f32.mrf.mxu0
        %v1510 = vpop.f32.mrf.mxu0
        %v1511 = vadd.f32 %v1470, %v1510
        %v1512 = vpop.f32.mrf.mxu0
        %1513 = vdwg.mxu0
        %1514 = vmatprep.subr.bf16.mxu0 0
        %1515 = vmatpush1.bf16.msra.mxu0 %v1147
        %1516 = vmatprep.subr.bf16.mxu0 0
        %1517 = vmatpush1.bf16.msra.mxu0 %v1146
        %1518 = vmatprep.subr.bf16.mxu0 0
        %1519 = vmatpush1.bf16.msra.mxu0 %v1145
        %1520 = vmatprep.subr.bf16.mxu0 0
        %1521 = vmatpush1.bf16.msra.mxu0 %v1144
        %1522 = vmatprep.subr.bf16.mxu0 0
        %1523 = vmatpush1.bf16.msra.mxu0 %v1143
        %1524 = vmatprep.subr.bf16.mxu0 0
        %1525 = vmatpush1.bf16.msra.mxu0 %v1142
        %1526 = vmatprep.subr.bf16.mxu0 0
        %1527 = vmatpush1.bf16.msra.mxu0 %v1141
        %1528 = vmatprep.subr.bf16.mxu0 0
        %1529 = vmatpush1.bf16.msra.mxu0 %v1140
        %1530 = vmatprep.subr.bf16.mxu0 0
        %1531 = vmatpush2.bf16.msra.mxu0 %v1155
        %1532 = vmatprep.subr.bf16.mxu0 0
        %1533 = vmatpush2.bf16.msra.mxu0 %v1154
        %1534 = vmatprep.subr.bf16.mxu0 0
        %1535 = vmatpush2.bf16.msra.mxu0 %v1153
        %1536 = vmatprep.subr.bf16.mxu0 0
        %1537 = vmatpush2.bf16.msra.mxu0 %v1152
        %1538 = vmatprep.subr.bf16.mxu0 0
        %1539 = vmatpush2.bf16.msra.mxu0 %v1151
        %1540 = vmatprep.subr.bf16.mxu0 0
        %1541 = vmatpush2.bf16.msra.mxu0 %v1150
        %1542 = vmatprep.subr.bf16.mxu0 0
        %1543 = vmatpush2.bf16.msra.mxu0 %v1149
        %1544 = vmatprep.subr.bf16.mxu0 0
        %1545 = vmatpush2.bf16.msra.mxu0 %v1148
        %1546 = vmatprep.mubr.bf16.mxu0 %v581
        %1547 = vmatmul.mubr.bf16.gmra.mxu0 %v580
        %v1548 = vpop.f32.mrf.mxu0
        %v1549 = vadd.f32 %v1508, %v1548
        %v1550 = vpop.f32.mrf.mxu0
        %v1551 = vpop.f32.mrf.mxu0
        %v1552 = vadd.f32 %v1511, %v1551
        %v1553 = vpop.f32.mrf.mxu0
        %1554 = vdwg.mxu0
        %v1555 = vadd.f32 %v286, %v1549
        %v1556 = vadd.f32 %v287, %v1552
        %1557 = vst [vmem:[#allocation2] sm:$0xff] %v1555
        %1558 = vst [vmem:[#allocation2 + $0x8] sm:$0xff] %v1556
        %p1559 = scmp.eq.s32.totalorder %s16, 13
        // Predicated region
        $region68: #{_lambda_.7} parent=58 // pred_check
          %p1560 = pneg %p1559
        $region69: #{_lambda_.7} parent=58 // pred_check_branch
          %1562 = sbr.rel (%p1560) target = $region71
        $region70: #{_lambda_.7} parent=58 // pred_region
          %v1563 = vld [vmem:[#allocation2] sm:$0xff]
          %v1564 = vld [vmem:[#allocation2 + $0x8] sm:$0xff]
          %v1565 = vld [vmem:[%s2] sm:$0x1]
          %v1567 = vlaneseq
          %v1568 = vshrl.u32 %v1567, 7
          %v1569 = vsub.s32 0, %v1568
          %v1570 = vrot.slane %v1565, %v1569
          %v1572 = vadd.f32 %v1563, %v1570
          %v1573 = vadd.f32 %v1564, %v1570
          %v1574 = vmax.f32 %v1572, 0.0
          %v1575 = vmax.f32 %v1573, 0.0
          %v1576 = vpack.c.bf16 %v1575, %v1574
          %v1577 = vld [vmem:[%s3] sm:$0xf]
          %v1578 = vld [vmem:[%s3 + $0x4] sm:$0xf]
          %v1579 = vld [vmem:[%s3 + $0x8] sm:$0xf]
          %v1580 = vld [vmem:[%s3 + $0xc] sm:$0xf]
          %v1581 = vld [vmem:[%s3 + $0x10] sm:$0xf]
          %v1582 = vld [vmem:[%s3 + $0x14] sm:$0xf]
          %v1583 = vld [vmem:[%s3 + $0x18] sm:$0xf]
          %v1584 = vld [vmem:[%s3 + $0x1c] sm:$0xf]
          %v1585 = vld [vmem:[%s3 + $0x20] sm:$0xf]
          %v1586 = vld [vmem:[%s3 + $0x24] sm:$0xf]
          %v1587 = vld [vmem:[%s3 + $0x28] sm:$0xf]
          %v1588 = vld [vmem:[%s3 + $0x2c] sm:$0xf]
          %v1589 = vld [vmem:[%s3 + $0x30] sm:$0xf]
          %v1590 = vld [vmem:[%s3 + $0x34] sm:$0xf]
          %v1591 = vld [vmem:[%s3 + $0x38] sm:$0xf]
          %v1592 = vld [vmem:[%s3 + $0x3c] sm:$0xf]
          %v1593 = vld [vmem:[%s4] sm:$0x1]
          %v1595 = vlaneseq
          %v1596 = vshrl.u32 %v1595, 7
          %v1597 = vsub.s32 0, %v1596
          %v1598 = vrot.slane %v1593, %v1597
          %v1616 = vunpack.c.l.b16 %v1577
          %v1617 = vunpack.c.l.b16 %v1578
          %v1618 = vunpack.c.l.b16 %v1579
          %v1619 = vunpack.c.l.b16 %v1580
          %v1620 = vunpack.c.l.b16 %v1581
          %v1621 = vunpack.c.l.b16 %v1582
          %v1622 = vunpack.c.l.b16 %v1583
          %v1623 = vunpack.c.l.b16 %v1584
          %v1624 = vunpack.c.l.b16 %v1585
          %v1625 = vunpack.c.l.b16 %v1586
          %v1626 = vunpack.c.l.b16 %v1587
          %v1627 = vunpack.c.l.b16 %v1588
          %v1628 = vunpack.c.l.b16 %v1589
          %v1629 = vunpack.c.l.b16 %v1590
          %v1630 = vunpack.c.l.b16 %v1591
          %v1631 = vunpack.c.l.b16 %v1592
          %v1632 = vpack.c.b16 %v1617, %v1616
          %v1633 = vpack.c.b16 %v1619, %v1618
          %v1634 = vpack.c.b16 %v1621, %v1620
          %v1635 = vpack.c.b16 %v1623, %v1622
          %v1636 = vpack.c.b16 %v1625, %v1624
          %v1637 = vpack.c.b16 %v1627, %v1626
          %v1638 = vpack.c.b16 %v1629, %v1628
          %v1639 = vpack.c.b16 %v1631, %v1630
          %1648 = vmatprep.subr.bf16.mxu0 0
          %1649 = vmatpush1.bf16.msra.mxu0 %v1639
          %1650 = vmatprep.subr.bf16.mxu0 0
          %1651 = vmatpush1.bf16.msra.mxu0 %v1638
          %1652 = vmatprep.subr.bf16.mxu0 0
          %1653 = vmatpush1.bf16.msra.mxu0 %v1637
          %1654 = vmatprep.subr.bf16.mxu0 0
          %1655 = vmatpush1.bf16.msra.mxu0 %v1636
          %1656 = vmatprep.subr.bf16.mxu0 0
          %1657 = vmatpush1.bf16.msra.mxu0 %v1635
          %1658 = vmatprep.subr.bf16.mxu0 0
          %1659 = vmatpush1.bf16.msra.mxu0 %v1634
          %1660 = vmatprep.subr.bf16.mxu0 0
          %1661 = vmatpush1.bf16.msra.mxu0 %v1633
          %1662 = vmatprep.subr.bf16.mxu0 0
          %1663 = vmatpush1.bf16.msra.mxu0 %v1632
          %1664 = vmatprep.subr.bf16.mxu0 0
          %1665 = vmatpush2.bf16.msra.mxu0 0
          %1666 = vmatprep.subr.bf16.mxu0 0
          %1667 = vmatpush2.bf16.msra.mxu0 0
          %1668 = vmatprep.subr.bf16.mxu0 0
          %1669 = vmatpush2.bf16.msra.mxu0 0
          %1670 = vmatprep.subr.bf16.mxu0 0
          %1671 = vmatpush2.bf16.msra.mxu0 0
          %1672 = vmatprep.subr.bf16.mxu0 0
          %1673 = vmatpush2.bf16.msra.mxu0 0
          %1674 = vmatprep.subr.bf16.mxu0 0
          %1675 = vmatpush2.bf16.msra.mxu0 0
          %1676 = vmatprep.subr.bf16.mxu0 0
          %1677 = vmatpush2.bf16.msra.mxu0 0
          %1678 = vmatprep.subr.bf16.mxu0 0
          %1679 = vmatpush2.bf16.msra.mxu0 0
          %1680 = vmatprep.mubr.bf16.mxu0 0
          %1681 = vmatmul.mubr.bf16.gmra.mxu0 %v1576
          %v1682 = vpop.f32.mrf.mxu0
          %v1683 = vadd.f32 %v1598, %v1682
          %v1684 = vpop.f32.mrf.mxu0
          %v1685 = vpop.f32.mrf.mxu0
          %v1686 = vadd.f32 %v1598, %v1685
          %v1687 = vpop.f32.mrf.mxu0
          %1688 = vdwg.mxu0
          %1689 = vst [vmem:[%s5] sm:$0xff] %v1683
          %1690 = vst [vmem:[%s5 + $0x8] sm:$0xff] %v1686
        $region71: #{_lambda_.7} parent=58 // pred_fallthru
          _
        // Predicated region
        $region72: #{_lambda_.7} parent=58 // pred_check
          %p1691 = pneg %p144
        $region73: #{_lambda_.7} parent=58 // pred_check_branch
          %1693 = sbr.rel (%p1691) target = $region75
        $region74: #{_lambda_.7} parent=58 // pred_region
          _
        $region75: #{_lambda_.7} parent=58 // pred_fallthru
          _
        // Predicated region
        $region76: #{_lambda_.7} parent=58 // pred_check
          %p1694 = pneg %p144
        $region77: #{_lambda_.7} parent=58 // pred_check_branch
          %1696 = sbr.rel (%p1694) target = $region79
        $region78: #{_lambda_.7} parent=58 // pred_region
          _
        $region79: #{_lambda_.7} parent=58 // pred_fallthru
          _
      $region59: #{_lambda_.7} parent=5 // pred_fallthru
        _
      %p1697 = scmp.le.s32.totalorder 2, %s11
      // Predicated region
      $region80: #{_lambda_.7} parent=5 // pred_check
        %p1698 = pneg %p1697
      $region81: #{_lambda_.7} parent=5 // pred_check_branch
        %1700 = sbr.rel (%p1698) target = $region83
      $region82: #{_lambda_.7} parent=5 // pred_region
        %s1701 = ssub.s32 %s11, 2
      $region83: #{_lambda_.7} parent=5 // pred_fallthru
        _
    $region6: #{_lambda_.7} parent=1 // loop_footer
      %s15 = sadd.s32 1, %s11
    $region7: #{_lambda_.7} parent=1 // loop_footer_branch
      %10 = sbr.rel target = $region3
    $region8: #{_lambda_.7} parent=1 // loop_exit
      _

</llo_original>
